<compile_context>
chip_gen: v7x
topology: tpu7x:2x2x1
jax: 0.10.0
libtpu: 0.0.40
codegen_flags: <defaults>
</compile_context>

<pallas_src>
import numpy as np

import jax
import jax.numpy as jnp
from jax.experimental import pallas as pl
from jax.experimental.pallas import tpu as pltpu

# ----------------------------- config ---------------------------------------
IMG_SIZE = 16
PATCH_SIZE = 4
IN_CHANS = 3
NUM_CLASSES = 10
EMBED_DIM = 32
DEPTHS = (2, 2)
NUM_HEADS = (2, 4)
WINDOW_SIZE = 2
MLP_RATIO = 4.0
LN_EPS = 1e-5
_INV_SQRT2 = 0.7071067811865476
_NEG_INF = -1e9  # off-window additive mask (underflows in f32 softmax)

_C0 = EMBED_DIM                       # stage-0 channels (32)
_C1 = 2 * EMBED_DIM                   # stage-1 channels (64)
_H0 = int(_C0 * MLP_RATIO)            # 128
_H1 = int(_C1 * MLP_RATIO)            # 256
_GH = IMG_SIZE // PATCH_SIZE          # 4
_L0 = _GH * _GH                       # 16 tokens per image, stage 0
_L1 = _L0 // 4                        # 4 tokens per image, stage 1
_PVEC = IN_CHANS * PATCH_SIZE * PATCH_SIZE  # 48

# ---- packed parameter-vector layout (one (NUM_VEC, VEC_W) f32 operand) ------
_R_PE_B, _R_PE_G, _R_PE_BETA = 0, 1, 2
_R_S0 = 3                                     # + blk*8 + {g1,b1,qkvb,projb,g2,b2,fb1,fb2}
_R_MG_G = _R_S0 + 8 * DEPTHS[0]
_R_MG_B = _R_MG_G + 1
_R_S1 = _R_MG_B + 1
_R_FN_G = _R_S1 + 8 * DEPTHS[1]
_R_FN_B = _R_FN_G + 1
_R_HEAD_B = _R_FN_B + 1
_NUM_VEC = _R_HEAD_B + 1
_VEC_W = max(_H1, 3 * _C1, 4 * _C0)           # 256


# ----------------------------- kernel helpers --------------------------------
def _ln(x, g, b):
    mu = jnp.mean(x, axis=-1, keepdims=True)
    var = jnp.mean(jnp.square(x - mu), axis=-1, keepdims=True)
    return (x - mu) * jax.lax.rsqrt(var + LN_EPS) * g + b


def _swin_block(x, bias, qkv_w, proj_w, fc1_w, fc2_w,
                g1, b1, qkv_b, proj_b, g2, b2, fb1, fb2, *, heads, hd):
    """One Swin block on per-image raster tokens x: (L, C).

    The static `bias` (heads, L, L) already encodes the (shifted-)window
    structure: rel-pos bias + shift mask within a window, -1e9 across
    windows, so attention is plain dense matmuls with no window reshuffle.
    """
    C = heads * hd
    scale = hd ** -0.5

    # ---- LN1 + fused QKV (bf16 matmul, f32 accumulate) ----
    xn = _ln(x, g1, b1)
    qkv = jnp.dot(xn.astype(jnp.bfloat16), qkv_w,
                  preferred_element_type=jnp.float32) + qkv_b        # (L, 3C)

    # ---- per-head attention (heads statically unrolled) ----
    head_outs = []
    for h in range(heads):
        lo = h * hd
        q = qkv[:, lo:lo + hd].astype(jnp.bfloat16)
        k = qkv[:, C + lo:C + lo + hd].astype(jnp.bfloat16)
        v = qkv[:, 2 * C + lo:2 * C + lo + hd].astype(jnp.bfloat16)
        s = jax.lax.dot_general(q, k, (((1,), (1,)), ((), ())),
                                preferred_element_type=jnp.float32)  # (L, L)
        s = s * scale + bias[h].astype(jnp.float32)   # bf16 bias -> f32 add
        s = s - jnp.max(s, axis=-1, keepdims=True)
        p = jnp.exp(s)
        p = p * pl.reciprocal(jnp.sum(p, axis=-1, keepdims=True), approx=True)
        head_outs.append(jnp.dot(p.astype(jnp.bfloat16), v,
                                 preferred_element_type=jnp.float32))  # (L, hd)

    # ---- single (L,C)@(C,C) output projection + residual ----
    att = jnp.concatenate(head_outs, axis=-1)                         # (L, C)
    x1 = x + jnp.dot(att.astype(jnp.bfloat16), proj_w,
                     preferred_element_type=jnp.float32) + proj_b

    # ---- LN2 + MLP (exact erf GELU) + residual ----
    xn2 = _ln(x1, g2, b2)
    h1 = jnp.dot(xn2.astype(jnp.bfloat16), fc1_w,
                 preferred_element_type=jnp.float32) + fb1
    h1 = 0.5 * h1 * (1.0 + jax.lax.erf(h1 * _INV_SQRT2))
    h2 = jnp.dot(h1.astype(jnp.bfloat16), fc2_w,
                 preferred_element_type=jnp.float32) + fb2
    return x1 + h2


# ----------------------------- the fused kernel ------------------------------
def _swin_forward_kernel(x_ref, vec_ref, bias0_ref, bias1_ref,
                         pe_w_ref, qkv0_ref, proj0_ref, fc1a_ref, fc2a_ref,
                         msel_ref, merge_w_ref,
                         qkv1_ref, proj1_ref, fc1b_ref, fc2b_ref,
                         head_w_ref, o_ref):
    """Whole SwinTransformer forward for one image (grid axis = batch)."""

    def vget(row, n):                      # (1, n) f32 slice of the packed vecs
        return vec_ref[row:row + 1, 0:n]

    # ---- patch embedding (per-patch linear == stride-4 conv) + LN ----
    xp = x_ref[0]                                                    # (16, 48)
    y = jnp.dot(xp.astype(jnp.bfloat16), pe_w_ref[...],
                preferred_element_type=jnp.float32) + vget(_R_PE_B, _C0)
    y = _ln(y, vget(_R_PE_G, _C0), vget(_R_PE_BETA, _C0))            # (16, 32)

    # ---- stage 0: 2 blocks, dim=32, heads=2 ----
    for blk in range(DEPTHS[0]):
        r = _R_S0 + blk * 8
        y = _swin_block(
            y, bias0_ref[blk],
            qkv0_ref[blk], proj0_ref[blk], fc1a_ref[blk], fc2a_ref[blk],
            vget(r, _C0), vget(r + 1, _C0), vget(r + 2, 3 * _C0),
            vget(r + 3, _C0), vget(r + 4, _C0), vget(r + 5, _C0),
            vget(r + 6, _H0), vget(r + 7, _C0),
            heads=NUM_HEADS[0], hd=_C0 // NUM_HEADS[0])

    # ---- patch merging: (16,32) -> gather 2x2 -> (4,128) -> LN -> (4,64) ----
    # Exact f32 selection matmuls (0/1 matrices) gather the four 2x2 corners.
    parts = [jnp.dot(msel_ref[k], y, preferred_element_type=jnp.float32)
             for k in range(4)]
    ym = jnp.concatenate(parts, axis=-1)                             # (4, 128)
    ym = _ln(ym, vget(_R_MG_G, 4 * _C0), vget(_R_MG_B, 4 * _C0))
    y = jnp.dot(ym.astype(jnp.bfloat16), merge_w_ref[...],
                preferred_element_type=jnp.float32)                  # (4, 64)

    # ---- stage 1: 2 blocks, dim=64, heads=4 (single window, no shift) ----
    for blk in range(DEPTHS[1]):
        r = _R_S1 + blk * 8
        y = _swin_block(
            y, bias1_ref[blk],
            qkv1_ref[blk], proj1_ref[blk], fc1b_ref[blk], fc2b_ref[blk],
            vget(r, _C1), vget(r + 1, _C1), vget(r + 2, 3 * _C1),
            vget(r + 3, _C1), vget(r + 4, _C1), vget(r + 5, _C1),
            vget(r + 6, _H1), vget(r + 7, _C1),
            heads=NUM_HEADS[1], hd=_C1 // NUM_HEADS[1])

    # ---- final LN + token mean + classifier ----
    yn = _ln(y, vget(_R_FN_G, _C1), vget(_R_FN_B, _C1))              # (4, 64)
    pooled = jnp.mean(yn, axis=0, keepdims=True)                     # (1, 64)
    logits = jnp.dot(pooled.astype(jnp.bfloat16), head_w_ref[...],
                     preferred_element_type=jnp.float32) + vget(_R_HEAD_B,
                                                                NUM_CLASSES)
    o_ref[0] = logits                                                # (1, 10)


# ----------------------------- static setup ----------------------------------
def rel_position_index(ws):
    coords = np.stack(np.meshgrid(np.arange(ws), np.arange(ws), indexing="ij"))
    cf = coords.reshape(2, -1)
    rel = cf[:, :, None] - cf[:, None, :]
    rel = rel.transpose(1, 2, 0).astype(np.int64)
    rel[:, :, 0] += ws - 1
    rel[:, :, 1] += ws - 1
    rel[:, :, 0] *= 2 * ws - 1
    return rel.sum(-1)  # (N, N)


def build_attn_mask(H, W, ws, shift):
    img_mask = np.zeros((1, H, W, 1), np.float32)
    h_slices = (slice(0, -ws), slice(-ws, -shift), slice(-shift, None))
    w_slices = (slice(0, -ws), slice(-ws, -shift), slice(-shift, None))
    cnt = 0
    for h in h_slices:
        for w in w_slices:
            img_mask[:, h, w, :] = cnt
            cnt += 1
    mw = (img_mask.reshape(1, H // ws, ws, W // ws, ws, 1)
          .transpose(0, 1, 3, 2, 4, 5).reshape(-1, ws * ws))
    diff = mw[:, None, :] - mw[:, :, None]
    return np.where(diff != 0, -100.0, 0.0).astype(np.float32)  # (nW, N, N)


def _block_bias_raster(Hs, Ws, heads, nominal_shift, table):
    """Combined additive attention bias (heads, L, L) in raster token order."""
    ws = WINDOW_SIZE if min(Hs, Ws) > WINDOW_SIZE else min(Hs, Ws)
    sh = nominal_shift if min(Hs, Ws) > WINDOW_SIZE else 0
    N = ws * ws
    idx = rel_position_index(ws).reshape(-1)
    rel = table[idx].reshape(N, N, heads).transpose(2, 0, 1)        # (h, N, N)
    nW = (Hs // ws) * (Ws // ws)
    smask = (build_attn_mask(Hs, Ws, ws, sh) if sh > 0
             else np.zeros((nW, N, N), np.float32))
    L = Hs * Ws
    win = np.zeros(L, np.int64)
    pos = np.zeros(L, np.int64)
    for r in range(Hs):
        for c in range(Ws):
            sr, sc = (r - sh) % Hs, (c - sh) % Ws
            win[r * Ws + c] = (sr // ws) * (Ws // ws) + (sc // ws)
            pos[r * Ws + c] = (sr % ws) * ws + (sc % ws)
    bias = np.full((heads, L, L), _NEG_INF, np.float32)
    for i in range(L):
        for j in range(L):
            if win[i] == win[j]:
                bias[:, i, j] = (rel[:, pos[i], pos[j]]
                                 + smask[win[i], pos[i], pos[j]])
    return bias


def init_params(key):
    cnt = [0]

    def nrm(shape, dtype=jnp.bfloat16, std=0.02):
        cnt[0] += 1
        w = std * jax.random.normal(jax.random.fold_in(key, cnt[0]), shape,
                                    jnp.float32)
        return w.astype(dtype)

    # ---- packed (1,C)-style parameter vectors (zeros, LN gains = 1) ----
    vecs = np.zeros((_NUM_VEC, _VEC_W), np.float32)
    vecs[_R_PE_G, :_C0] = 1.0
    for blk in range(DEPTHS[0]):
        r = _R_S0 + blk * 8
        vecs[r, :_C0] = 1.0
        vecs[r + 4, :_C0] = 1.0
    vecs[_R_MG_G, :4 * _C0] = 1.0
    for blk in range(DEPTHS[1]):
        r = _R_S1 + blk * 8
        vecs[r, :_C1] = 1.0
        vecs[r + 4, :_C1] = 1.0
    vecs[_R_FN_G, :_C1] = 1.0

    # ---- static attention biases (bf16; cast up inside the kernel) ----
    ws = WINDOW_SIZE
    n_rel = (2 * ws - 1) * (2 * ws - 1)
    bias0 = np.stack([
        _block_bias_raster(_GH, _GH, NUM_HEADS[0],
                           0 if blk % 2 == 0 else WINDOW_SIZE // 2,
                           np.asarray(nrm((n_rel, NUM_HEADS[0]), jnp.float32)))
        for blk in range(DEPTHS[0])])                    # (2, 2, 16, 16)
    bias1 = np.stack([
        _block_bias_raster(_GH // 2, _GH // 2, NUM_HEADS[1],
                           0 if blk % 2 == 0 else WINDOW_SIZE // 2,
                           np.asarray(nrm((n_rel, NUM_HEADS[1]), jnp.float32)))
        for blk in range(DEPTHS[1])])                    # (2, 4, 4, 4)

    # ---- exact 0/1 selection matrices for the 2x2 patch-merging gather ----
    msel = np.zeros((4, _L1, _L0), np.float32)
    for i in range(_GH // 2):
        for j in range(_GH // 2):
            o = i * (_GH // 2) + j
            msel[0, o, _GH * (2 * i) + 2 * j] = 1.0      # x[0::2, 0::2]
            msel[1, o, _GH * (2 * i + 1) + 2 * j] = 1.0  # x[1::2, 0::2]
            msel[2, o, _GH * (2 * i) + 2 * j + 1] = 1.0  # x[0::2, 1::2]
            msel[3, o, _GH * (2 * i + 1) + 2 * j + 1] = 1.0  # x[1::2, 1::2]

    return dict(
        vecs=jnp.asarray(vecs),
        bias0=jnp.asarray(bias0).astype(jnp.bfloat16),
        bias1=jnp.asarray(bias1).astype(jnp.bfloat16),
        merge_sel=jnp.asarray(msel),
        pe_w=nrm((_PVEC, _C0)),
        qkv0=nrm((DEPTHS[0], _C0, 3 * _C0)),
        proj0=nrm((DEPTHS[0], _C0, _C0)),
        fc1_0=nrm((DEPTHS[0], _C0, _H0)),
        fc2_0=nrm((DEPTHS[0], _H0, _C0)),
        merge_w=nrm((4 * _C0, _C1)),                     # reduction, no bias
        qkv1=nrm((DEPTHS[1], _C1, 3 * _C1)),
        proj1=nrm((DEPTHS[1], _C1, _C1)),
        fc1_1=nrm((DEPTHS[1], _C1, _H1)),
        fc2_1=nrm((DEPTHS[1], _H1, _C1)),
        head_w=nrm((_C1, NUM_CLASSES)),
    )


# ----------------------------- forward ---------------------------------------
@jax.jit
def swin_forward(params, x):
    B = x.shape[0]
    ps = PATCH_SIZE

    # Input layout prep only (single XLA copy): (B,C,H,W) -> per-patch vectors.
    xp = (x.reshape(B, IN_CHANS, _GH, ps, _GH, ps)
          .transpose(0, 2, 4, 1, 3, 5)
          .reshape(B, _L0, _PVEC))

    weight_args = (params["vecs"], params["bias0"], params["bias1"],
                   params["pe_w"],
                   params["qkv0"], params["proj0"], params["fc1_0"],
                   params["fc2_0"],
                   params["merge_sel"], params["merge_w"],
                   params["qkv1"], params["proj1"], params["fc1_1"],
                   params["fc2_1"],
                   params["head_w"])

    def full_spec(a):
        nd = a.ndim
        return pl.BlockSpec(a.shape, lambda b: (0,) * nd)

    in_specs = ([pl.BlockSpec((1, _L0, _PVEC), lambda b: (b, 0, 0))]
                + [full_spec(a) for a in weight_args])

    out = pl.pallas_call(
        _swin_forward_kernel,
        grid=(B,),
        in_specs=in_specs,
        out_specs=pl.BlockSpec((1, 1, NUM_CLASSES), lambda b: (b, 0, 0)),
        out_shape=jax.ShapeDtypeStruct((B, 1, NUM_CLASSES), jnp.float32),
        compiler_params=pltpu.CompilerParams(
            dimension_semantics=("parallel",)),   # batch across TCs on v7x
    )(xp, *weight_args)
    return out.reshape(B, NUM_CLASSES)


# ----------------------------- main ------------------------------------------
if __name__ == "__main__":
    root = jax.random.PRNGKey(0)
    BATCH = 2
    params = init_params(jax.random.fold_in(root, 1))
    x = jax.random.normal(jax.random.fold_in(root, 2),
                          (BATCH, IN_CHANS, IMG_SIZE, IMG_SIZE), jnp.float32)
    logits = swin_forward(params, x)
    jax.block_until_ready(logits)
    assert logits.shape == (BATCH, NUM_CLASSES)
    assert bool(jnp.all(jnp.isfinite(logits)))
    print("KERNEL_OK")
</pallas_src>

<mosaic_0001>
module attributes {stable_mosaic.version = 11 : i64} {
  func.func @_swin_forward_kernel(%arg0: i32, %arg1: memref<1x16x48xf32, #tpu.memory_space<vmem>>, %arg2: memref<40x256xf32, #tpu.memory_space<vmem>>, %arg3: memref<2x2x16x16xbf16, #tpu.memory_space<vmem>>, %arg4: memref<2x4x4x4xbf16, #tpu.memory_space<vmem>>, %arg5: memref<48x32xbf16, #tpu.memory_space<vmem>>, %arg6: memref<2x32x96xbf16, #tpu.memory_space<vmem>>, %arg7: memref<2x32x32xbf16, #tpu.memory_space<vmem>>, %arg8: memref<2x32x128xbf16, #tpu.memory_space<vmem>>, %arg9: memref<2x128x32xbf16, #tpu.memory_space<vmem>>, %arg10: memref<4x4x16xf32, #tpu.memory_space<vmem>>, %arg11: memref<128x64xbf16, #tpu.memory_space<vmem>>, %arg12: memref<2x64x192xbf16, #tpu.memory_space<vmem>>, %arg13: memref<2x64x64xbf16, #tpu.memory_space<vmem>>, %arg14: memref<2x64x256xbf16, #tpu.memory_space<vmem>>, %arg15: memref<2x256x64xbf16, #tpu.memory_space<vmem>>, %arg16: memref<64x10xbf16, #tpu.memory_space<vmem>>, %arg17: memref<1x1x10xf32, #tpu.memory_space<vmem>>) attributes {dimension_semantics = [#tpu.dimension_semantics<parallel>], iteration_bounds = array<i64: 2>, scalar_prefetch = 0 : i64, scratch_operands = 0 : i64, tpu.core_type = #tpu.core_type<tc>, window_params = [{transform_indices = @transform_0, window_bounds = array<i64: 1, 16, 48>}, {pipeline_mode = #tpu.pipeline_mode<synchronous>, transform_indices = @transform_1, window_bounds = array<i64: 40, 256>}, {pipeline_mode = #tpu.pipeline_mode<synchronous>, transform_indices = @transform_2, window_bounds = array<i64: 2, 2, 16, 16>}, {pipeline_mode = #tpu.pipeline_mode<synchronous>, transform_indices = @transform_3, window_bounds = array<i64: 2, 4, 4, 4>}, {pipeline_mode = #tpu.pipeline_mode<synchronous>, transform_indices = @transform_4, window_bounds = array<i64: 48, 32>}, {pipeline_mode = #tpu.pipeline_mode<synchronous>, transform_indices = @transform_5, window_bounds = array<i64: 2, 32, 96>}, {pipeline_mode = #tpu.pipeline_mode<synchronous>, transform_indices = @transform_6, window_bounds = array<i64: 2, 32, 32>}, {pipeline_mode = #tpu.pipeline_mode<synchronous>, transform_indices = @transform_7, window_bounds = array<i64: 2, 32, 128>}, {pipeline_mode = #tpu.pipeline_mode<synchronous>, transform_indices = @transform_8, window_bounds = array<i64: 2, 128, 32>}, {pipeline_mode = #tpu.pipeline_mode<synchronous>, transform_indices = @transform_9, window_bounds = array<i64: 4, 4, 16>}, {pipeline_mode = #tpu.pipeline_mode<synchronous>, transform_indices = @transform_10, window_bounds = array<i64: 128, 64>}, {pipeline_mode = #tpu.pipeline_mode<synchronous>, transform_indices = @transform_11, window_bounds = array<i64: 2, 64, 192>}, {pipeline_mode = #tpu.pipeline_mode<synchronous>, transform_indices = @transform_12, window_bounds = array<i64: 2, 64, 64>}, {pipeline_mode = #tpu.pipeline_mode<synchronous>, transform_indices = @transform_13, window_bounds = array<i64: 2, 64, 256>}, {pipeline_mode = #tpu.pipeline_mode<synchronous>, transform_indices = @transform_14, window_bounds = array<i64: 2, 256, 64>}, {pipeline_mode = #tpu.pipeline_mode<synchronous>, transform_indices = @transform_15, window_bounds = array<i64: 64, 10>}, {transform_indices = @transform_16, window_bounds = array<i64: 1, 1, 10>}]} {
    %c0 = arith.constant 0 : index
    %c0_0 = arith.constant 0 : index
    %c0_1 = arith.constant 0 : index
    %0 = vector.load %arg1[%c0, %c0_0, %c0_1] : memref<1x16x48xf32, #tpu.memory_space<vmem>>, vector<1x16x48xf32>
    %1 = vector.shape_cast %0 : vector<1x16x48xf32> to vector<16x48xf32>
    %2 = arith.truncf %1 : vector<16x48xf32> to vector<16x48xbf16>
    %c0_2 = arith.constant 0 : index
    %c0_3 = arith.constant 0 : index
    %3 = vector.load %arg5[%c0_2, %c0_3] : memref<48x32xbf16, #tpu.memory_space<vmem>>, vector<48x32xbf16>
    %cst = arith.constant dense<0.000000e+00> : vector<16x32xf32>
    %4 = tpu.matmul %2, %3, %cst {dimension_numbers = #tpu.dot_dimension_numbers<[1], [0], [0], [1], [0, 0, 1, 1], [], []>} : vector<16x48xbf16>, vector<48x32xbf16>, vector<16x32xf32> -> vector<16x32xf32>
    %c0_4 = arith.constant 0 : index
    %c0_5 = arith.constant 0 : index
    %5 = vector.load %arg2[%c0_4, %c0_5] : memref<40x256xf32, #tpu.memory_space<vmem>>, vector<1x32xf32>
    %6 = vector.broadcast %5 : vector<1x32xf32> to vector<16x32xf32>
    %7 = arith.addf %4, %6 : vector<16x32xf32>
    %c1 = arith.constant 1 : index
    %c0_6 = arith.constant 0 : index
    %8 = vector.load %arg2[%c1, %c0_6] : memref<40x256xf32, #tpu.memory_space<vmem>>, vector<1x32xf32>
    %c2 = arith.constant 2 : index
    %c0_7 = arith.constant 0 : index
    %9 = vector.load %arg2[%c2, %c0_7] : memref<40x256xf32, #tpu.memory_space<vmem>>, vector<1x32xf32>
    %cst_8 = arith.constant dense<0.000000e+00> : vector<16xf32>
    %10 = vector.multi_reduction <add>, %7, %cst_8 [1] : vector<16x32xf32> to vector<16xf32>
    %11 = vector.shape_cast %10 : vector<16xf32> to vector<16x1xf32>
    %cst_9 = arith.constant 3.200000e+01 : f32
    %12 = vector.broadcast %cst_9 : f32 to vector<16x1xf32>
    %13 = arith.divf %11, %12 : vector<16x1xf32>
    %14 = vector.broadcast %13 : vector<16x1xf32> to vector<16x32xf32>
    %15 = arith.subf %7, %14 : vector<16x32xf32>
    %16 = arith.mulf %15, %15 : vector<16x32xf32>
    %cst_10 = arith.constant dense<0.000000e+00> : vector<16xf32>
    %17 = vector.multi_reduction <add>, %16, %cst_10 [1] : vector<16x32xf32> to vector<16xf32>
    %18 = vector.shape_cast %17 : vector<16xf32> to vector<16x1xf32>
    %cst_11 = arith.constant 3.200000e+01 : f32
    %19 = vector.broadcast %cst_11 : f32 to vector<16x1xf32>
    %20 = arith.divf %18, %19 : vector<16x1xf32>
    %21 = vector.broadcast %13 : vector<16x1xf32> to vector<16x32xf32>
    %22 = arith.subf %7, %21 : vector<16x32xf32>
    %cst_12 = arith.constant 9.99999974E-6 : f32
    %23 = vector.broadcast %cst_12 : f32 to vector<16x1xf32>
    %24 = arith.addf %20, %23 : vector<16x1xf32>
    %25 = math.rsqrt %24 : vector<16x1xf32>
    %26 = vector.broadcast %25 : vector<16x1xf32> to vector<16x32xf32>
    %27 = arith.mulf %22, %26 : vector<16x32xf32>
    %28 = vector.broadcast %8 : vector<1x32xf32> to vector<16x32xf32>
    %29 = arith.mulf %27, %28 : vector<16x32xf32>
    %30 = vector.broadcast %9 : vector<1x32xf32> to vector<16x32xf32>
    %31 = arith.addf %29, %30 : vector<16x32xf32>
    %c0_13 = arith.constant 0 : index
    %c0_14 = arith.constant 0 : index
    %c0_15 = arith.constant 0 : index
    %c0_16 = arith.constant 0 : index
    %32 = vector.load %arg3[%c0_13, %c0_14, %c0_15, %c0_16] : memref<2x2x16x16xbf16, #tpu.memory_space<vmem>>, vector<1x2x16x16xbf16>
    %33 = vector.shape_cast %32 : vector<1x2x16x16xbf16> to vector<2x16x16xbf16>
    %c0_17 = arith.constant 0 : index
    %c0_18 = arith.constant 0 : index
    %c0_19 = arith.constant 0 : index
    %34 = vector.load %arg6[%c0_17, %c0_18, %c0_19] : memref<2x32x96xbf16, #tpu.memory_space<vmem>>, vector<1x32x96xbf16>
    %35 = vector.shape_cast %34 : vector<1x32x96xbf16> to vector<32x96xbf16>
    %c0_20 = arith.constant 0 : index
    %c0_21 = arith.constant 0 : index
    %c0_22 = arith.constant 0 : index
    %36 = vector.load %arg7[%c0_20, %c0_21, %c0_22] : memref<2x32x32xbf16, #tpu.memory_space<vmem>>, vector<1x32x32xbf16>
    %37 = vector.shape_cast %36 : vector<1x32x32xbf16> to vector<32x32xbf16>
    %c0_23 = arith.constant 0 : index
    %c0_24 = arith.constant 0 : index
    %c0_25 = arith.constant 0 : index
    %38 = vector.load %arg8[%c0_23, %c0_24, %c0_25] : memref<2x32x128xbf16, #tpu.memory_space<vmem>>, vector<1x32x128xbf16>
    %39 = vector.shape_cast %38 : vector<1x32x128xbf16> to vector<32x128xbf16>
    %c0_26 = arith.constant 0 : index
    %c0_27 = arith.constant 0 : index
    %c0_28 = arith.constant 0 : index
    %40 = vector.load %arg9[%c0_26, %c0_27, %c0_28] : memref<2x128x32xbf16, #tpu.memory_space<vmem>>, vector<1x128x32xbf16>
    %41 = vector.shape_cast %40 : vector<1x128x32xbf16> to vector<128x32xbf16>
    %c3 = arith.constant 3 : index
    %c0_29 = arith.constant 0 : index
    %42 = vector.load %arg2[%c3, %c0_29] : memref<40x256xf32, #tpu.memory_space<vmem>>, vector<1x32xf32>
    %c4 = arith.constant 4 : index
    %c0_30 = arith.constant 0 : index
    %43 = vector.load %arg2[%c4, %c0_30] : memref<40x256xf32, #tpu.memory_space<vmem>>, vector<1x32xf32>
    %c5 = arith.constant 5 : index
    %c0_31 = arith.constant 0 : index
    %44 = vector.load %arg2[%c5, %c0_31] : memref<40x256xf32, #tpu.memory_space<vmem>>, vector<1x96xf32>
    %c6 = arith.constant 6 : index
    %c0_32 = arith.constant 0 : index
    %45 = vector.load %arg2[%c6, %c0_32] : memref<40x256xf32, #tpu.memory_space<vmem>>, vector<1x32xf32>
    %c7 = arith.constant 7 : index
    %c0_33 = arith.constant 0 : index
    %46 = vector.load %arg2[%c7, %c0_33] : memref<40x256xf32, #tpu.memory_space<vmem>>, vector<1x32xf32>
    %c8 = arith.constant 8 : index
    %c0_34 = arith.constant 0 : index
    %47 = vector.load %arg2[%c8, %c0_34] : memref<40x256xf32, #tpu.memory_space<vmem>>, vector<1x32xf32>
    %c9 = arith.constant 9 : index
    %c0_35 = arith.constant 0 : index
    %48 = vector.load %arg2[%c9, %c0_35] : memref<40x256xf32, #tpu.memory_space<vmem>>, vector<1x128xf32>
    %c10 = arith.constant 10 : index
    %c0_36 = arith.constant 0 : index
    %49 = vector.load %arg2[%c10, %c0_36] : memref<40x256xf32, #tpu.memory_space<vmem>>, vector<1x32xf32>
    %cst_37 = arith.constant dense<0.000000e+00> : vector<16xf32>
    %50 = vector.multi_reduction <add>, %31, %cst_37 [1] : vector<16x32xf32> to vector<16xf32>
    %51 = vector.shape_cast %50 : vector<16xf32> to vector<16x1xf32>
    %cst_38 = arith.constant 3.200000e+01 : f32
    %52 = vector.broadcast %cst_38 : f32 to vector<16x1xf32>
    %53 = arith.divf %51, %52 : vector<16x1xf32>
    %54 = vector.broadcast %53 : vector<16x1xf32> to vector<16x32xf32>
    %55 = arith.subf %31, %54 : vector<16x32xf32>
    %56 = arith.mulf %55, %55 : vector<16x32xf32>
    %cst_39 = arith.constant dense<0.000000e+00> : vector<16xf32>
    %57 = vector.multi_reduction <add>, %56, %cst_39 [1] : vector<16x32xf32> to vector<16xf32>
    %58 = vector.shape_cast %57 : vector<16xf32> to vector<16x1xf32>
    %cst_40 = arith.constant 3.200000e+01 : f32
    %59 = vector.broadcast %cst_40 : f32 to vector<16x1xf32>
    %60 = arith.divf %58, %59 : vector<16x1xf32>
    %61 = vector.broadcast %53 : vector<16x1xf32> to vector<16x32xf32>
    %62 = arith.subf %31, %61 : vector<16x32xf32>
    %cst_41 = arith.constant 9.99999974E-6 : f32
    %63 = vector.broadcast %cst_41 : f32 to vector<16x1xf32>
    %64 = arith.addf %60, %63 : vector<16x1xf32>
    %65 = math.rsqrt %64 : vector<16x1xf32>
    %66 = vector.broadcast %65 : vector<16x1xf32> to vector<16x32xf32>
    %67 = arith.mulf %62, %66 : vector<16x32xf32>
    %68 = vector.broadcast %42 : vector<1x32xf32> to vector<16x32xf32>
    %69 = arith.mulf %67, %68 : vector<16x32xf32>
    %70 = vector.broadcast %43 : vector<1x32xf32> to vector<16x32xf32>
    %71 = arith.addf %69, %70 : vector<16x32xf32>
    %72 = arith.truncf %71 : vector<16x32xf32> to vector<16x32xbf16>
    %cst_42 = arith.constant dense<0.000000e+00> : vector<16x96xf32>
    %73 = tpu.matmul %72, %35, %cst_42 {dimension_numbers = #tpu.dot_dimension_numbers<[1], [0], [0], [1], [0, 0, 1, 1], [], []>} : vector<16x32xbf16>, vector<32x96xbf16>, vector<16x96xf32> -> vector<16x96xf32>
    %74 = vector.broadcast %44 : vector<1x96xf32> to vector<16x96xf32>
    %75 = arith.addf %73, %74 : vector<16x96xf32>
    %76 = vector.extract_strided_slice %75 {offsets = [0, 0], sizes = [16, 16], strides = [1, 1]} : vector<16x96xf32> to vector<16x16xf32>
    %77 = arith.truncf %76 : vector<16x16xf32> to vector<16x16xbf16>
    %78 = vector.extract_strided_slice %75 {offsets = [0, 32], sizes = [16, 16], strides = [1, 1]} : vector<16x96xf32> to vector<16x16xf32>
    %79 = arith.truncf %78 : vector<16x16xf32> to vector<16x16xbf16>
    %80 = vector.extract_strided_slice %75 {offsets = [0, 64], sizes = [16, 16], strides = [1, 1]} : vector<16x96xf32> to vector<16x16xf32>
    %81 = arith.truncf %80 : vector<16x16xf32> to vector<16x16xbf16>
    %cst_43 = arith.constant dense<0.000000e+00> : vector<16x16xf32>
    %82 = tpu.matmul %77, %79, %cst_43 {dimension_numbers = #tpu.dot_dimension_numbers<[1], [1], [0], [0], [0, 0, 1, 0], [], []>} : vector<16x16xbf16>, vector<16x16xbf16>, vector<16x16xf32> -> vector<16x16xf32>
    %cst_44 = arith.constant 2.500000e-01 : f32
    %83 = vector.broadcast %cst_44 : f32 to vector<16x16xf32>
    %84 = arith.mulf %82, %83 : vector<16x16xf32>
    %85 = vector.extract_strided_slice %33 {offsets = [0, 0, 0], sizes = [1, 16, 16], strides = [1, 1, 1]} : vector<2x16x16xbf16> to vector<1x16x16xbf16>
    %86 = vector.shape_cast %85 : vector<1x16x16xbf16> to vector<16x16xbf16>
    %87 = arith.extf %86 : vector<16x16xbf16> to vector<16x16xf32>
    %88 = arith.addf %84, %87 : vector<16x16xf32>
    %cst_45 = arith.constant dense<0xFF800000> : vector<16xf32>
    %89 = vector.multi_reduction <maximumf>, %88, %cst_45 [1] : vector<16x16xf32> to vector<16xf32>
    %90 = vector.shape_cast %89 : vector<16xf32> to vector<16x1xf32>
    %91 = vector.broadcast %90 : vector<16x1xf32> to vector<16x16xf32>
    %92 = arith.subf %88, %91 : vector<16x16xf32>
    %93 = math.exp %92 : vector<16x16xf32>
    %cst_46 = arith.constant dense<0.000000e+00> : vector<16xf32>
    %94 = vector.multi_reduction <add>, %93, %cst_46 [1] : vector<16x16xf32> to vector<16xf32>
    %95 = vector.shape_cast %94 : vector<16xf32> to vector<16x1xf32>
    %96 = tpu.reciprocal %95 {approx = true} : vector<16x1xf32> -> vector<16x1xf32>
    %97 = vector.broadcast %96 : vector<16x1xf32> to vector<16x16xf32>
    %98 = arith.mulf %93, %97 : vector<16x16xf32>
    %99 = arith.truncf %98 : vector<16x16xf32> to vector<16x16xbf16>
    %cst_47 = arith.constant dense<0.000000e+00> : vector<16x16xf32>
    %100 = tpu.matmul %99, %81, %cst_47 {dimension_numbers = #tpu.dot_dimension_numbers<[1], [0], [0], [1], [0, 0, 1, 1], [], []>} : vector<16x16xbf16>, vector<16x16xbf16>, vector<16x16xf32> -> vector<16x16xf32>
    %101 = vector.extract_strided_slice %75 {offsets = [0, 16], sizes = [16, 16], strides = [1, 1]} : vector<16x96xf32> to vector<16x16xf32>
    %102 = arith.truncf %101 : vector<16x16xf32> to vector<16x16xbf16>
    %103 = vector.extract_strided_slice %75 {offsets = [0, 48], sizes = [16, 16], strides = [1, 1]} : vector<16x96xf32> to vector<16x16xf32>
    %104 = arith.truncf %103 : vector<16x16xf32> to vector<16x16xbf16>
    %105 = vector.extract_strided_slice %75 {offsets = [0, 80], sizes = [16, 16], strides = [1, 1]} : vector<16x96xf32> to vector<16x16xf32>
    %106 = arith.truncf %105 : vector<16x16xf32> to vector<16x16xbf16>
    %cst_48 = arith.constant dense<0.000000e+00> : vector<16x16xf32>
    %107 = tpu.matmul %102, %104, %cst_48 {dimension_numbers = #tpu.dot_dimension_numbers<[1], [1], [0], [0], [0, 0, 1, 0], [], []>} : vector<16x16xbf16>, vector<16x16xbf16>, vector<16x16xf32> -> vector<16x16xf32>
    %cst_49 = arith.constant 2.500000e-01 : f32
    %108 = vector.broadcast %cst_49 : f32 to vector<16x16xf32>
    %109 = arith.mulf %107, %108 : vector<16x16xf32>
    %110 = vector.extract_strided_slice %33 {offsets = [1, 0, 0], sizes = [1, 16, 16], strides = [1, 1, 1]} : vector<2x16x16xbf16> to vector<1x16x16xbf16>
    %111 = vector.shape_cast %110 : vector<1x16x16xbf16> to vector<16x16xbf16>
    %112 = arith.extf %111 : vector<16x16xbf16> to vector<16x16xf32>
    %113 = arith.addf %109, %112 : vector<16x16xf32>
    %cst_50 = arith.constant dense<0xFF800000> : vector<16xf32>
    %114 = vector.multi_reduction <maximumf>, %113, %cst_50 [1] : vector<16x16xf32> to vector<16xf32>
    %115 = vector.shape_cast %114 : vector<16xf32> to vector<16x1xf32>
    %116 = vector.broadcast %115 : vector<16x1xf32> to vector<16x16xf32>
    %117 = arith.subf %113, %116 : vector<16x16xf32>
    %118 = math.exp %117 : vector<16x16xf32>
    %cst_51 = arith.constant dense<0.000000e+00> : vector<16xf32>
    %119 = vector.multi_reduction <add>, %118, %cst_51 [1] : vector<16x16xf32> to vector<16xf32>
    %120 = vector.shape_cast %119 : vector<16xf32> to vector<16x1xf32>
    %121 = tpu.reciprocal %120 {approx = true} : vector<16x1xf32> -> vector<16x1xf32>
    %122 = vector.broadcast %121 : vector<16x1xf32> to vector<16x16xf32>
    %123 = arith.mulf %118, %122 : vector<16x16xf32>
    %124 = arith.truncf %123 : vector<16x16xf32> to vector<16x16xbf16>
    %cst_52 = arith.constant dense<0.000000e+00> : vector<16x16xf32>
    %125 = tpu.matmul %124, %106, %cst_52 {dimension_numbers = #tpu.dot_dimension_numbers<[1], [0], [0], [1], [0, 0, 1, 1], [], []>} : vector<16x16xbf16>, vector<16x16xbf16>, vector<16x16xf32> -> vector<16x16xf32>
    %126 = tpu.concatenate %100, %125 in 1 : vector<16x16xf32>, vector<16x16xf32> -> vector<16x32xf32>
    %127 = arith.truncf %126 : vector<16x32xf32> to vector<16x32xbf16>
    %cst_53 = arith.constant dense<0.000000e+00> : vector<16x32xf32>
    %128 = tpu.matmul %127, %37, %cst_53 {dimension_numbers = #tpu.dot_dimension_numbers<[1], [0], [0], [1], [0, 0, 1, 1], [], []>} : vector<16x32xbf16>, vector<32x32xbf16>, vector<16x32xf32> -> vector<16x32xf32>
    %129 = arith.addf %31, %128 : vector<16x32xf32>
    %130 = vector.broadcast %45 : vector<1x32xf32> to vector<16x32xf32>
    %131 = arith.addf %129, %130 : vector<16x32xf32>
    %cst_54 = arith.constant dense<0.000000e+00> : vector<16xf32>
    %132 = vector.multi_reduction <add>, %131, %cst_54 [1] : vector<16x32xf32> to vector<16xf32>
    %133 = vector.shape_cast %132 : vector<16xf32> to vector<16x1xf32>
    %cst_55 = arith.constant 3.200000e+01 : f32
    %134 = vector.broadcast %cst_55 : f32 to vector<16x1xf32>
    %135 = arith.divf %133, %134 : vector<16x1xf32>
    %136 = vector.broadcast %135 : vector<16x1xf32> to vector<16x32xf32>
    %137 = arith.subf %131, %136 : vector<16x32xf32>
    %138 = arith.mulf %137, %137 : vector<16x32xf32>
    %cst_56 = arith.constant dense<0.000000e+00> : vector<16xf32>
    %139 = vector.multi_reduction <add>, %138, %cst_56 [1] : vector<16x32xf32> to vector<16xf32>
    %140 = vector.shape_cast %139 : vector<16xf32> to vector<16x1xf32>
    %cst_57 = arith.constant 3.200000e+01 : f32
    %141 = vector.broadcast %cst_57 : f32 to vector<16x1xf32>
    %142 = arith.divf %140, %141 : vector<16x1xf32>
    %143 = vector.broadcast %135 : vector<16x1xf32> to vector<16x32xf32>
    %144 = arith.subf %131, %143 : vector<16x32xf32>
    %cst_58 = arith.constant 9.99999974E-6 : f32
    %145 = vector.broadcast %cst_58 : f32 to vector<16x1xf32>
    %146 = arith.addf %142, %145 : vector<16x1xf32>
    %147 = math.rsqrt %146 : vector<16x1xf32>
    %148 = vector.broadcast %147 : vector<16x1xf32> to vector<16x32xf32>
    %149 = arith.mulf %144, %148 : vector<16x32xf32>
    %150 = vector.broadcast %46 : vector<1x32xf32> to vector<16x32xf32>
    %151 = arith.mulf %149, %150 : vector<16x32xf32>
    %152 = vector.broadcast %47 : vector<1x32xf32> to vector<16x32xf32>
    %153 = arith.addf %151, %152 : vector<16x32xf32>
    %154 = arith.truncf %153 : vector<16x32xf32> to vector<16x32xbf16>
    %cst_59 = arith.constant dense<0.000000e+00> : vector<16x128xf32>
    %155 = tpu.matmul %154, %39, %cst_59 {dimension_numbers = #tpu.dot_dimension_numbers<[1], [0], [0], [1], [0, 0, 1, 1], [], []>} : vector<16x32xbf16>, vector<32x128xbf16>, vector<16x128xf32> -> vector<16x128xf32>
    %156 = vector.broadcast %48 : vector<1x128xf32> to vector<16x128xf32>
    %157 = arith.addf %155, %156 : vector<16x128xf32>
    %cst_60 = arith.constant 5.000000e-01 : f32
    %158 = vector.broadcast %cst_60 : f32 to vector<16x128xf32>
    %159 = arith.mulf %158, %157 : vector<16x128xf32>
    %cst_61 = arith.constant 0.707106769 : f32
    %160 = vector.broadcast %cst_61 : f32 to vector<16x128xf32>
    %161 = arith.mulf %157, %160 : vector<16x128xf32>
    %162 = math.erf %161 : vector<16x128xf32>
    %cst_62 = arith.constant 1.000000e+00 : f32
    %163 = vector.broadcast %cst_62 : f32 to vector<16x128xf32>
    %164 = arith.addf %163, %162 : vector<16x128xf32>
    %165 = arith.mulf %159, %164 : vector<16x128xf32>
    %166 = arith.truncf %165 : vector<16x128xf32> to vector<16x128xbf16>
    %cst_63 = arith.constant dense<0.000000e+00> : vector<16x32xf32>
    %167 = tpu.matmul %166, %41, %cst_63 {dimension_numbers = #tpu.dot_dimension_numbers<[1], [0], [0], [1], [0, 0, 1, 1], [], []>} : vector<16x128xbf16>, vector<128x32xbf16>, vector<16x32xf32> -> vector<16x32xf32>
    %168 = vector.broadcast %49 : vector<1x32xf32> to vector<16x32xf32>
    %169 = arith.addf %167, %168 : vector<16x32xf32>
    %170 = arith.addf %131, %169 : vector<16x32xf32>
    %c1_64 = arith.constant 1 : index
    %c0_65 = arith.constant 0 : index
    %c0_66 = arith.constant 0 : index
    %c0_67 = arith.constant 0 : index
    %171 = vector.load %arg3[%c1_64, %c0_65, %c0_66, %c0_67] : memref<2x2x16x16xbf16, #tpu.memory_space<vmem>>, vector<1x2x16x16xbf16>
    %172 = vector.shape_cast %171 : vector<1x2x16x16xbf16> to vector<2x16x16xbf16>
    %c1_68 = arith.constant 1 : index
    %c0_69 = arith.constant 0 : index
    %c0_70 = arith.constant 0 : index
    %173 = vector.load %arg6[%c1_68, %c0_69, %c0_70] : memref<2x32x96xbf16, #tpu.memory_space<vmem>>, vector<1x32x96xbf16>
    %174 = vector.shape_cast %173 : vector<1x32x96xbf16> to vector<32x96xbf16>
    %c1_71 = arith.constant 1 : index
    %c0_72 = arith.constant 0 : index
    %c0_73 = arith.constant 0 : index
    %175 = vector.load %arg7[%c1_71, %c0_72, %c0_73] : memref<2x32x32xbf16, #tpu.memory_space<vmem>>, vector<1x32x32xbf16>
    %176 = vector.shape_cast %175 : vector<1x32x32xbf16> to vector<32x32xbf16>
    %c1_74 = arith.constant 1 : index
    %c0_75 = arith.constant 0 : index
    %c0_76 = arith.constant 0 : index
    %177 = vector.load %arg8[%c1_74, %c0_75, %c0_76] : memref<2x32x128xbf16, #tpu.memory_space<vmem>>, vector<1x32x128xbf16>
    %178 = vector.shape_cast %177 : vector<1x32x128xbf16> to vector<32x128xbf16>
    %c1_77 = arith.constant 1 : index
    %c0_78 = arith.constant 0 : index
    %c0_79 = arith.constant 0 : index
    %179 = vector.load %arg9[%c1_77, %c0_78, %c0_79] : memref<2x128x32xbf16, #tpu.memory_space<vmem>>, vector<1x128x32xbf16>
    %180 = vector.shape_cast %179 : vector<1x128x32xbf16> to vector<128x32xbf16>
    %c11 = arith.constant 11 : index
    %c0_80 = arith.constant 0 : index
    %181 = vector.load %arg2[%c11, %c0_80] : memref<40x256xf32, #tpu.memory_space<vmem>>, vector<1x32xf32>
    %c12 = arith.constant 12 : index
    %c0_81 = arith.constant 0 : index
    %182 = vector.load %arg2[%c12, %c0_81] : memref<40x256xf32, #tpu.memory_space<vmem>>, vector<1x32xf32>
    %c13 = arith.constant 13 : index
    %c0_82 = arith.constant 0 : index
    %183 = vector.load %arg2[%c13, %c0_82] : memref<40x256xf32, #tpu.memory_space<vmem>>, vector<1x96xf32>
    %c14 = arith.constant 14 : index
    %c0_83 = arith.constant 0 : index
    %184 = vector.load %arg2[%c14, %c0_83] : memref<40x256xf32, #tpu.memory_space<vmem>>, vector<1x32xf32>
    %c15 = arith.constant 15 : index
    %c0_84 = arith.constant 0 : index
    %185 = vector.load %arg2[%c15, %c0_84] : memref<40x256xf32, #tpu.memory_space<vmem>>, vector<1x32xf32>
    %c16 = arith.constant 16 : index
    %c0_85 = arith.constant 0 : index
    %186 = vector.load %arg2[%c16, %c0_85] : memref<40x256xf32, #tpu.memory_space<vmem>>, vector<1x32xf32>
    %c17 = arith.constant 17 : index
    %c0_86 = arith.constant 0 : index
    %187 = vector.load %arg2[%c17, %c0_86] : memref<40x256xf32, #tpu.memory_space<vmem>>, vector<1x128xf32>
    %c18 = arith.constant 18 : index
    %c0_87 = arith.constant 0 : index
    %188 = vector.load %arg2[%c18, %c0_87] : memref<40x256xf32, #tpu.memory_space<vmem>>, vector<1x32xf32>
    %cst_88 = arith.constant dense<0.000000e+00> : vector<16xf32>
    %189 = vector.multi_reduction <add>, %170, %cst_88 [1] : vector<16x32xf32> to vector<16xf32>
    %190 = vector.shape_cast %189 : vector<16xf32> to vector<16x1xf32>
    %cst_89 = arith.constant 3.200000e+01 : f32
    %191 = vector.broadcast %cst_89 : f32 to vector<16x1xf32>
    %192 = arith.divf %190, %191 : vector<16x1xf32>
    %193 = vector.broadcast %192 : vector<16x1xf32> to vector<16x32xf32>
    %194 = arith.subf %170, %193 : vector<16x32xf32>
    %195 = arith.mulf %194, %194 : vector<16x32xf32>
    %cst_90 = arith.constant dense<0.000000e+00> : vector<16xf32>
    %196 = vector.multi_reduction <add>, %195, %cst_90 [1] : vector<16x32xf32> to vector<16xf32>
    %197 = vector.shape_cast %196 : vector<16xf32> to vector<16x1xf32>
    %cst_91 = arith.constant 3.200000e+01 : f32
    %198 = vector.broadcast %cst_91 : f32 to vector<16x1xf32>
    %199 = arith.divf %197, %198 : vector<16x1xf32>
    %200 = vector.broadcast %192 : vector<16x1xf32> to vector<16x32xf32>
    %201 = arith.subf %170, %200 : vector<16x32xf32>
    %cst_92 = arith.constant 9.99999974E-6 : f32
    %202 = vector.broadcast %cst_92 : f32 to vector<16x1xf32>
    %203 = arith.addf %199, %202 : vector<16x1xf32>
    %204 = math.rsqrt %203 : vector<16x1xf32>
    %205 = vector.broadcast %204 : vector<16x1xf32> to vector<16x32xf32>
    %206 = arith.mulf %201, %205 : vector<16x32xf32>
    %207 = vector.broadcast %181 : vector<1x32xf32> to vector<16x32xf32>
    %208 = arith.mulf %206, %207 : vector<16x32xf32>
    %209 = vector.broadcast %182 : vector<1x32xf32> to vector<16x32xf32>
    %210 = arith.addf %208, %209 : vector<16x32xf32>
    %211 = arith.truncf %210 : vector<16x32xf32> to vector<16x32xbf16>
    %cst_93 = arith.constant dense<0.000000e+00> : vector<16x96xf32>
    %212 = tpu.matmul %211, %174, %cst_93 {dimension_numbers = #tpu.dot_dimension_numbers<[1], [0], [0], [1], [0, 0, 1, 1], [], []>} : vector<16x32xbf16>, vector<32x96xbf16>, vector<16x96xf32> -> vector<16x96xf32>
    %213 = vector.broadcast %183 : vector<1x96xf32> to vector<16x96xf32>
    %214 = arith.addf %212, %213 : vector<16x96xf32>
    %215 = vector.extract_strided_slice %214 {offsets = [0, 0], sizes = [16, 16], strides = [1, 1]} : vector<16x96xf32> to vector<16x16xf32>
    %216 = arith.truncf %215 : vector<16x16xf32> to vector<16x16xbf16>
    %217 = vector.extract_strided_slice %214 {offsets = [0, 32], sizes = [16, 16], strides = [1, 1]} : vector<16x96xf32> to vector<16x16xf32>
    %218 = arith.truncf %217 : vector<16x16xf32> to vector<16x16xbf16>
    %219 = vector.extract_strided_slice %214 {offsets = [0, 64], sizes = [16, 16], strides = [1, 1]} : vector<16x96xf32> to vector<16x16xf32>
    %220 = arith.truncf %219 : vector<16x16xf32> to vector<16x16xbf16>
    %cst_94 = arith.constant dense<0.000000e+00> : vector<16x16xf32>
    %221 = tpu.matmul %216, %218, %cst_94 {dimension_numbers = #tpu.dot_dimension_numbers<[1], [1], [0], [0], [0, 0, 1, 0], [], []>} : vector<16x16xbf16>, vector<16x16xbf16>, vector<16x16xf32> -> vector<16x16xf32>
    %cst_95 = arith.constant 2.500000e-01 : f32
    %222 = vector.broadcast %cst_95 : f32 to vector<16x16xf32>
    %223 = arith.mulf %221, %222 : vector<16x16xf32>
    %224 = vector.extract_strided_slice %172 {offsets = [0, 0, 0], sizes = [1, 16, 16], strides = [1, 1, 1]} : vector<2x16x16xbf16> to vector<1x16x16xbf16>
    %225 = vector.shape_cast %224 : vector<1x16x16xbf16> to vector<16x16xbf16>
    %226 = arith.extf %225 : vector<16x16xbf16> to vector<16x16xf32>
    %227 = arith.addf %223, %226 : vector<16x16xf32>
    %cst_96 = arith.constant dense<0xFF800000> : vector<16xf32>
    %228 = vector.multi_reduction <maximumf>, %227, %cst_96 [1] : vector<16x16xf32> to vector<16xf32>
    %229 = vector.shape_cast %228 : vector<16xf32> to vector<16x1xf32>
    %230 = vector.broadcast %229 : vector<16x1xf32> to vector<16x16xf32>
    %231 = arith.subf %227, %230 : vector<16x16xf32>
    %232 = math.exp %231 : vector<16x16xf32>
    %cst_97 = arith.constant dense<0.000000e+00> : vector<16xf32>
    %233 = vector.multi_reduction <add>, %232, %cst_97 [1] : vector<16x16xf32> to vector<16xf32>
    %234 = vector.shape_cast %233 : vector<16xf32> to vector<16x1xf32>
    %235 = tpu.reciprocal %234 {approx = true} : vector<16x1xf32> -> vector<16x1xf32>
    %236 = vector.broadcast %235 : vector<16x1xf32> to vector<16x16xf32>
    %237 = arith.mulf %232, %236 : vector<16x16xf32>
    %238 = arith.truncf %237 : vector<16x16xf32> to vector<16x16xbf16>
    %cst_98 = arith.constant dense<0.000000e+00> : vector<16x16xf32>
    %239 = tpu.matmul %238, %220, %cst_98 {dimension_numbers = #tpu.dot_dimension_numbers<[1], [0], [0], [1], [0, 0, 1, 1], [], []>} : vector<16x16xbf16>, vector<16x16xbf16>, vector<16x16xf32> -> vector<16x16xf32>
    %240 = vector.extract_strided_slice %214 {offsets = [0, 16], sizes = [16, 16], strides = [1, 1]} : vector<16x96xf32> to vector<16x16xf32>
    %241 = arith.truncf %240 : vector<16x16xf32> to vector<16x16xbf16>
    %242 = vector.extract_strided_slice %214 {offsets = [0, 48], sizes = [16, 16], strides = [1, 1]} : vector<16x96xf32> to vector<16x16xf32>
    %243 = arith.truncf %242 : vector<16x16xf32> to vector<16x16xbf16>
    %244 = vector.extract_strided_slice %214 {offsets = [0, 80], sizes = [16, 16], strides = [1, 1]} : vector<16x96xf32> to vector<16x16xf32>
    %245 = arith.truncf %244 : vector<16x16xf32> to vector<16x16xbf16>
    %cst_99 = arith.constant dense<0.000000e+00> : vector<16x16xf32>
    %246 = tpu.matmul %241, %243, %cst_99 {dimension_numbers = #tpu.dot_dimension_numbers<[1], [1], [0], [0], [0, 0, 1, 0], [], []>} : vector<16x16xbf16>, vector<16x16xbf16>, vector<16x16xf32> -> vector<16x16xf32>
    %cst_100 = arith.constant 2.500000e-01 : f32
    %247 = vector.broadcast %cst_100 : f32 to vector<16x16xf32>
    %248 = arith.mulf %246, %247 : vector<16x16xf32>
    %249 = vector.extract_strided_slice %172 {offsets = [1, 0, 0], sizes = [1, 16, 16], strides = [1, 1, 1]} : vector<2x16x16xbf16> to vector<1x16x16xbf16>
    %250 = vector.shape_cast %249 : vector<1x16x16xbf16> to vector<16x16xbf16>
    %251 = arith.extf %250 : vector<16x16xbf16> to vector<16x16xf32>
    %252 = arith.addf %248, %251 : vector<16x16xf32>
    %cst_101 = arith.constant dense<0xFF800000> : vector<16xf32>
    %253 = vector.multi_reduction <maximumf>, %252, %cst_101 [1] : vector<16x16xf32> to vector<16xf32>
    %254 = vector.shape_cast %253 : vector<16xf32> to vector<16x1xf32>
    %255 = vector.broadcast %254 : vector<16x1xf32> to vector<16x16xf32>
    %256 = arith.subf %252, %255 : vector<16x16xf32>
    %257 = math.exp %256 : vector<16x16xf32>
    %cst_102 = arith.constant dense<0.000000e+00> : vector<16xf32>
    %258 = vector.multi_reduction <add>, %257, %cst_102 [1] : vector<16x16xf32> to vector<16xf32>
    %259 = vector.shape_cast %258 : vector<16xf32> to vector<16x1xf32>
    %260 = tpu.reciprocal %259 {approx = true} : vector<16x1xf32> -> vector<16x1xf32>
    %261 = vector.broadcast %260 : vector<16x1xf32> to vector<16x16xf32>
    %262 = arith.mulf %257, %261 : vector<16x16xf32>
    %263 = arith.truncf %262 : vector<16x16xf32> to vector<16x16xbf16>
    %cst_103 = arith.constant dense<0.000000e+00> : vector<16x16xf32>
    %264 = tpu.matmul %263, %245, %cst_103 {dimension_numbers = #tpu.dot_dimension_numbers<[1], [0], [0], [1], [0, 0, 1, 1], [], []>} : vector<16x16xbf16>, vector<16x16xbf16>, vector<16x16xf32> -> vector<16x16xf32>
    %265 = tpu.concatenate %239, %264 in 1 : vector<16x16xf32>, vector<16x16xf32> -> vector<16x32xf32>
    %266 = arith.truncf %265 : vector<16x32xf32> to vector<16x32xbf16>
    %cst_104 = arith.constant dense<0.000000e+00> : vector<16x32xf32>
    %267 = tpu.matmul %266, %176, %cst_104 {dimension_numbers = #tpu.dot_dimension_numbers<[1], [0], [0], [1], [0, 0, 1, 1], [], []>} : vector<16x32xbf16>, vector<32x32xbf16>, vector<16x32xf32> -> vector<16x32xf32>
    %268 = arith.addf %170, %267 : vector<16x32xf32>
    %269 = vector.broadcast %184 : vector<1x32xf32> to vector<16x32xf32>
    %270 = arith.addf %268, %269 : vector<16x32xf32>
    %cst_105 = arith.constant dense<0.000000e+00> : vector<16xf32>
    %271 = vector.multi_reduction <add>, %270, %cst_105 [1] : vector<16x32xf32> to vector<16xf32>
    %272 = vector.shape_cast %271 : vector<16xf32> to vector<16x1xf32>
    %cst_106 = arith.constant 3.200000e+01 : f32
    %273 = vector.broadcast %cst_106 : f32 to vector<16x1xf32>
    %274 = arith.divf %272, %273 : vector<16x1xf32>
    %275 = vector.broadcast %274 : vector<16x1xf32> to vector<16x32xf32>
    %276 = arith.subf %270, %275 : vector<16x32xf32>
    %277 = arith.mulf %276, %276 : vector<16x32xf32>
    %cst_107 = arith.constant dense<0.000000e+00> : vector<16xf32>
    %278 = vector.multi_reduction <add>, %277, %cst_107 [1] : vector<16x32xf32> to vector<16xf32>
    %279 = vector.shape_cast %278 : vector<16xf32> to vector<16x1xf32>
    %cst_108 = arith.constant 3.200000e+01 : f32
    %280 = vector.broadcast %cst_108 : f32 to vector<16x1xf32>
    %281 = arith.divf %279, %280 : vector<16x1xf32>
    %282 = vector.broadcast %274 : vector<16x1xf32> to vector<16x32xf32>
    %283 = arith.subf %270, %282 : vector<16x32xf32>
    %cst_109 = arith.constant 9.99999974E-6 : f32
    %284 = vector.broadcast %cst_109 : f32 to vector<16x1xf32>
    %285 = arith.addf %281, %284 : vector<16x1xf32>
    %286 = math.rsqrt %285 : vector<16x1xf32>
    %287 = vector.broadcast %286 : vector<16x1xf32> to vector<16x32xf32>
    %288 = arith.mulf %283, %287 : vector<16x32xf32>
    %289 = vector.broadcast %185 : vector<1x32xf32> to vector<16x32xf32>
    %290 = arith.mulf %288, %289 : vector<16x32xf32>
    %291 = vector.broadcast %186 : vector<1x32xf32> to vector<16x32xf32>
    %292 = arith.addf %290, %291 : vector<16x32xf32>
    %293 = arith.truncf %292 : vector<16x32xf32> to vector<16x32xbf16>
    %cst_110 = arith.constant dense<0.000000e+00> : vector<16x128xf32>
    %294 = tpu.matmul %293, %178, %cst_110 {dimension_numbers = #tpu.dot_dimension_numbers<[1], [0], [0], [1], [0, 0, 1, 1], [], []>} : vector<16x32xbf16>, vector<32x128xbf16>, vector<16x128xf32> -> vector<16x128xf32>
    %295 = vector.broadcast %187 : vector<1x128xf32> to vector<16x128xf32>
    %296 = arith.addf %294, %295 : vector<16x128xf32>
    %cst_111 = arith.constant 5.000000e-01 : f32
    %297 = vector.broadcast %cst_111 : f32 to vector<16x128xf32>
    %298 = arith.mulf %297, %296 : vector<16x128xf32>
    %cst_112 = arith.constant 0.707106769 : f32
    %299 = vector.broadcast %cst_112 : f32 to vector<16x128xf32>
    %300 = arith.mulf %296, %299 : vector<16x128xf32>
    %301 = math.erf %300 : vector<16x128xf32>
    %cst_113 = arith.constant 1.000000e+00 : f32
    %302 = vector.broadcast %cst_113 : f32 to vector<16x128xf32>
    %303 = arith.addf %302, %301 : vector<16x128xf32>
    %304 = arith.mulf %298, %303 : vector<16x128xf32>
    %305 = arith.truncf %304 : vector<16x128xf32> to vector<16x128xbf16>
    %cst_114 = arith.constant dense<0.000000e+00> : vector<16x32xf32>
    %306 = tpu.matmul %305, %180, %cst_114 {dimension_numbers = #tpu.dot_dimension_numbers<[1], [0], [0], [1], [0, 0, 1, 1], [], []>} : vector<16x128xbf16>, vector<128x32xbf16>, vector<16x32xf32> -> vector<16x32xf32>
    %307 = vector.broadcast %188 : vector<1x32xf32> to vector<16x32xf32>
    %308 = arith.addf %306, %307 : vector<16x32xf32>
    %309 = arith.addf %270, %308 : vector<16x32xf32>
    %c0_115 = arith.constant 0 : index
    %c0_116 = arith.constant 0 : index
    %c0_117 = arith.constant 0 : index
    %310 = vector.load %arg10[%c0_115, %c0_116, %c0_117] : memref<4x4x16xf32, #tpu.memory_space<vmem>>, vector<1x4x16xf32>
    %311 = vector.shape_cast %310 : vector<1x4x16xf32> to vector<4x16xf32>
    %cst_118 = arith.constant dense<0.000000e+00> : vector<4x32xf32>
    %312 = tpu.matmul %311, %309, %cst_118 {dimension_numbers = #tpu.dot_dimension_numbers<[1], [0], [0], [1], [0, 0, 1, 1], [], []>} : vector<4x16xf32>, vector<16x32xf32>, vector<4x32xf32> -> vector<4x32xf32>
    %c1_119 = arith.constant 1 : index
    %c0_120 = arith.constant 0 : index
    %c0_121 = arith.constant 0 : index
    %313 = vector.load %arg10[%c1_119, %c0_120, %c0_121] : memref<4x4x16xf32, #tpu.memory_space<vmem>>, vector<1x4x16xf32>
    %314 = vector.shape_cast %313 : vector<1x4x16xf32> to vector<4x16xf32>
    %cst_122 = arith.constant dense<0.000000e+00> : vector<4x32xf32>
    %315 = tpu.matmul %314, %309, %cst_122 {dimension_numbers = #tpu.dot_dimension_numbers<[1], [0], [0], [1], [0, 0, 1, 1], [], []>} : vector<4x16xf32>, vector<16x32xf32>, vector<4x32xf32> -> vector<4x32xf32>
    %c2_123 = arith.constant 2 : index
    %c0_124 = arith.constant 0 : index
    %c0_125 = arith.constant 0 : index
    %316 = vector.load %arg10[%c2_123, %c0_124, %c0_125] : memref<4x4x16xf32, #tpu.memory_space<vmem>>, vector<1x4x16xf32>
    %317 = vector.shape_cast %316 : vector<1x4x16xf32> to vector<4x16xf32>
    %cst_126 = arith.constant dense<0.000000e+00> : vector<4x32xf32>
    %318 = tpu.matmul %317, %309, %cst_126 {dimension_numbers = #tpu.dot_dimension_numbers<[1], [0], [0], [1], [0, 0, 1, 1], [], []>} : vector<4x16xf32>, vector<16x32xf32>, vector<4x32xf32> -> vector<4x32xf32>
    %c3_127 = arith.constant 3 : index
    %c0_128 = arith.constant 0 : index
    %c0_129 = arith.constant 0 : index
    %319 = vector.load %arg10[%c3_127, %c0_128, %c0_129] : memref<4x4x16xf32, #tpu.memory_space<vmem>>, vector<1x4x16xf32>
    %320 = vector.shape_cast %319 : vector<1x4x16xf32> to vector<4x16xf32>
    %cst_130 = arith.constant dense<0.000000e+00> : vector<4x32xf32>
    %321 = tpu.matmul %320, %309, %cst_130 {dimension_numbers = #tpu.dot_dimension_numbers<[1], [0], [0], [1], [0, 0, 1, 1], [], []>} : vector<4x16xf32>, vector<16x32xf32>, vector<4x32xf32> -> vector<4x32xf32>
    %322 = tpu.concatenate %312, %315, %318, %321 in 1 : vector<4x32xf32>, vector<4x32xf32>, vector<4x32xf32>, vector<4x32xf32> -> vector<4x128xf32>
    %c19 = arith.constant 19 : index
    %c0_131 = arith.constant 0 : index
    %323 = vector.load %arg2[%c19, %c0_131] : memref<40x256xf32, #tpu.memory_space<vmem>>, vector<1x128xf32>
    %c20 = arith.constant 20 : index
    %c0_132 = arith.constant 0 : index
    %324 = vector.load %arg2[%c20, %c0_132] : memref<40x256xf32, #tpu.memory_space<vmem>>, vector<1x128xf32>
    %cst_133 = arith.constant dense<0.000000e+00> : vector<4xf32>
    %325 = vector.multi_reduction <add>, %322, %cst_133 [1] : vector<4x128xf32> to vector<4xf32>
    %326 = vector.shape_cast %325 : vector<4xf32> to vector<4x1xf32>
    %cst_134 = arith.constant 1.280000e+02 : f32
    %327 = vector.broadcast %cst_134 : f32 to vector<4x1xf32>
    %328 = arith.divf %326, %327 : vector<4x1xf32>
    %329 = vector.broadcast %328 : vector<4x1xf32> to vector<4x128xf32>
    %330 = arith.subf %322, %329 : vector<4x128xf32>
    %331 = arith.mulf %330, %330 : vector<4x128xf32>
    %cst_135 = arith.constant dense<0.000000e+00> : vector<4xf32>
    %332 = vector.multi_reduction <add>, %331, %cst_135 [1] : vector<4x128xf32> to vector<4xf32>
    %333 = vector.shape_cast %332 : vector<4xf32> to vector<4x1xf32>
    %cst_136 = arith.constant 1.280000e+02 : f32
    %334 = vector.broadcast %cst_136 : f32 to vector<4x1xf32>
    %335 = arith.divf %333, %334 : vector<4x1xf32>
    %336 = vector.broadcast %328 : vector<4x1xf32> to vector<4x128xf32>
    %337 = arith.subf %322, %336 : vector<4x128xf32>
    %cst_137 = arith.constant 9.99999974E-6 : f32
    %338 = vector.broadcast %cst_137 : f32 to vector<4x1xf32>
    %339 = arith.addf %335, %338 : vector<4x1xf32>
    %340 = math.rsqrt %339 : vector<4x1xf32>
    %341 = vector.broadcast %340 : vector<4x1xf32> to vector<4x128xf32>
    %342 = arith.mulf %337, %341 : vector<4x128xf32>
    %343 = vector.broadcast %323 : vector<1x128xf32> to vector<4x128xf32>
    %344 = arith.mulf %342, %343 : vector<4x128xf32>
    %345 = vector.broadcast %324 : vector<1x128xf32> to vector<4x128xf32>
    %346 = arith.addf %344, %345 : vector<4x128xf32>
    %347 = arith.truncf %346 : vector<4x128xf32> to vector<4x128xbf16>
    %c0_138 = arith.constant 0 : index
    %c0_139 = arith.constant 0 : index
    %348 = vector.load %arg11[%c0_138, %c0_139] : memref<128x64xbf16, #tpu.memory_space<vmem>>, vector<128x64xbf16>
    %cst_140 = arith.constant dense<0.000000e+00> : vector<4x64xf32>
    %349 = tpu.matmul %347, %348, %cst_140 {dimension_numbers = #tpu.dot_dimension_numbers<[1], [0], [0], [1], [0, 0, 1, 1], [], []>} : vector<4x128xbf16>, vector<128x64xbf16>, vector<4x64xf32> -> vector<4x64xf32>
    %c0_141 = arith.constant 0 : index
    %c0_142 = arith.constant 0 : index
    %c0_143 = arith.constant 0 : index
    %c0_144 = arith.constant 0 : index
    %350 = vector.load %arg4[%c0_141, %c0_142, %c0_143, %c0_144] : memref<2x4x4x4xbf16, #tpu.memory_space<vmem>>, vector<1x4x4x4xbf16>
    %351 = vector.shape_cast %350 : vector<1x4x4x4xbf16> to vector<4x4x4xbf16>
    %c0_145 = arith.constant 0 : index
    %c0_146 = arith.constant 0 : index
    %c0_147 = arith.constant 0 : index
    %352 = vector.load %arg12[%c0_145, %c0_146, %c0_147] : memref<2x64x192xbf16, #tpu.memory_space<vmem>>, vector<1x64x192xbf16>
    %353 = vector.shape_cast %352 : vector<1x64x192xbf16> to vector<64x192xbf16>
    %c0_148 = arith.constant 0 : index
    %c0_149 = arith.constant 0 : index
    %c0_150 = arith.constant 0 : index
    %354 = vector.load %arg13[%c0_148, %c0_149, %c0_150] : memref<2x64x64xbf16, #tpu.memory_space<vmem>>, vector<1x64x64xbf16>
    %355 = vector.shape_cast %354 : vector<1x64x64xbf16> to vector<64x64xbf16>
    %c0_151 = arith.constant 0 : index
    %c0_152 = arith.constant 0 : index
    %c0_153 = arith.constant 0 : index
    %356 = vector.load %arg14[%c0_151, %c0_152, %c0_153] : memref<2x64x256xbf16, #tpu.memory_space<vmem>>, vector<1x64x256xbf16>
    %357 = vector.shape_cast %356 : vector<1x64x256xbf16> to vector<64x256xbf16>
    %c0_154 = arith.constant 0 : index
    %c0_155 = arith.constant 0 : index
    %c0_156 = arith.constant 0 : index
    %358 = vector.load %arg15[%c0_154, %c0_155, %c0_156] : memref<2x256x64xbf16, #tpu.memory_space<vmem>>, vector<1x256x64xbf16>
    %359 = vector.shape_cast %358 : vector<1x256x64xbf16> to vector<256x64xbf16>
    %c21 = arith.constant 21 : index
    %c0_157 = arith.constant 0 : index
    %360 = vector.load %arg2[%c21, %c0_157] : memref<40x256xf32, #tpu.memory_space<vmem>>, vector<1x64xf32>
    %c22 = arith.constant 22 : index
    %c0_158 = arith.constant 0 : index
    %361 = vector.load %arg2[%c22, %c0_158] : memref<40x256xf32, #tpu.memory_space<vmem>>, vector<1x64xf32>
    %c23 = arith.constant 23 : index
    %c0_159 = arith.constant 0 : index
    %362 = vector.load %arg2[%c23, %c0_159] : memref<40x256xf32, #tpu.memory_space<vmem>>, vector<1x192xf32>
    %c24 = arith.constant 24 : index
    %c0_160 = arith.constant 0 : index
    %363 = vector.load %arg2[%c24, %c0_160] : memref<40x256xf32, #tpu.memory_space<vmem>>, vector<1x64xf32>
    %c25 = arith.constant 25 : index
    %c0_161 = arith.constant 0 : index
    %364 = vector.load %arg2[%c25, %c0_161] : memref<40x256xf32, #tpu.memory_space<vmem>>, vector<1x64xf32>
    %c26 = arith.constant 26 : index
    %c0_162 = arith.constant 0 : index
    %365 = vector.load %arg2[%c26, %c0_162] : memref<40x256xf32, #tpu.memory_space<vmem>>, vector<1x64xf32>
    %c27 = arith.constant 27 : index
    %c0_163 = arith.constant 0 : index
    %366 = vector.load %arg2[%c27, %c0_163] : memref<40x256xf32, #tpu.memory_space<vmem>>, vector<1x256xf32>
    %c28 = arith.constant 28 : index
    %c0_164 = arith.constant 0 : index
    %367 = vector.load %arg2[%c28, %c0_164] : memref<40x256xf32, #tpu.memory_space<vmem>>, vector<1x64xf32>
    %cst_165 = arith.constant dense<0.000000e+00> : vector<4xf32>
    %368 = vector.multi_reduction <add>, %349, %cst_165 [1] : vector<4x64xf32> to vector<4xf32>
    %369 = vector.shape_cast %368 : vector<4xf32> to vector<4x1xf32>
    %cst_166 = arith.constant 6.400000e+01 : f32
    %370 = vector.broadcast %cst_166 : f32 to vector<4x1xf32>
    %371 = arith.divf %369, %370 : vector<4x1xf32>
    %372 = vector.broadcast %371 : vector<4x1xf32> to vector<4x64xf32>
    %373 = arith.subf %349, %372 : vector<4x64xf32>
    %374 = arith.mulf %373, %373 : vector<4x64xf32>
    %cst_167 = arith.constant dense<0.000000e+00> : vector<4xf32>
    %375 = vector.multi_reduction <add>, %374, %cst_167 [1] : vector<4x64xf32> to vector<4xf32>
    %376 = vector.shape_cast %375 : vector<4xf32> to vector<4x1xf32>
    %cst_168 = arith.constant 6.400000e+01 : f32
    %377 = vector.broadcast %cst_168 : f32 to vector<4x1xf32>
    %378 = arith.divf %376, %377 : vector<4x1xf32>
    %379 = vector.broadcast %371 : vector<4x1xf32> to vector<4x64xf32>
    %380 = arith.subf %349, %379 : vector<4x64xf32>
    %cst_169 = arith.constant 9.99999974E-6 : f32
    %381 = vector.broadcast %cst_169 : f32 to vector<4x1xf32>
    %382 = arith.addf %378, %381 : vector<4x1xf32>
    %383 = math.rsqrt %382 : vector<4x1xf32>
    %384 = vector.broadcast %383 : vector<4x1xf32> to vector<4x64xf32>
    %385 = arith.mulf %380, %384 : vector<4x64xf32>
    %386 = vector.broadcast %360 : vector<1x64xf32> to vector<4x64xf32>
    %387 = arith.mulf %385, %386 : vector<4x64xf32>
    %388 = vector.broadcast %361 : vector<1x64xf32> to vector<4x64xf32>
    %389 = arith.addf %387, %388 : vector<4x64xf32>
    %390 = arith.truncf %389 : vector<4x64xf32> to vector<4x64xbf16>
    %cst_170 = arith.constant dense<0.000000e+00> : vector<4x192xf32>
    %391 = tpu.matmul %390, %353, %cst_170 {dimension_numbers = #tpu.dot_dimension_numbers<[1], [0], [0], [1], [0, 0, 1, 1], [], []>} : vector<4x64xbf16>, vector<64x192xbf16>, vector<4x192xf32> -> vector<4x192xf32>
    %392 = vector.broadcast %362 : vector<1x192xf32> to vector<4x192xf32>
    %393 = arith.addf %391, %392 : vector<4x192xf32>
    %394 = vector.extract_strided_slice %393 {offsets = [0, 0], sizes = [4, 16], strides = [1, 1]} : vector<4x192xf32> to vector<4x16xf32>
    %395 = arith.truncf %394 : vector<4x16xf32> to vector<4x16xbf16>
    %396 = vector.extract_strided_slice %393 {offsets = [0, 64], sizes = [4, 16], strides = [1, 1]} : vector<4x192xf32> to vector<4x16xf32>
    %397 = arith.truncf %396 : vector<4x16xf32> to vector<4x16xbf16>
    %398 = vector.extract_strided_slice %393 {offsets = [0, 128], sizes = [4, 16], strides = [1, 1]} : vector<4x192xf32> to vector<4x16xf32>
    %399 = arith.truncf %398 : vector<4x16xf32> to vector<4x16xbf16>
    %cst_171 = arith.constant dense<0.000000e+00> : vector<4x4xf32>
    %400 = tpu.matmul %395, %397, %cst_171 {dimension_numbers = #tpu.dot_dimension_numbers<[1], [1], [0], [0], [0, 0, 1, 0], [], []>} : vector<4x16xbf16>, vector<4x16xbf16>, vector<4x4xf32> -> vector<4x4xf32>
    %cst_172 = arith.constant 2.500000e-01 : f32
    %401 = vector.broadcast %cst_172 : f32 to vector<4x4xf32>
    %402 = arith.mulf %400, %401 : vector<4x4xf32>
    %403 = vector.extract_strided_slice %351 {offsets = [0, 0, 0], sizes = [1, 4, 4], strides = [1, 1, 1]} : vector<4x4x4xbf16> to vector<1x4x4xbf16>
    %404 = vector.shape_cast %403 : vector<1x4x4xbf16> to vector<4x4xbf16>
    %405 = arith.extf %404 : vector<4x4xbf16> to vector<4x4xf32>
    %406 = arith.addf %402, %405 : vector<4x4xf32>
    %cst_173 = arith.constant dense<0xFF800000> : vector<4xf32>
    %407 = vector.multi_reduction <maximumf>, %406, %cst_173 [1] : vector<4x4xf32> to vector<4xf32>
    %408 = vector.shape_cast %407 : vector<4xf32> to vector<4x1xf32>
    %409 = vector.broadcast %408 : vector<4x1xf32> to vector<4x4xf32>
    %410 = arith.subf %406, %409 : vector<4x4xf32>
    %411 = math.exp %410 : vector<4x4xf32>
    %cst_174 = arith.constant dense<0.000000e+00> : vector<4xf32>
    %412 = vector.multi_reduction <add>, %411, %cst_174 [1] : vector<4x4xf32> to vector<4xf32>
    %413 = vector.shape_cast %412 : vector<4xf32> to vector<4x1xf32>
    %414 = tpu.reciprocal %413 {approx = true} : vector<4x1xf32> -> vector<4x1xf32>
    %415 = vector.broadcast %414 : vector<4x1xf32> to vector<4x4xf32>
    %416 = arith.mulf %411, %415 : vector<4x4xf32>
    %417 = arith.truncf %416 : vector<4x4xf32> to vector<4x4xbf16>
    %cst_175 = arith.constant dense<0.000000e+00> : vector<4x16xf32>
    %418 = tpu.matmul %417, %399, %cst_175 {dimension_numbers = #tpu.dot_dimension_numbers<[1], [0], [0], [1], [0, 0, 1, 1], [], []>} : vector<4x4xbf16>, vector<4x16xbf16>, vector<4x16xf32> -> vector<4x16xf32>
    %419 = vector.extract_strided_slice %393 {offsets = [0, 16], sizes = [4, 16], strides = [1, 1]} : vector<4x192xf32> to vector<4x16xf32>
    %420 = arith.truncf %419 : vector<4x16xf32> to vector<4x16xbf16>
    %421 = vector.extract_strided_slice %393 {offsets = [0, 80], sizes = [4, 16], strides = [1, 1]} : vector<4x192xf32> to vector<4x16xf32>
    %422 = arith.truncf %421 : vector<4x16xf32> to vector<4x16xbf16>
    %423 = vector.extract_strided_slice %393 {offsets = [0, 144], sizes = [4, 16], strides = [1, 1]} : vector<4x192xf32> to vector<4x16xf32>
    %424 = arith.truncf %423 : vector<4x16xf32> to vector<4x16xbf16>
    %cst_176 = arith.constant dense<0.000000e+00> : vector<4x4xf32>
    %425 = tpu.matmul %420, %422, %cst_176 {dimension_numbers = #tpu.dot_dimension_numbers<[1], [1], [0], [0], [0, 0, 1, 0], [], []>} : vector<4x16xbf16>, vector<4x16xbf16>, vector<4x4xf32> -> vector<4x4xf32>
    %cst_177 = arith.constant 2.500000e-01 : f32
    %426 = vector.broadcast %cst_177 : f32 to vector<4x4xf32>
    %427 = arith.mulf %425, %426 : vector<4x4xf32>
    %428 = vector.extract_strided_slice %351 {offsets = [1, 0, 0], sizes = [1, 4, 4], strides = [1, 1, 1]} : vector<4x4x4xbf16> to vector<1x4x4xbf16>
    %429 = vector.shape_cast %428 : vector<1x4x4xbf16> to vector<4x4xbf16>
    %430 = arith.extf %429 : vector<4x4xbf16> to vector<4x4xf32>
    %431 = arith.addf %427, %430 : vector<4x4xf32>
    %cst_178 = arith.constant dense<0xFF800000> : vector<4xf32>
    %432 = vector.multi_reduction <maximumf>, %431, %cst_178 [1] : vector<4x4xf32> to vector<4xf32>
    %433 = vector.shape_cast %432 : vector<4xf32> to vector<4x1xf32>
    %434 = vector.broadcast %433 : vector<4x1xf32> to vector<4x4xf32>
    %435 = arith.subf %431, %434 : vector<4x4xf32>
    %436 = math.exp %435 : vector<4x4xf32>
    %cst_179 = arith.constant dense<0.000000e+00> : vector<4xf32>
    %437 = vector.multi_reduction <add>, %436, %cst_179 [1] : vector<4x4xf32> to vector<4xf32>
    %438 = vector.shape_cast %437 : vector<4xf32> to vector<4x1xf32>
    %439 = tpu.reciprocal %438 {approx = true} : vector<4x1xf32> -> vector<4x1xf32>
    %440 = vector.broadcast %439 : vector<4x1xf32> to vector<4x4xf32>
    %441 = arith.mulf %436, %440 : vector<4x4xf32>
    %442 = arith.truncf %441 : vector<4x4xf32> to vector<4x4xbf16>
    %cst_180 = arith.constant dense<0.000000e+00> : vector<4x16xf32>
    %443 = tpu.matmul %442, %424, %cst_180 {dimension_numbers = #tpu.dot_dimension_numbers<[1], [0], [0], [1], [0, 0, 1, 1], [], []>} : vector<4x4xbf16>, vector<4x16xbf16>, vector<4x16xf32> -> vector<4x16xf32>
    %444 = vector.extract_strided_slice %393 {offsets = [0, 32], sizes = [4, 16], strides = [1, 1]} : vector<4x192xf32> to vector<4x16xf32>
    %445 = arith.truncf %444 : vector<4x16xf32> to vector<4x16xbf16>
    %446 = vector.extract_strided_slice %393 {offsets = [0, 96], sizes = [4, 16], strides = [1, 1]} : vector<4x192xf32> to vector<4x16xf32>
    %447 = arith.truncf %446 : vector<4x16xf32> to vector<4x16xbf16>
    %448 = vector.extract_strided_slice %393 {offsets = [0, 160], sizes = [4, 16], strides = [1, 1]} : vector<4x192xf32> to vector<4x16xf32>
    %449 = arith.truncf %448 : vector<4x16xf32> to vector<4x16xbf16>
    %cst_181 = arith.constant dense<0.000000e+00> : vector<4x4xf32>
    %450 = tpu.matmul %445, %447, %cst_181 {dimension_numbers = #tpu.dot_dimension_numbers<[1], [1], [0], [0], [0, 0, 1, 0], [], []>} : vector<4x16xbf16>, vector<4x16xbf16>, vector<4x4xf32> -> vector<4x4xf32>
    %cst_182 = arith.constant 2.500000e-01 : f32
    %451 = vector.broadcast %cst_182 : f32 to vector<4x4xf32>
    %452 = arith.mulf %450, %451 : vector<4x4xf32>
    %453 = vector.extract_strided_slice %351 {offsets = [2, 0, 0], sizes = [1, 4, 4], strides = [1, 1, 1]} : vector<4x4x4xbf16> to vector<1x4x4xbf16>
    %454 = vector.shape_cast %453 : vector<1x4x4xbf16> to vector<4x4xbf16>
    %455 = arith.extf %454 : vector<4x4xbf16> to vector<4x4xf32>
    %456 = arith.addf %452, %455 : vector<4x4xf32>
    %cst_183 = arith.constant dense<0xFF800000> : vector<4xf32>
    %457 = vector.multi_reduction <maximumf>, %456, %cst_183 [1] : vector<4x4xf32> to vector<4xf32>
    %458 = vector.shape_cast %457 : vector<4xf32> to vector<4x1xf32>
    %459 = vector.broadcast %458 : vector<4x1xf32> to vector<4x4xf32>
    %460 = arith.subf %456, %459 : vector<4x4xf32>
    %461 = math.exp %460 : vector<4x4xf32>
    %cst_184 = arith.constant dense<0.000000e+00> : vector<4xf32>
    %462 = vector.multi_reduction <add>, %461, %cst_184 [1] : vector<4x4xf32> to vector<4xf32>
    %463 = vector.shape_cast %462 : vector<4xf32> to vector<4x1xf32>
    %464 = tpu.reciprocal %463 {approx = true} : vector<4x1xf32> -> vector<4x1xf32>
    %465 = vector.broadcast %464 : vector<4x1xf32> to vector<4x4xf32>
    %466 = arith.mulf %461, %465 : vector<4x4xf32>
    %467 = arith.truncf %466 : vector<4x4xf32> to vector<4x4xbf16>
    %cst_185 = arith.constant dense<0.000000e+00> : vector<4x16xf32>
    %468 = tpu.matmul %467, %449, %cst_185 {dimension_numbers = #tpu.dot_dimension_numbers<[1], [0], [0], [1], [0, 0, 1, 1], [], []>} : vector<4x4xbf16>, vector<4x16xbf16>, vector<4x16xf32> -> vector<4x16xf32>
    %469 = vector.extract_strided_slice %393 {offsets = [0, 48], sizes = [4, 16], strides = [1, 1]} : vector<4x192xf32> to vector<4x16xf32>
    %470 = arith.truncf %469 : vector<4x16xf32> to vector<4x16xbf16>
    %471 = vector.extract_strided_slice %393 {offsets = [0, 112], sizes = [4, 16], strides = [1, 1]} : vector<4x192xf32> to vector<4x16xf32>
    %472 = arith.truncf %471 : vector<4x16xf32> to vector<4x16xbf16>
    %473 = vector.extract_strided_slice %393 {offsets = [0, 176], sizes = [4, 16], strides = [1, 1]} : vector<4x192xf32> to vector<4x16xf32>
    %474 = arith.truncf %473 : vector<4x16xf32> to vector<4x16xbf16>
    %cst_186 = arith.constant dense<0.000000e+00> : vector<4x4xf32>
    %475 = tpu.matmul %470, %472, %cst_186 {dimension_numbers = #tpu.dot_dimension_numbers<[1], [1], [0], [0], [0, 0, 1, 0], [], []>} : vector<4x16xbf16>, vector<4x16xbf16>, vector<4x4xf32> -> vector<4x4xf32>
    %cst_187 = arith.constant 2.500000e-01 : f32
    %476 = vector.broadcast %cst_187 : f32 to vector<4x4xf32>
    %477 = arith.mulf %475, %476 : vector<4x4xf32>
    %478 = vector.extract_strided_slice %351 {offsets = [3, 0, 0], sizes = [1, 4, 4], strides = [1, 1, 1]} : vector<4x4x4xbf16> to vector<1x4x4xbf16>
    %479 = vector.shape_cast %478 : vector<1x4x4xbf16> to vector<4x4xbf16>
    %480 = arith.extf %479 : vector<4x4xbf16> to vector<4x4xf32>
    %481 = arith.addf %477, %480 : vector<4x4xf32>
    %cst_188 = arith.constant dense<0xFF800000> : vector<4xf32>
    %482 = vector.multi_reduction <maximumf>, %481, %cst_188 [1] : vector<4x4xf32> to vector<4xf32>
    %483 = vector.shape_cast %482 : vector<4xf32> to vector<4x1xf32>
    %484 = vector.broadcast %483 : vector<4x1xf32> to vector<4x4xf32>
    %485 = arith.subf %481, %484 : vector<4x4xf32>
    %486 = math.exp %485 : vector<4x4xf32>
    %cst_189 = arith.constant dense<0.000000e+00> : vector<4xf32>
    %487 = vector.multi_reduction <add>, %486, %cst_189 [1] : vector<4x4xf32> to vector<4xf32>
    %488 = vector.shape_cast %487 : vector<4xf32> to vector<4x1xf32>
    %489 = tpu.reciprocal %488 {approx = true} : vector<4x1xf32> -> vector<4x1xf32>
    %490 = vector.broadcast %489 : vector<4x1xf32> to vector<4x4xf32>
    %491 = arith.mulf %486, %490 : vector<4x4xf32>
    %492 = arith.truncf %491 : vector<4x4xf32> to vector<4x4xbf16>
    %cst_190 = arith.constant dense<0.000000e+00> : vector<4x16xf32>
    %493 = tpu.matmul %492, %474, %cst_190 {dimension_numbers = #tpu.dot_dimension_numbers<[1], [0], [0], [1], [0, 0, 1, 1], [], []>} : vector<4x4xbf16>, vector<4x16xbf16>, vector<4x16xf32> -> vector<4x16xf32>
    %494 = tpu.concatenate %418, %443, %468, %493 in 1 : vector<4x16xf32>, vector<4x16xf32>, vector<4x16xf32>, vector<4x16xf32> -> vector<4x64xf32>
    %495 = arith.truncf %494 : vector<4x64xf32> to vector<4x64xbf16>
    %cst_191 = arith.constant dense<0.000000e+00> : vector<4x64xf32>
    %496 = tpu.matmul %495, %355, %cst_191 {dimension_numbers = #tpu.dot_dimension_numbers<[1], [0], [0], [1], [0, 0, 1, 1], [], []>} : vector<4x64xbf16>, vector<64x64xbf16>, vector<4x64xf32> -> vector<4x64xf32>
    %497 = arith.addf %349, %496 : vector<4x64xf32>
    %498 = vector.broadcast %363 : vector<1x64xf32> to vector<4x64xf32>
    %499 = arith.addf %497, %498 : vector<4x64xf32>
    %cst_192 = arith.constant dense<0.000000e+00> : vector<4xf32>
    %500 = vector.multi_reduction <add>, %499, %cst_192 [1] : vector<4x64xf32> to vector<4xf32>
    %501 = vector.shape_cast %500 : vector<4xf32> to vector<4x1xf32>
    %cst_193 = arith.constant 6.400000e+01 : f32
    %502 = vector.broadcast %cst_193 : f32 to vector<4x1xf32>
    %503 = arith.divf %501, %502 : vector<4x1xf32>
    %504 = vector.broadcast %503 : vector<4x1xf32> to vector<4x64xf32>
    %505 = arith.subf %499, %504 : vector<4x64xf32>
    %506 = arith.mulf %505, %505 : vector<4x64xf32>
    %cst_194 = arith.constant dense<0.000000e+00> : vector<4xf32>
    %507 = vector.multi_reduction <add>, %506, %cst_194 [1] : vector<4x64xf32> to vector<4xf32>
    %508 = vector.shape_cast %507 : vector<4xf32> to vector<4x1xf32>
    %cst_195 = arith.constant 6.400000e+01 : f32
    %509 = vector.broadcast %cst_195 : f32 to vector<4x1xf32>
    %510 = arith.divf %508, %509 : vector<4x1xf32>
    %511 = vector.broadcast %503 : vector<4x1xf32> to vector<4x64xf32>
    %512 = arith.subf %499, %511 : vector<4x64xf32>
    %cst_196 = arith.constant 9.99999974E-6 : f32
    %513 = vector.broadcast %cst_196 : f32 to vector<4x1xf32>
    %514 = arith.addf %510, %513 : vector<4x1xf32>
    %515 = math.rsqrt %514 : vector<4x1xf32>
    %516 = vector.broadcast %515 : vector<4x1xf32> to vector<4x64xf32>
    %517 = arith.mulf %512, %516 : vector<4x64xf32>
    %518 = vector.broadcast %364 : vector<1x64xf32> to vector<4x64xf32>
    %519 = arith.mulf %517, %518 : vector<4x64xf32>
    %520 = vector.broadcast %365 : vector<1x64xf32> to vector<4x64xf32>
    %521 = arith.addf %519, %520 : vector<4x64xf32>
    %522 = arith.truncf %521 : vector<4x64xf32> to vector<4x64xbf16>
    %cst_197 = arith.constant dense<0.000000e+00> : vector<4x256xf32>
    %523 = tpu.matmul %522, %357, %cst_197 {dimension_numbers = #tpu.dot_dimension_numbers<[1], [0], [0], [1], [0, 0, 1, 1], [], []>} : vector<4x64xbf16>, vector<64x256xbf16>, vector<4x256xf32> -> vector<4x256xf32>
    %524 = vector.broadcast %366 : vector<1x256xf32> to vector<4x256xf32>
    %525 = arith.addf %523, %524 : vector<4x256xf32>
    %cst_198 = arith.constant 5.000000e-01 : f32
    %526 = vector.broadcast %cst_198 : f32 to vector<4x256xf32>
    %527 = arith.mulf %526, %525 : vector<4x256xf32>
    %cst_199 = arith.constant 0.707106769 : f32
    %528 = vector.broadcast %cst_199 : f32 to vector<4x256xf32>
    %529 = arith.mulf %525, %528 : vector<4x256xf32>
    %530 = math.erf %529 : vector<4x256xf32>
    %cst_200 = arith.constant 1.000000e+00 : f32
    %531 = vector.broadcast %cst_200 : f32 to vector<4x256xf32>
    %532 = arith.addf %531, %530 : vector<4x256xf32>
    %533 = arith.mulf %527, %532 : vector<4x256xf32>
    %534 = arith.truncf %533 : vector<4x256xf32> to vector<4x256xbf16>
    %cst_201 = arith.constant dense<0.000000e+00> : vector<4x64xf32>
    %535 = tpu.matmul %534, %359, %cst_201 {dimension_numbers = #tpu.dot_dimension_numbers<[1], [0], [0], [1], [0, 0, 1, 1], [], []>} : vector<4x256xbf16>, vector<256x64xbf16>, vector<4x64xf32> -> vector<4x64xf32>
    %536 = vector.broadcast %367 : vector<1x64xf32> to vector<4x64xf32>
    %537 = arith.addf %535, %536 : vector<4x64xf32>
    %538 = arith.addf %499, %537 : vector<4x64xf32>
    %c1_202 = arith.constant 1 : index
    %c0_203 = arith.constant 0 : index
    %c0_204 = arith.constant 0 : index
    %c0_205 = arith.constant 0 : index
    %539 = vector.load %arg4[%c1_202, %c0_203, %c0_204, %c0_205] : memref<2x4x4x4xbf16, #tpu.memory_space<vmem>>, vector<1x4x4x4xbf16>
    %540 = vector.shape_cast %539 : vector<1x4x4x4xbf16> to vector<4x4x4xbf16>
    %c1_206 = arith.constant 1 : index
    %c0_207 = arith.constant 0 : index
    %c0_208 = arith.constant 0 : index
    %541 = vector.load %arg12[%c1_206, %c0_207, %c0_208] : memref<2x64x192xbf16, #tpu.memory_space<vmem>>, vector<1x64x192xbf16>
    %542 = vector.shape_cast %541 : vector<1x64x192xbf16> to vector<64x192xbf16>
    %c1_209 = arith.constant 1 : index
    %c0_210 = arith.constant 0 : index
    %c0_211 = arith.constant 0 : index
    %543 = vector.load %arg13[%c1_209, %c0_210, %c0_211] : memref<2x64x64xbf16, #tpu.memory_space<vmem>>, vector<1x64x64xbf16>
    %544 = vector.shape_cast %543 : vector<1x64x64xbf16> to vector<64x64xbf16>
    %c1_212 = arith.constant 1 : index
    %c0_213 = arith.constant 0 : index
    %c0_214 = arith.constant 0 : index
    %545 = vector.load %arg14[%c1_212, %c0_213, %c0_214] : memref<2x64x256xbf16, #tpu.memory_space<vmem>>, vector<1x64x256xbf16>
    %546 = vector.shape_cast %545 : vector<1x64x256xbf16> to vector<64x256xbf16>
    %c1_215 = arith.constant 1 : index
    %c0_216 = arith.constant 0 : index
    %c0_217 = arith.constant 0 : index
    %547 = vector.load %arg15[%c1_215, %c0_216, %c0_217] : memref<2x256x64xbf16, #tpu.memory_space<vmem>>, vector<1x256x64xbf16>
    %548 = vector.shape_cast %547 : vector<1x256x64xbf16> to vector<256x64xbf16>
    %c29 = arith.constant 29 : index
    %c0_218 = arith.constant 0 : index
    %549 = vector.load %arg2[%c29, %c0_218] : memref<40x256xf32, #tpu.memory_space<vmem>>, vector<1x64xf32>
    %c30 = arith.constant 30 : index
    %c0_219 = arith.constant 0 : index
    %550 = vector.load %arg2[%c30, %c0_219] : memref<40x256xf32, #tpu.memory_space<vmem>>, vector<1x64xf32>
    %c31 = arith.constant 31 : index
    %c0_220 = arith.constant 0 : index
    %551 = vector.load %arg2[%c31, %c0_220] : memref<40x256xf32, #tpu.memory_space<vmem>>, vector<1x192xf32>
    %c32 = arith.constant 32 : index
    %c0_221 = arith.constant 0 : index
    %552 = vector.load %arg2[%c32, %c0_221] : memref<40x256xf32, #tpu.memory_space<vmem>>, vector<1x64xf32>
    %c33 = arith.constant 33 : index
    %c0_222 = arith.constant 0 : index
    %553 = vector.load %arg2[%c33, %c0_222] : memref<40x256xf32, #tpu.memory_space<vmem>>, vector<1x64xf32>
    %c34 = arith.constant 34 : index
    %c0_223 = arith.constant 0 : index
    %554 = vector.load %arg2[%c34, %c0_223] : memref<40x256xf32, #tpu.memory_space<vmem>>, vector<1x64xf32>
    %c35 = arith.constant 35 : index
    %c0_224 = arith.constant 0 : index
    %555 = vector.load %arg2[%c35, %c0_224] : memref<40x256xf32, #tpu.memory_space<vmem>>, vector<1x256xf32>
    %c36 = arith.constant 36 : index
    %c0_225 = arith.constant 0 : index
    %556 = vector.load %arg2[%c36, %c0_225] : memref<40x256xf32, #tpu.memory_space<vmem>>, vector<1x64xf32>
    %cst_226 = arith.constant dense<0.000000e+00> : vector<4xf32>
    %557 = vector.multi_reduction <add>, %538, %cst_226 [1] : vector<4x64xf32> to vector<4xf32>
    %558 = vector.shape_cast %557 : vector<4xf32> to vector<4x1xf32>
    %cst_227 = arith.constant 6.400000e+01 : f32
    %559 = vector.broadcast %cst_227 : f32 to vector<4x1xf32>
    %560 = arith.divf %558, %559 : vector<4x1xf32>
    %561 = vector.broadcast %560 : vector<4x1xf32> to vector<4x64xf32>
    %562 = arith.subf %538, %561 : vector<4x64xf32>
    %563 = arith.mulf %562, %562 : vector<4x64xf32>
    %cst_228 = arith.constant dense<0.000000e+00> : vector<4xf32>
    %564 = vector.multi_reduction <add>, %563, %cst_228 [1] : vector<4x64xf32> to vector<4xf32>
    %565 = vector.shape_cast %564 : vector<4xf32> to vector<4x1xf32>
    %cst_229 = arith.constant 6.400000e+01 : f32
    %566 = vector.broadcast %cst_229 : f32 to vector<4x1xf32>
    %567 = arith.divf %565, %566 : vector<4x1xf32>
    %568 = vector.broadcast %560 : vector<4x1xf32> to vector<4x64xf32>
    %569 = arith.subf %538, %568 : vector<4x64xf32>
    %cst_230 = arith.constant 9.99999974E-6 : f32
    %570 = vector.broadcast %cst_230 : f32 to vector<4x1xf32>
    %571 = arith.addf %567, %570 : vector<4x1xf32>
    %572 = math.rsqrt %571 : vector<4x1xf32>
    %573 = vector.broadcast %572 : vector<4x1xf32> to vector<4x64xf32>
    %574 = arith.mulf %569, %573 : vector<4x64xf32>
    %575 = vector.broadcast %549 : vector<1x64xf32> to vector<4x64xf32>
    %576 = arith.mulf %574, %575 : vector<4x64xf32>
    %577 = vector.broadcast %550 : vector<1x64xf32> to vector<4x64xf32>
    %578 = arith.addf %576, %577 : vector<4x64xf32>
    %579 = arith.truncf %578 : vector<4x64xf32> to vector<4x64xbf16>
    %cst_231 = arith.constant dense<0.000000e+00> : vector<4x192xf32>
    %580 = tpu.matmul %579, %542, %cst_231 {dimension_numbers = #tpu.dot_dimension_numbers<[1], [0], [0], [1], [0, 0, 1, 1], [], []>} : vector<4x64xbf16>, vector<64x192xbf16>, vector<4x192xf32> -> vector<4x192xf32>
    %581 = vector.broadcast %551 : vector<1x192xf32> to vector<4x192xf32>
    %582 = arith.addf %580, %581 : vector<4x192xf32>
    %583 = vector.extract_strided_slice %582 {offsets = [0, 0], sizes = [4, 16], strides = [1, 1]} : vector<4x192xf32> to vector<4x16xf32>
    %584 = arith.truncf %583 : vector<4x16xf32> to vector<4x16xbf16>
    %585 = vector.extract_strided_slice %582 {offsets = [0, 64], sizes = [4, 16], strides = [1, 1]} : vector<4x192xf32> to vector<4x16xf32>
    %586 = arith.truncf %585 : vector<4x16xf32> to vector<4x16xbf16>
    %587 = vector.extract_strided_slice %582 {offsets = [0, 128], sizes = [4, 16], strides = [1, 1]} : vector<4x192xf32> to vector<4x16xf32>
    %588 = arith.truncf %587 : vector<4x16xf32> to vector<4x16xbf16>
    %cst_232 = arith.constant dense<0.000000e+00> : vector<4x4xf32>
    %589 = tpu.matmul %584, %586, %cst_232 {dimension_numbers = #tpu.dot_dimension_numbers<[1], [1], [0], [0], [0, 0, 1, 0], [], []>} : vector<4x16xbf16>, vector<4x16xbf16>, vector<4x4xf32> -> vector<4x4xf32>
    %cst_233 = arith.constant 2.500000e-01 : f32
    %590 = vector.broadcast %cst_233 : f32 to vector<4x4xf32>
    %591 = arith.mulf %589, %590 : vector<4x4xf32>
    %592 = vector.extract_strided_slice %540 {offsets = [0, 0, 0], sizes = [1, 4, 4], strides = [1, 1, 1]} : vector<4x4x4xbf16> to vector<1x4x4xbf16>
    %593 = vector.shape_cast %592 : vector<1x4x4xbf16> to vector<4x4xbf16>
    %594 = arith.extf %593 : vector<4x4xbf16> to vector<4x4xf32>
    %595 = arith.addf %591, %594 : vector<4x4xf32>
    %cst_234 = arith.constant dense<0xFF800000> : vector<4xf32>
    %596 = vector.multi_reduction <maximumf>, %595, %cst_234 [1] : vector<4x4xf32> to vector<4xf32>
    %597 = vector.shape_cast %596 : vector<4xf32> to vector<4x1xf32>
    %598 = vector.broadcast %597 : vector<4x1xf32> to vector<4x4xf32>
    %599 = arith.subf %595, %598 : vector<4x4xf32>
    %600 = math.exp %599 : vector<4x4xf32>
    %cst_235 = arith.constant dense<0.000000e+00> : vector<4xf32>
    %601 = vector.multi_reduction <add>, %600, %cst_235 [1] : vector<4x4xf32> to vector<4xf32>
    %602 = vector.shape_cast %601 : vector<4xf32> to vector<4x1xf32>
    %603 = tpu.reciprocal %602 {approx = true} : vector<4x1xf32> -> vector<4x1xf32>
    %604 = vector.broadcast %603 : vector<4x1xf32> to vector<4x4xf32>
    %605 = arith.mulf %600, %604 : vector<4x4xf32>
    %606 = arith.truncf %605 : vector<4x4xf32> to vector<4x4xbf16>
    %cst_236 = arith.constant dense<0.000000e+00> : vector<4x16xf32>
    %607 = tpu.matmul %606, %588, %cst_236 {dimension_numbers = #tpu.dot_dimension_numbers<[1], [0], [0], [1], [0, 0, 1, 1], [], []>} : vector<4x4xbf16>, vector<4x16xbf16>, vector<4x16xf32> -> vector<4x16xf32>
    %608 = vector.extract_strided_slice %582 {offsets = [0, 16], sizes = [4, 16], strides = [1, 1]} : vector<4x192xf32> to vector<4x16xf32>
    %609 = arith.truncf %608 : vector<4x16xf32> to vector<4x16xbf16>
    %610 = vector.extract_strided_slice %582 {offsets = [0, 80], sizes = [4, 16], strides = [1, 1]} : vector<4x192xf32> to vector<4x16xf32>
    %611 = arith.truncf %610 : vector<4x16xf32> to vector<4x16xbf16>
    %612 = vector.extract_strided_slice %582 {offsets = [0, 144], sizes = [4, 16], strides = [1, 1]} : vector<4x192xf32> to vector<4x16xf32>
    %613 = arith.truncf %612 : vector<4x16xf32> to vector<4x16xbf16>
    %cst_237 = arith.constant dense<0.000000e+00> : vector<4x4xf32>
    %614 = tpu.matmul %609, %611, %cst_237 {dimension_numbers = #tpu.dot_dimension_numbers<[1], [1], [0], [0], [0, 0, 1, 0], [], []>} : vector<4x16xbf16>, vector<4x16xbf16>, vector<4x4xf32> -> vector<4x4xf32>
    %cst_238 = arith.constant 2.500000e-01 : f32
    %615 = vector.broadcast %cst_238 : f32 to vector<4x4xf32>
    %616 = arith.mulf %614, %615 : vector<4x4xf32>
    %617 = vector.extract_strided_slice %540 {offsets = [1, 0, 0], sizes = [1, 4, 4], strides = [1, 1, 1]} : vector<4x4x4xbf16> to vector<1x4x4xbf16>
    %618 = vector.shape_cast %617 : vector<1x4x4xbf16> to vector<4x4xbf16>
    %619 = arith.extf %618 : vector<4x4xbf16> to vector<4x4xf32>
    %620 = arith.addf %616, %619 : vector<4x4xf32>
    %cst_239 = arith.constant dense<0xFF800000> : vector<4xf32>
    %621 = vector.multi_reduction <maximumf>, %620, %cst_239 [1] : vector<4x4xf32> to vector<4xf32>
    %622 = vector.shape_cast %621 : vector<4xf32> to vector<4x1xf32>
    %623 = vector.broadcast %622 : vector<4x1xf32> to vector<4x4xf32>
    %624 = arith.subf %620, %623 : vector<4x4xf32>
    %625 = math.exp %624 : vector<4x4xf32>
    %cst_240 = arith.constant dense<0.000000e+00> : vector<4xf32>
    %626 = vector.multi_reduction <add>, %625, %cst_240 [1] : vector<4x4xf32> to vector<4xf32>
    %627 = vector.shape_cast %626 : vector<4xf32> to vector<4x1xf32>
    %628 = tpu.reciprocal %627 {approx = true} : vector<4x1xf32> -> vector<4x1xf32>
    %629 = vector.broadcast %628 : vector<4x1xf32> to vector<4x4xf32>
    %630 = arith.mulf %625, %629 : vector<4x4xf32>
    %631 = arith.truncf %630 : vector<4x4xf32> to vector<4x4xbf16>
    %cst_241 = arith.constant dense<0.000000e+00> : vector<4x16xf32>
    %632 = tpu.matmul %631, %613, %cst_241 {dimension_numbers = #tpu.dot_dimension_numbers<[1], [0], [0], [1], [0, 0, 1, 1], [], []>} : vector<4x4xbf16>, vector<4x16xbf16>, vector<4x16xf32> -> vector<4x16xf32>
    %633 = vector.extract_strided_slice %582 {offsets = [0, 32], sizes = [4, 16], strides = [1, 1]} : vector<4x192xf32> to vector<4x16xf32>
    %634 = arith.truncf %633 : vector<4x16xf32> to vector<4x16xbf16>
    %635 = vector.extract_strided_slice %582 {offsets = [0, 96], sizes = [4, 16], strides = [1, 1]} : vector<4x192xf32> to vector<4x16xf32>
    %636 = arith.truncf %635 : vector<4x16xf32> to vector<4x16xbf16>
    %637 = vector.extract_strided_slice %582 {offsets = [0, 160], sizes = [4, 16], strides = [1, 1]} : vector<4x192xf32> to vector<4x16xf32>
    %638 = arith.truncf %637 : vector<4x16xf32> to vector<4x16xbf16>
    %cst_242 = arith.constant dense<0.000000e+00> : vector<4x4xf32>
    %639 = tpu.matmul %634, %636, %cst_242 {dimension_numbers = #tpu.dot_dimension_numbers<[1], [1], [0], [0], [0, 0, 1, 0], [], []>} : vector<4x16xbf16>, vector<4x16xbf16>, vector<4x4xf32> -> vector<4x4xf32>
    %cst_243 = arith.constant 2.500000e-01 : f32
    %640 = vector.broadcast %cst_243 : f32 to vector<4x4xf32>
    %641 = arith.mulf %639, %640 : vector<4x4xf32>
    %642 = vector.extract_strided_slice %540 {offsets = [2, 0, 0], sizes = [1, 4, 4], strides = [1, 1, 1]} : vector<4x4x4xbf16> to vector<1x4x4xbf16>
    %643 = vector.shape_cast %642 : vector<1x4x4xbf16> to vector<4x4xbf16>
    %644 = arith.extf %643 : vector<4x4xbf16> to vector<4x4xf32>
    %645 = arith.addf %641, %644 : vector<4x4xf32>
    %cst_244 = arith.constant dense<0xFF800000> : vector<4xf32>
    %646 = vector.multi_reduction <maximumf>, %645, %cst_244 [1] : vector<4x4xf32> to vector<4xf32>
    %647 = vector.shape_cast %646 : vector<4xf32> to vector<4x1xf32>
    %648 = vector.broadcast %647 : vector<4x1xf32> to vector<4x4xf32>
    %649 = arith.subf %645, %648 : vector<4x4xf32>
    %650 = math.exp %649 : vector<4x4xf32>
    %cst_245 = arith.constant dense<0.000000e+00> : vector<4xf32>
    %651 = vector.multi_reduction <add>, %650, %cst_245 [1] : vector<4x4xf32> to vector<4xf32>
    %652 = vector.shape_cast %651 : vector<4xf32> to vector<4x1xf32>
    %653 = tpu.reciprocal %652 {approx = true} : vector<4x1xf32> -> vector<4x1xf32>
    %654 = vector.broadcast %653 : vector<4x1xf32> to vector<4x4xf32>
    %655 = arith.mulf %650, %654 : vector<4x4xf32>
    %656 = arith.truncf %655 : vector<4x4xf32> to vector<4x4xbf16>
    %cst_246 = arith.constant dense<0.000000e+00> : vector<4x16xf32>
    %657 = tpu.matmul %656, %638, %cst_246 {dimension_numbers = #tpu.dot_dimension_numbers<[1], [0], [0], [1], [0, 0, 1, 1], [], []>} : vector<4x4xbf16>, vector<4x16xbf16>, vector<4x16xf32> -> vector<4x16xf32>
    %658 = vector.extract_strided_slice %582 {offsets = [0, 48], sizes = [4, 16], strides = [1, 1]} : vector<4x192xf32> to vector<4x16xf32>
    %659 = arith.truncf %658 : vector<4x16xf32> to vector<4x16xbf16>
    %660 = vector.extract_strided_slice %582 {offsets = [0, 112], sizes = [4, 16], strides = [1, 1]} : vector<4x192xf32> to vector<4x16xf32>
    %661 = arith.truncf %660 : vector<4x16xf32> to vector<4x16xbf16>
    %662 = vector.extract_strided_slice %582 {offsets = [0, 176], sizes = [4, 16], strides = [1, 1]} : vector<4x192xf32> to vector<4x16xf32>
    %663 = arith.truncf %662 : vector<4x16xf32> to vector<4x16xbf16>
    %cst_247 = arith.constant dense<0.000000e+00> : vector<4x4xf32>
    %664 = tpu.matmul %659, %661, %cst_247 {dimension_numbers = #tpu.dot_dimension_numbers<[1], [1], [0], [0], [0, 0, 1, 0], [], []>} : vector<4x16xbf16>, vector<4x16xbf16>, vector<4x4xf32> -> vector<4x4xf32>
    %cst_248 = arith.constant 2.500000e-01 : f32
    %665 = vector.broadcast %cst_248 : f32 to vector<4x4xf32>
    %666 = arith.mulf %664, %665 : vector<4x4xf32>
    %667 = vector.extract_strided_slice %540 {offsets = [3, 0, 0], sizes = [1, 4, 4], strides = [1, 1, 1]} : vector<4x4x4xbf16> to vector<1x4x4xbf16>
    %668 = vector.shape_cast %667 : vector<1x4x4xbf16> to vector<4x4xbf16>
    %669 = arith.extf %668 : vector<4x4xbf16> to vector<4x4xf32>
    %670 = arith.addf %666, %669 : vector<4x4xf32>
    %cst_249 = arith.constant dense<0xFF800000> : vector<4xf32>
    %671 = vector.multi_reduction <maximumf>, %670, %cst_249 [1] : vector<4x4xf32> to vector<4xf32>
    %672 = vector.shape_cast %671 : vector<4xf32> to vector<4x1xf32>
    %673 = vector.broadcast %672 : vector<4x1xf32> to vector<4x4xf32>
    %674 = arith.subf %670, %673 : vector<4x4xf32>
    %675 = math.exp %674 : vector<4x4xf32>
    %cst_250 = arith.constant dense<0.000000e+00> : vector<4xf32>
    %676 = vector.multi_reduction <add>, %675, %cst_250 [1] : vector<4x4xf32> to vector<4xf32>
    %677 = vector.shape_cast %676 : vector<4xf32> to vector<4x1xf32>
    %678 = tpu.reciprocal %677 {approx = true} : vector<4x1xf32> -> vector<4x1xf32>
    %679 = vector.broadcast %678 : vector<4x1xf32> to vector<4x4xf32>
    %680 = arith.mulf %675, %679 : vector<4x4xf32>
    %681 = arith.truncf %680 : vector<4x4xf32> to vector<4x4xbf16>
    %cst_251 = arith.constant dense<0.000000e+00> : vector<4x16xf32>
    %682 = tpu.matmul %681, %663, %cst_251 {dimension_numbers = #tpu.dot_dimension_numbers<[1], [0], [0], [1], [0, 0, 1, 1], [], []>} : vector<4x4xbf16>, vector<4x16xbf16>, vector<4x16xf32> -> vector<4x16xf32>
    %683 = tpu.concatenate %607, %632, %657, %682 in 1 : vector<4x16xf32>, vector<4x16xf32>, vector<4x16xf32>, vector<4x16xf32> -> vector<4x64xf32>
    %684 = arith.truncf %683 : vector<4x64xf32> to vector<4x64xbf16>
    %cst_252 = arith.constant dense<0.000000e+00> : vector<4x64xf32>
    %685 = tpu.matmul %684, %544, %cst_252 {dimension_numbers = #tpu.dot_dimension_numbers<[1], [0], [0], [1], [0, 0, 1, 1], [], []>} : vector<4x64xbf16>, vector<64x64xbf16>, vector<4x64xf32> -> vector<4x64xf32>
    %686 = arith.addf %538, %685 : vector<4x64xf32>
    %687 = vector.broadcast %552 : vector<1x64xf32> to vector<4x64xf32>
    %688 = arith.addf %686, %687 : vector<4x64xf32>
    %cst_253 = arith.constant dense<0.000000e+00> : vector<4xf32>
    %689 = vector.multi_reduction <add>, %688, %cst_253 [1] : vector<4x64xf32> to vector<4xf32>
    %690 = vector.shape_cast %689 : vector<4xf32> to vector<4x1xf32>
    %cst_254 = arith.constant 6.400000e+01 : f32
    %691 = vector.broadcast %cst_254 : f32 to vector<4x1xf32>
    %692 = arith.divf %690, %691 : vector<4x1xf32>
    %693 = vector.broadcast %692 : vector<4x1xf32> to vector<4x64xf32>
    %694 = arith.subf %688, %693 : vector<4x64xf32>
    %695 = arith.mulf %694, %694 : vector<4x64xf32>
    %cst_255 = arith.constant dense<0.000000e+00> : vector<4xf32>
    %696 = vector.multi_reduction <add>, %695, %cst_255 [1] : vector<4x64xf32> to vector<4xf32>
    %697 = vector.shape_cast %696 : vector<4xf32> to vector<4x1xf32>
    %cst_256 = arith.constant 6.400000e+01 : f32
    %698 = vector.broadcast %cst_256 : f32 to vector<4x1xf32>
    %699 = arith.divf %697, %698 : vector<4x1xf32>
    %700 = vector.broadcast %692 : vector<4x1xf32> to vector<4x64xf32>
    %701 = arith.subf %688, %700 : vector<4x64xf32>
    %cst_257 = arith.constant 9.99999974E-6 : f32
    %702 = vector.broadcast %cst_257 : f32 to vector<4x1xf32>
    %703 = arith.addf %699, %702 : vector<4x1xf32>
    %704 = math.rsqrt %703 : vector<4x1xf32>
    %705 = vector.broadcast %704 : vector<4x1xf32> to vector<4x64xf32>
    %706 = arith.mulf %701, %705 : vector<4x64xf32>
    %707 = vector.broadcast %553 : vector<1x64xf32> to vector<4x64xf32>
    %708 = arith.mulf %706, %707 : vector<4x64xf32>
    %709 = vector.broadcast %554 : vector<1x64xf32> to vector<4x64xf32>
    %710 = arith.addf %708, %709 : vector<4x64xf32>
    %711 = arith.truncf %710 : vector<4x64xf32> to vector<4x64xbf16>
    %cst_258 = arith.constant dense<0.000000e+00> : vector<4x256xf32>
    %712 = tpu.matmul %711, %546, %cst_258 {dimension_numbers = #tpu.dot_dimension_numbers<[1], [0], [0], [1], [0, 0, 1, 1], [], []>} : vector<4x64xbf16>, vector<64x256xbf16>, vector<4x256xf32> -> vector<4x256xf32>
    %713 = vector.broadcast %555 : vector<1x256xf32> to vector<4x256xf32>
    %714 = arith.addf %712, %713 : vector<4x256xf32>
    %cst_259 = arith.constant 5.000000e-01 : f32
    %715 = vector.broadcast %cst_259 : f32 to vector<4x256xf32>
    %716 = arith.mulf %715, %714 : vector<4x256xf32>
    %cst_260 = arith.constant 0.707106769 : f32
    %717 = vector.broadcast %cst_260 : f32 to vector<4x256xf32>
    %718 = arith.mulf %714, %717 : vector<4x256xf32>
    %719 = math.erf %718 : vector<4x256xf32>
    %cst_261 = arith.constant 1.000000e+00 : f32
    %720 = vector.broadcast %cst_261 : f32 to vector<4x256xf32>
    %721 = arith.addf %720, %719 : vector<4x256xf32>
    %722 = arith.mulf %716, %721 : vector<4x256xf32>
    %723 = arith.truncf %722 : vector<4x256xf32> to vector<4x256xbf16>
    %cst_262 = arith.constant dense<0.000000e+00> : vector<4x64xf32>
    %724 = tpu.matmul %723, %548, %cst_262 {dimension_numbers = #tpu.dot_dimension_numbers<[1], [0], [0], [1], [0, 0, 1, 1], [], []>} : vector<4x256xbf16>, vector<256x64xbf16>, vector<4x64xf32> -> vector<4x64xf32>
    %725 = vector.broadcast %556 : vector<1x64xf32> to vector<4x64xf32>
    %726 = arith.addf %724, %725 : vector<4x64xf32>
    %727 = arith.addf %688, %726 : vector<4x64xf32>
    %c37 = arith.constant 37 : index
    %c0_263 = arith.constant 0 : index
    %728 = vector.load %arg2[%c37, %c0_263] : memref<40x256xf32, #tpu.memory_space<vmem>>, vector<1x64xf32>
    %c38 = arith.constant 38 : index
    %c0_264 = arith.constant 0 : index
    %729 = vector.load %arg2[%c38, %c0_264] : memref<40x256xf32, #tpu.memory_space<vmem>>, vector<1x64xf32>
    %cst_265 = arith.constant dense<0.000000e+00> : vector<4xf32>
    %730 = vector.multi_reduction <add>, %727, %cst_265 [1] : vector<4x64xf32> to vector<4xf32>
    %731 = vector.shape_cast %730 : vector<4xf32> to vector<4x1xf32>
    %cst_266 = arith.constant 6.400000e+01 : f32
    %732 = vector.broadcast %cst_266 : f32 to vector<4x1xf32>
    %733 = arith.divf %731, %732 : vector<4x1xf32>
    %734 = vector.broadcast %733 : vector<4x1xf32> to vector<4x64xf32>
    %735 = arith.subf %727, %734 : vector<4x64xf32>
    %736 = arith.mulf %735, %735 : vector<4x64xf32>
    %cst_267 = arith.constant dense<0.000000e+00> : vector<4xf32>
    %737 = vector.multi_reduction <add>, %736, %cst_267 [1] : vector<4x64xf32> to vector<4xf32>
    %738 = vector.shape_cast %737 : vector<4xf32> to vector<4x1xf32>
    %cst_268 = arith.constant 6.400000e+01 : f32
    %739 = vector.broadcast %cst_268 : f32 to vector<4x1xf32>
    %740 = arith.divf %738, %739 : vector<4x1xf32>
    %741 = vector.broadcast %733 : vector<4x1xf32> to vector<4x64xf32>
    %742 = arith.subf %727, %741 : vector<4x64xf32>
    %cst_269 = arith.constant 9.99999974E-6 : f32
    %743 = vector.broadcast %cst_269 : f32 to vector<4x1xf32>
    %744 = arith.addf %740, %743 : vector<4x1xf32>
    %745 = math.rsqrt %744 : vector<4x1xf32>
    %746 = vector.broadcast %745 : vector<4x1xf32> to vector<4x64xf32>
    %747 = arith.mulf %742, %746 : vector<4x64xf32>
    %748 = vector.broadcast %728 : vector<1x64xf32> to vector<4x64xf32>
    %749 = arith.mulf %747, %748 : vector<4x64xf32>
    %750 = vector.broadcast %729 : vector<1x64xf32> to vector<4x64xf32>
    %751 = arith.addf %749, %750 : vector<4x64xf32>
    %cst_270 = arith.constant dense<0.000000e+00> : vector<64xf32>
    %752 = vector.multi_reduction <add>, %751, %cst_270 [0] : vector<4x64xf32> to vector<64xf32>
    %753 = vector.shape_cast %752 : vector<64xf32> to vector<1x64xf32>
    %cst_271 = arith.constant 4.000000e+00 : f32
    %754 = vector.broadcast %cst_271 : f32 to vector<1x64xf32>
    %755 = arith.divf %753, %754 : vector<1x64xf32>
    %756 = arith.truncf %755 : vector<1x64xf32> to vector<1x64xbf16>
    %c0_272 = arith.constant 0 : index
    %c0_273 = arith.constant 0 : index
    %757 = vector.load %arg16[%c0_272, %c0_273] : memref<64x10xbf16, #tpu.memory_space<vmem>>, vector<64x10xbf16>
    %cst_274 = arith.constant dense<0.000000e+00> : vector<1x10xf32>
    %758 = tpu.matmul %756, %757, %cst_274 {dimension_numbers = #tpu.dot_dimension_numbers<[1], [0], [0], [1], [0, 0, 1, 1], [], []>} : vector<1x64xbf16>, vector<64x10xbf16>, vector<1x10xf32> -> vector<1x10xf32>
    %c39 = arith.constant 39 : index
    %c0_275 = arith.constant 0 : index
    %759 = vector.load %arg2[%c39, %c0_275] : memref<40x256xf32, #tpu.memory_space<vmem>>, vector<1x10xf32>
    %760 = arith.addf %758, %759 : vector<1x10xf32>
    %c0_276 = arith.constant 0 : index
    %c0_277 = arith.constant 0 : index
    %c0_278 = arith.constant 0 : index
    %761 = vector.load %arg17[%c0_276, %c0_277, %c0_278] : memref<1x1x10xf32, #tpu.memory_space<vmem>>, vector<1x1x10xf32>
    %762 = vector.shape_cast %761 : vector<1x1x10xf32> to vector<1x10xf32>
    %763 = vector.shape_cast %760 : vector<1x10xf32> to vector<1x1x10xf32>
    tpu.vector_store %arg17[%c0_276, %c0_277, %c0_278], %763 {strides = array<i32>} : memref<1x1x10xf32, #tpu.memory_space<vmem>>, vector<1x1x10xf32>,
    return
  }
  func.func @transform_0(%arg0: i32) -> (i32, i32, i32) {
    %c0_i32 = arith.constant 0 : i32
    %c0_i32_0 = arith.constant 0 : i32
    %c0_i32_1 = arith.constant 0 : i32
    return %arg0, %c0_i32, %c0_i32_0 : i32, i32, i32
  }
  func.func @transform_1(%arg0: i32) -> (i32, i32) {
    %c0_i32 = arith.constant 0 : i32
    %c0_i32_0 = arith.constant 0 : i32
    %c0_i32_1 = arith.constant 0 : i32
    return %c0_i32, %c0_i32_0 : i32, i32
  }
  func.func @transform_2(%arg0: i32) -> (i32, i32, i32, i32) {
    %c0_i32 = arith.constant 0 : i32
    %c0_i32_0 = arith.constant 0 : i32
    %c0_i32_1 = arith.constant 0 : i32
    %c0_i32_2 = arith.constant 0 : i32
    %c0_i32_3 = arith.constant 0 : i32
    return %c0_i32, %c0_i32_0, %c0_i32_1, %c0_i32_2 : i32, i32, i32, i32
  }
  func.func @transform_3(%arg0: i32) -> (i32, i32, i32, i32) {
    %c0_i32 = arith.constant 0 : i32
    %c0_i32_0 = arith.constant 0 : i32
    %c0_i32_1 = arith.constant 0 : i32
    %c0_i32_2 = arith.constant 0 : i32
    %c0_i32_3 = arith.constant 0 : i32
    return %c0_i32, %c0_i32_0, %c0_i32_1, %c0_i32_2 : i32, i32, i32, i32
  }
  func.func @transform_4(%arg0: i32) -> (i32, i32) {
    %c0_i32 = arith.constant 0 : i32
    %c0_i32_0 = arith.constant 0 : i32
    %c0_i32_1 = arith.constant 0 : i32
    return %c0_i32, %c0_i32_0 : i32, i32
  }
  func.func @transform_5(%arg0: i32) -> (i32, i32, i32) {
    %c0_i32 = arith.constant 0 : i32
    %c0_i32_0 = arith.constant 0 : i32
    %c0_i32_1 = arith.constant 0 : i32
    %c0_i32_2 = arith.constant 0 : i32
    return %c0_i32, %c0_i32_0, %c0_i32_1 : i32, i32, i32
  }
  func.func @transform_6(%arg0: i32) -> (i32, i32, i32) {
    %c0_i32 = arith.constant 0 : i32
    %c0_i32_0 = arith.constant 0 : i32
    %c0_i32_1 = arith.constant 0 : i32
    %c0_i32_2 = arith.constant 0 : i32
    return %c0_i32, %c0_i32_0, %c0_i32_1 : i32, i32, i32
  }
  func.func @transform_7(%arg0: i32) -> (i32, i32, i32) {
    %c0_i32 = arith.constant 0 : i32
    %c0_i32_0 = arith.constant 0 : i32
    %c0_i32_1 = arith.constant 0 : i32
    %c0_i32_2 = arith.constant 0 : i32
    return %c0_i32, %c0_i32_0, %c0_i32_1 : i32, i32, i32
  }
  func.func @transform_8(%arg0: i32) -> (i32, i32, i32) {
    %c0_i32 = arith.constant 0 : i32
    %c0_i32_0 = arith.constant 0 : i32
    %c0_i32_1 = arith.constant 0 : i32
    %c0_i32_2 = arith.constant 0 : i32
    return %c0_i32, %c0_i32_0, %c0_i32_1 : i32, i32, i32
  }
  func.func @transform_9(%arg0: i32) -> (i32, i32, i32) {
    %c0_i32 = arith.constant 0 : i32
    %c0_i32_0 = arith.constant 0 : i32
    %c0_i32_1 = arith.constant 0 : i32
    %c0_i32_2 = arith.constant 0 : i32
    return %c0_i32, %c0_i32_0, %c0_i32_1 : i32, i32, i32
  }
  func.func @transform_10(%arg0: i32) -> (i32, i32) {
    %c0_i32 = arith.constant 0 : i32
    %c0_i32_0 = arith.constant 0 : i32
    %c0_i32_1 = arith.constant 0 : i32
    return %c0_i32, %c0_i32_0 : i32, i32
  }
  func.func @transform_11(%arg0: i32) -> (i32, i32, i32) {
    %c0_i32 = arith.constant 0 : i32
    %c0_i32_0 = arith.constant 0 : i32
    %c0_i32_1 = arith.constant 0 : i32
    %c0_i32_2 = arith.constant 0 : i32
    return %c0_i32, %c0_i32_0, %c0_i32_1 : i32, i32, i32
  }
  func.func @transform_12(%arg0: i32) -> (i32, i32, i32) {
    %c0_i32 = arith.constant 0 : i32
    %c0_i32_0 = arith.constant 0 : i32
    %c0_i32_1 = arith.constant 0 : i32
    %c0_i32_2 = arith.constant 0 : i32
    return %c0_i32, %c0_i32_0, %c0_i32_1 : i32, i32, i32
  }
  func.func @transform_13(%arg0: i32) -> (i32, i32, i32) {
    %c0_i32 = arith.constant 0 : i32
    %c0_i32_0 = arith.constant 0 : i32
    %c0_i32_1 = arith.constant 0 : i32
    %c0_i32_2 = arith.constant 0 : i32
    return %c0_i32, %c0_i32_0, %c0_i32_1 : i32, i32, i32
  }
  func.func @transform_14(%arg0: i32) -> (i32, i32, i32) {
    %c0_i32 = arith.constant 0 : i32
    %c0_i32_0 = arith.constant 0 : i32
    %c0_i32_1 = arith.constant 0 : i32
    %c0_i32_2 = arith.constant 0 : i32
    return %c0_i32, %c0_i32_0, %c0_i32_1 : i32, i32, i32
  }
  func.func @transform_15(%arg0: i32) -> (i32, i32) {
    %c0_i32 = arith.constant 0 : i32
    %c0_i32_0 = arith.constant 0 : i32
    %c0_i32_1 = arith.constant 0 : i32
    return %c0_i32, %c0_i32_0 : i32, i32
  }
  func.func @transform_16(%arg0: i32) -> (i32, i32, i32) {
    %c0_i32 = arith.constant 0 : i32
    %c0_i32_0 = arith.constant 0 : i32
    %c0_i32_1 = arith.constant 0 : i32
    return %arg0, %c0_i32, %c0_i32_0 : i32, i32, i32
  }
}

</mosaic_0001>

<llo_original>
// kernel: swin_forward.1
$region0: #{swin_forward.1}
  #allocation0 [shape = 'u32[]', space=smem, size = 0x4, offset = 0x4, fixed_abs, tag = 'smem constant byte address 0x4 - core index']
  #allocation1 [shape = 'u32[144,128]{1,0:T(1,128)}', space=vmem, size = 0x12000, scoped, tag = 'internal scratch']
  %s0 = inlined_call_operand.vmem [shape: f32[2,16,48], index: 0, kind: input, shape index: {}]
  %s1 = inlined_call_operand.vmem [shape: f32[40,256], index: 1, kind: input, shape index: {}]
  %s2 = inlined_call_operand.vmem [shape: bf16[2,2,16,16], index: 2, kind: input, shape index: {}]
  %s3 = inlined_call_operand.vmem [shape: bf16[2,4,4,4], index: 3, kind: input, shape index: {}]
  %s4 = inlined_call_operand.vmem [shape: bf16[48,32], index: 4, kind: input, shape index: {}]
  %s5 = inlined_call_operand.vmem [shape: bf16[2,32,96], index: 5, kind: input, shape index: {}]
  %s6 = inlined_call_operand.vmem [shape: bf16[2,32,32], index: 6, kind: input, shape index: {}]
  %s7 = inlined_call_operand.vmem [shape: bf16[2,32,128], index: 7, kind: input, shape index: {}]
  %s8 = inlined_call_operand.vmem [shape: bf16[2,128,32], index: 8, kind: input, shape index: {}]
  %s9 = inlined_call_operand.vmem [shape: f32[4,4,16], index: 9, kind: input, shape index: {}]
  %s10 = inlined_call_operand.vmem [shape: bf16[128,64], index: 10, kind: input, shape index: {}]
  %s11 = inlined_call_operand.vmem [shape: bf16[2,64,192], index: 11, kind: input, shape index: {}]
  %s12 = inlined_call_operand.vmem [shape: bf16[2,64,64], index: 12, kind: input, shape index: {}]
  %s13 = inlined_call_operand.vmem [shape: bf16[2,64,256], index: 13, kind: input, shape index: {}]
  %s14 = inlined_call_operand.vmem [shape: bf16[2,256,64], index: 14, kind: input, shape index: {}]
  %s15 = inlined_call_operand.vmem [shape: bf16[64,10], index: 15, kind: input, shape index: {}]
  %s16 = inlined_call_operand.hbm [shape: f32[2,1,10], index: 16, kind: output, shape index: {}]
  %s17 = sld [smem:[#allocation0]]
  $region97: #{swin_forward.1} parent=0
    _
  %s19 = ssub.s32 1, %s17
  %s20 = scalar_select 0, %s19, %s17
  $region1: #{swin_forward.1} parent=0
    #allocation2 [shape = 'u8[1024]{0}', space=vmem, size = 0x400, scoped, tag = 'output window, operand 0']
    #allocation3 [shape = 's32[2]{0}', space=sflag, size = 0x8, scoped, tag = 'scoped memory for swin_forward.1']
    %21 = vsyncpa [#allocation3], 0
    %s22 = scalar_lea.sflag [#allocation3], 1
    %23 = vsyncpa %s22, 0
    loop: start=0, step=1, limit=4
    $region2: #{swin_forward.1} parent=1 // loop_pre_header
      _
    $region3: #{swin_forward.1} parent=1 // loop_header
      %s25 = sphi 0, %s29
      %p26 = scmp.ge.s32.totalorder %s25, 4
      %s35 = sphi 0, %s37
      %s38 = sphi 0, %s35
      %s39 = sphi 0, %s38
      %s55 = sphi 0, %s39
      %s59 = sphi 0, %s59
      %s61 = sphi 0, %s59
      %s62 = sphi 0, %s61
      %s76 = sphi 0, %s62
      %s80 = sphi 0, %s80
      %s82 = sphi 0, %s80
      %s83 = sphi 0, %s82
      %s97 = sphi 0, %s83
      %s101 = sphi 0, %s101
      %s103 = sphi 0, %s101
      %s104 = sphi 0, %s103
      %s118 = sphi 0, %s104
      %s122 = sphi 0, %s122
      %s124 = sphi 0, %s122
      %s125 = sphi 0, %s124
      %s139 = sphi 0, %s125
      %s143 = sphi 0, %s143
      %s145 = sphi 0, %s143
      %s146 = sphi 0, %s145
      %s160 = sphi 0, %s146
      %s164 = sphi 0, %s164
      %s166 = sphi 0, %s164
      %s167 = sphi 0, %s166
      %s181 = sphi 0, %s167
      %s185 = sphi 0, %s185
      %s187 = sphi 0, %s185
      %s188 = sphi 0, %s187
      %s202 = sphi 0, %s188
      %s206 = sphi 0, %s206
      %s208 = sphi 0, %s206
      %s209 = sphi 0, %s208
      %s223 = sphi 0, %s209
      %s227 = sphi 0, %s227
      %s229 = sphi 0, %s227
      %s230 = sphi 0, %s229
      %s244 = sphi 0, %s230
      %s248 = sphi 0, %s248
      %s250 = sphi 0, %s248
      %s251 = sphi 0, %s250
      %s265 = sphi 0, %s251
      %s269 = sphi 0, %s269
      %s271 = sphi 0, %s269
      %s272 = sphi 0, %s271
      %s286 = sphi 0, %s272
      %s290 = sphi 0, %s290
      %s292 = sphi 0, %s290
      %s293 = sphi 0, %s292
      %s307 = sphi 0, %s293
      %s311 = sphi 0, %s311
      %s313 = sphi 0, %s311
      %s314 = sphi 0, %s313
      %s328 = sphi 0, %s314
      %s332 = sphi 0, %s332
      %s334 = sphi 0, %s332
      %s335 = sphi 0, %s334
      %s349 = sphi 0, %s335
      %s353 = sphi 0, %s353
      %s355 = sphi 0, %s353
      %s356 = sphi 0, %s355
      %s370 = sphi 0, %s356
      %s376 = sphi 0, %s378
      %s379 = sphi 0, %s376
      %s380 = sphi 0, %s379
      %s396 = sphi 0, %s380
    $region4: #{swin_forward.1} parent=1 // loop_header_branch
      %28 = sbr.rel (%p26) target = $region8
    $region5: #{swin_forward.1} parent=1 // loop_body
      %s30 = ssub.s32 %s25, 1
      %s31 = ssub.s32 %s25, 2
      %s32 = sadd.s32 %s25, 1
      %s33 = ssub.s32 %s25, %s32
      %p34 = scmp.eq.s32.totalorder %s33, 0
      %s36 = sadd.s32 %s35, 1
      %s37 = scalar_select %p34, %s35, %s36
      %p40 = pneg %p34
      %p41 = scmp.eq.s32.totalorder %s25, 1
      %p42 = por %p40, %p41
      %p43 = scmp.ne.s32.totalorder %s35, %s38
      %p44 = scmp.eq.s32.totalorder %s25, 0
      %p45 = por %p43, %p44
      %p46 = scmp.ne.s32.totalorder %s35, %s38
      %p47 = scmp.eq.s32.totalorder %s30, 1
      %p48 = por %p46, %p47
      %p49 = scmp.ne.s32.totalorder %s38, %s39
      %p50 = scmp.eq.s32.totalorder %s30, 0
      %p51 = por %p49, %p50
      %p52 = scmp.ne.s32.totalorder %s38, %s39
      %p53 = scmp.eq.s32.totalorder %s31, 1
      %p54 = por %p52, %p53
      %p56 = scmp.ne.s32.totalorder %s39, %s55
      %p57 = scmp.eq.s32.totalorder %s31, 0
      %p58 = por %p56, %p57
      %s60 = sadd.s32 %s59, 1
      %p63 = scmp.eq.s32.totalorder %s25, 1
      %p64 = scmp.ne.s32.totalorder %s59, %s61
      %p65 = scmp.eq.s32.totalorder %s25, 0
      %p66 = por %p64, %p65
      %p67 = scmp.ne.s32.totalorder %s59, %s61
      %p68 = scmp.eq.s32.totalorder %s30, 1
      %p69 = por %p67, %p68
      %p70 = scmp.ne.s32.totalorder %s61, %s62
      %p71 = scmp.eq.s32.totalorder %s30, 0
      %p72 = por %p70, %p71
      %p73 = scmp.ne.s32.totalorder %s61, %s62
      %p74 = scmp.eq.s32.totalorder %s31, 1
      %p75 = por %p73, %p74
      %p77 = scmp.ne.s32.totalorder %s62, %s76
      %p78 = scmp.eq.s32.totalorder %s31, 0
      %p79 = por %p77, %p78
      %s81 = sadd.s32 %s80, 1
      %p84 = scmp.eq.s32.totalorder %s25, 1
      %p85 = scmp.ne.s32.totalorder %s80, %s82
      %p86 = scmp.eq.s32.totalorder %s25, 0
      %p87 = por %p85, %p86
      %p88 = scmp.ne.s32.totalorder %s80, %s82
      %p89 = scmp.eq.s32.totalorder %s30, 1
      %p90 = por %p88, %p89
      %p91 = scmp.ne.s32.totalorder %s82, %s83
      %p92 = scmp.eq.s32.totalorder %s30, 0
      %p93 = por %p91, %p92
      %p94 = scmp.ne.s32.totalorder %s82, %s83
      %p95 = scmp.eq.s32.totalorder %s31, 1
      %p96 = por %p94, %p95
      %p98 = scmp.ne.s32.totalorder %s83, %s97
      %p99 = scmp.eq.s32.totalorder %s31, 0
      %p100 = por %p98, %p99
      %s102 = sadd.s32 %s101, 1
      %p105 = scmp.eq.s32.totalorder %s25, 1
      %p106 = scmp.ne.s32.totalorder %s101, %s103
      %p107 = scmp.eq.s32.totalorder %s25, 0
      %p108 = por %p106, %p107
      %p109 = scmp.ne.s32.totalorder %s101, %s103
      %p110 = scmp.eq.s32.totalorder %s30, 1
      %p111 = por %p109, %p110
      %p112 = scmp.ne.s32.totalorder %s103, %s104
      %p113 = scmp.eq.s32.totalorder %s30, 0
      %p114 = por %p112, %p113
      %p115 = scmp.ne.s32.totalorder %s103, %s104
      %p116 = scmp.eq.s32.totalorder %s31, 1
      %p117 = por %p115, %p116
      %p119 = scmp.ne.s32.totalorder %s104, %s118
      %p120 = scmp.eq.s32.totalorder %s31, 0
      %p121 = por %p119, %p120
      %s123 = sadd.s32 %s122, 1
      %p126 = scmp.eq.s32.totalorder %s25, 1
      %p127 = scmp.ne.s32.totalorder %s122, %s124
      %p128 = scmp.eq.s32.totalorder %s25, 0
      %p129 = por %p127, %p128
      %p130 = scmp.ne.s32.totalorder %s122, %s124
      %p131 = scmp.eq.s32.totalorder %s30, 1
      %p132 = por %p130, %p131
      %p133 = scmp.ne.s32.totalorder %s124, %s125
      %p134 = scmp.eq.s32.totalorder %s30, 0
      %p135 = por %p133, %p134
      %p136 = scmp.ne.s32.totalorder %s124, %s125
      %p137 = scmp.eq.s32.totalorder %s31, 1
      %p138 = por %p136, %p137
      %p140 = scmp.ne.s32.totalorder %s125, %s139
      %p141 = scmp.eq.s32.totalorder %s31, 0
      %p142 = por %p140, %p141
      %s144 = sadd.s32 %s143, 1
      %p147 = scmp.eq.s32.totalorder %s25, 1
      %p148 = scmp.ne.s32.totalorder %s143, %s145
      %p149 = scmp.eq.s32.totalorder %s25, 0
      %p150 = por %p148, %p149
      %p151 = scmp.ne.s32.totalorder %s143, %s145
      %p152 = scmp.eq.s32.totalorder %s30, 1
      %p153 = por %p151, %p152
      %p154 = scmp.ne.s32.totalorder %s145, %s146
      %p155 = scmp.eq.s32.totalorder %s30, 0
      %p156 = por %p154, %p155
      %p157 = scmp.ne.s32.totalorder %s145, %s146
      %p158 = scmp.eq.s32.totalorder %s31, 1
      %p159 = por %p157, %p158
      %p161 = scmp.ne.s32.totalorder %s146, %s160
      %p162 = scmp.eq.s32.totalorder %s31, 0
      %p163 = por %p161, %p162
      %s165 = sadd.s32 %s164, 1
      %p168 = scmp.eq.s32.totalorder %s25, 1
      %p169 = scmp.ne.s32.totalorder %s164, %s166
      %p170 = scmp.eq.s32.totalorder %s25, 0
      %p171 = por %p169, %p170
      %p172 = scmp.ne.s32.totalorder %s164, %s166
      %p173 = scmp.eq.s32.totalorder %s30, 1
      %p174 = por %p172, %p173
      %p175 = scmp.ne.s32.totalorder %s166, %s167
      %p176 = scmp.eq.s32.totalorder %s30, 0
      %p177 = por %p175, %p176
      %p178 = scmp.ne.s32.totalorder %s166, %s167
      %p179 = scmp.eq.s32.totalorder %s31, 1
      %p180 = por %p178, %p179
      %p182 = scmp.ne.s32.totalorder %s167, %s181
      %p183 = scmp.eq.s32.totalorder %s31, 0
      %p184 = por %p182, %p183
      %s186 = sadd.s32 %s185, 1
      %p189 = scmp.eq.s32.totalorder %s25, 1
      %p190 = scmp.ne.s32.totalorder %s185, %s187
      %p191 = scmp.eq.s32.totalorder %s25, 0
      %p192 = por %p190, %p191
      %p193 = scmp.ne.s32.totalorder %s185, %s187
      %p194 = scmp.eq.s32.totalorder %s30, 1
      %p195 = por %p193, %p194
      %p196 = scmp.ne.s32.totalorder %s187, %s188
      %p197 = scmp.eq.s32.totalorder %s30, 0
      %p198 = por %p196, %p197
      %p199 = scmp.ne.s32.totalorder %s187, %s188
      %p200 = scmp.eq.s32.totalorder %s31, 1
      %p201 = por %p199, %p200
      %p203 = scmp.ne.s32.totalorder %s188, %s202
      %p204 = scmp.eq.s32.totalorder %s31, 0
      %p205 = por %p203, %p204
      %s207 = sadd.s32 %s206, 1
      %p210 = scmp.eq.s32.totalorder %s25, 1
      %p211 = scmp.ne.s32.totalorder %s206, %s208
      %p212 = scmp.eq.s32.totalorder %s25, 0
      %p213 = por %p211, %p212
      %p214 = scmp.ne.s32.totalorder %s206, %s208
      %p215 = scmp.eq.s32.totalorder %s30, 1
      %p216 = por %p214, %p215
      %p217 = scmp.ne.s32.totalorder %s208, %s209
      %p218 = scmp.eq.s32.totalorder %s30, 0
      %p219 = por %p217, %p218
      %p220 = scmp.ne.s32.totalorder %s208, %s209
      %p221 = scmp.eq.s32.totalorder %s31, 1
      %p222 = por %p220, %p221
      %p224 = scmp.ne.s32.totalorder %s209, %s223
      %p225 = scmp.eq.s32.totalorder %s31, 0
      %p226 = por %p224, %p225
      %s228 = sadd.s32 %s227, 1
      %p231 = scmp.eq.s32.totalorder %s25, 1
      %p232 = scmp.ne.s32.totalorder %s227, %s229
      %p233 = scmp.eq.s32.totalorder %s25, 0
      %p234 = por %p232, %p233
      %p235 = scmp.ne.s32.totalorder %s227, %s229
      %p236 = scmp.eq.s32.totalorder %s30, 1
      %p237 = por %p235, %p236
      %p238 = scmp.ne.s32.totalorder %s229, %s230
      %p239 = scmp.eq.s32.totalorder %s30, 0
      %p240 = por %p238, %p239
      %p241 = scmp.ne.s32.totalorder %s229, %s230
      %p242 = scmp.eq.s32.totalorder %s31, 1
      %p243 = por %p241, %p242
      %p245 = scmp.ne.s32.totalorder %s230, %s244
      %p246 = scmp.eq.s32.totalorder %s31, 0
      %p247 = por %p245, %p246
      %s249 = sadd.s32 %s248, 1
      %p252 = scmp.eq.s32.totalorder %s25, 1
      %p253 = scmp.ne.s32.totalorder %s248, %s250
      %p254 = scmp.eq.s32.totalorder %s25, 0
      %p255 = por %p253, %p254
      %p256 = scmp.ne.s32.totalorder %s248, %s250
      %p257 = scmp.eq.s32.totalorder %s30, 1
      %p258 = por %p256, %p257
      %p259 = scmp.ne.s32.totalorder %s250, %s251
      %p260 = scmp.eq.s32.totalorder %s30, 0
      %p261 = por %p259, %p260
      %p262 = scmp.ne.s32.totalorder %s250, %s251
      %p263 = scmp.eq.s32.totalorder %s31, 1
      %p264 = por %p262, %p263
      %p266 = scmp.ne.s32.totalorder %s251, %s265
      %p267 = scmp.eq.s32.totalorder %s31, 0
      %p268 = por %p266, %p267
      %s270 = sadd.s32 %s269, 1
      %p273 = scmp.eq.s32.totalorder %s25, 1
      %p274 = scmp.ne.s32.totalorder %s269, %s271
      %p275 = scmp.eq.s32.totalorder %s25, 0
      %p276 = por %p274, %p275
      %p277 = scmp.ne.s32.totalorder %s269, %s271
      %p278 = scmp.eq.s32.totalorder %s30, 1
      %p279 = por %p277, %p278
      %p280 = scmp.ne.s32.totalorder %s271, %s272
      %p281 = scmp.eq.s32.totalorder %s30, 0
      %p282 = por %p280, %p281
      %p283 = scmp.ne.s32.totalorder %s271, %s272
      %p284 = scmp.eq.s32.totalorder %s31, 1
      %p285 = por %p283, %p284
      %p287 = scmp.ne.s32.totalorder %s272, %s286
      %p288 = scmp.eq.s32.totalorder %s31, 0
      %p289 = por %p287, %p288
      %s291 = sadd.s32 %s290, 1
      %p294 = scmp.eq.s32.totalorder %s25, 1
      %p295 = scmp.ne.s32.totalorder %s290, %s292
      %p296 = scmp.eq.s32.totalorder %s25, 0
      %p297 = por %p295, %p296
      %p298 = scmp.ne.s32.totalorder %s290, %s292
      %p299 = scmp.eq.s32.totalorder %s30, 1
      %p300 = por %p298, %p299
      %p301 = scmp.ne.s32.totalorder %s292, %s293
      %p302 = scmp.eq.s32.totalorder %s30, 0
      %p303 = por %p301, %p302
      %p304 = scmp.ne.s32.totalorder %s292, %s293
      %p305 = scmp.eq.s32.totalorder %s31, 1
      %p306 = por %p304, %p305
      %p308 = scmp.ne.s32.totalorder %s293, %s307
      %p309 = scmp.eq.s32.totalorder %s31, 0
      %p310 = por %p308, %p309
      %s312 = sadd.s32 %s311, 1
      %p315 = scmp.eq.s32.totalorder %s25, 1
      %p316 = scmp.ne.s32.totalorder %s311, %s313
      %p317 = scmp.eq.s32.totalorder %s25, 0
      %p318 = por %p316, %p317
      %p319 = scmp.ne.s32.totalorder %s311, %s313
      %p320 = scmp.eq.s32.totalorder %s30, 1
      %p321 = por %p319, %p320
      %p322 = scmp.ne.s32.totalorder %s313, %s314
      %p323 = scmp.eq.s32.totalorder %s30, 0
      %p324 = por %p322, %p323
      %p325 = scmp.ne.s32.totalorder %s313, %s314
      %p326 = scmp.eq.s32.totalorder %s31, 1
      %p327 = por %p325, %p326
      %p329 = scmp.ne.s32.totalorder %s314, %s328
      %p330 = scmp.eq.s32.totalorder %s31, 0
      %p331 = por %p329, %p330
      %s333 = sadd.s32 %s332, 1
      %p336 = scmp.eq.s32.totalorder %s25, 1
      %p337 = scmp.ne.s32.totalorder %s332, %s334
      %p338 = scmp.eq.s32.totalorder %s25, 0
      %p339 = por %p337, %p338
      %p340 = scmp.ne.s32.totalorder %s332, %s334
      %p341 = scmp.eq.s32.totalorder %s30, 1
      %p342 = por %p340, %p341
      %p343 = scmp.ne.s32.totalorder %s334, %s335
      %p344 = scmp.eq.s32.totalorder %s30, 0
      %p345 = por %p343, %p344
      %p346 = scmp.ne.s32.totalorder %s334, %s335
      %p347 = scmp.eq.s32.totalorder %s31, 1
      %p348 = por %p346, %p347
      %p350 = scmp.ne.s32.totalorder %s335, %s349
      %p351 = scmp.eq.s32.totalorder %s31, 0
      %p352 = por %p350, %p351
      %s354 = sadd.s32 %s353, 1
      %p357 = scmp.eq.s32.totalorder %s25, 1
      %p358 = scmp.ne.s32.totalorder %s353, %s355
      %p359 = scmp.eq.s32.totalorder %s25, 0
      %p360 = por %p358, %p359
      %p361 = scmp.ne.s32.totalorder %s353, %s355
      %p362 = scmp.eq.s32.totalorder %s30, 1
      %p363 = por %p361, %p362
      %p364 = scmp.ne.s32.totalorder %s355, %s356
      %p365 = scmp.eq.s32.totalorder %s30, 0
      %p366 = por %p364, %p365
      %p367 = scmp.ne.s32.totalorder %s355, %s356
      %p368 = scmp.eq.s32.totalorder %s31, 1
      %p369 = por %p367, %p368
      %p371 = scmp.ne.s32.totalorder %s356, %s370
      %p372 = scmp.eq.s32.totalorder %s31, 0
      %p373 = por %p371, %p372
      %s374 = ssub.s32 %s25, %s32
      %p375 = scmp.eq.s32.totalorder %s374, 0
      %s377 = sadd.s32 %s376, 1
      %s378 = scalar_select %p375, %s376, %s377
      %p381 = pneg %p375
      %p382 = scmp.eq.s32.totalorder %s25, 1
      %p383 = por %p381, %p382
      %p384 = scmp.ne.s32.totalorder %s376, %s379
      %p385 = scmp.eq.s32.totalorder %s25, 0
      %p386 = por %p384, %p385
      %p387 = scmp.ne.s32.totalorder %s376, %s379
      %p388 = scmp.eq.s32.totalorder %s30, 1
      %p389 = por %p387, %p388
      %p390 = scmp.ne.s32.totalorder %s379, %s380
      %p391 = scmp.eq.s32.totalorder %s30, 0
      %p392 = por %p390, %p391
      %p393 = scmp.ne.s32.totalorder %s379, %s380
      %p394 = scmp.eq.s32.totalorder %s31, 1
      %p395 = por %p393, %p394
      %p397 = scmp.ne.s32.totalorder %s380, %s396
      %p398 = scmp.eq.s32.totalorder %s31, 0
      %p399 = por %p397, %p398
      %p400 = scmp.le.s32.totalorder 1, %s25
      %p401 = scmp.lt.s32.totalorder %s25, 3
      %p402 = pnand %p400, %p401
      %p403 = pneg %p402
      // Predicated region
      $region9: #{swin_forward.1} parent=5 // pred_check
        _
      $region10: #{swin_forward.1} parent=5 // pred_check_branch
        %405 = sbr.rel (%p402) target = $region12
      $region11: #{swin_forward.1} parent=5 // pred_region
        %s406 = ssub.s32 %s25, 1
        // Predicated region
        $region13: #{swin_forward.1} parent=11 // pred_check
          %p407 = pneg %p72
        $region14: #{swin_forward.1} parent=11 // pred_check_branch
          %409 = sbr.rel (%p407) target = $region16
        $region15: #{swin_forward.1} parent=11 // pred_region
          _
        $region16: #{swin_forward.1} parent=11 // pred_fallthru
          _
        // Predicated region
        $region17: #{swin_forward.1} parent=11 // pred_check
          %p410 = pneg %p93
        $region18: #{swin_forward.1} parent=11 // pred_check_branch
          %412 = sbr.rel (%p410) target = $region20
        $region19: #{swin_forward.1} parent=11 // pred_region
          _
        $region20: #{swin_forward.1} parent=11 // pred_fallthru
          _
        // Predicated region
        $region21: #{swin_forward.1} parent=11 // pred_check
          %p413 = pneg %p114
        $region22: #{swin_forward.1} parent=11 // pred_check_branch
          %415 = sbr.rel (%p413) target = $region24
        $region23: #{swin_forward.1} parent=11 // pred_region
          _
        $region24: #{swin_forward.1} parent=11 // pred_fallthru
          _
        // Predicated region
        $region25: #{swin_forward.1} parent=11 // pred_check
          %p416 = pneg %p135
        $region26: #{swin_forward.1} parent=11 // pred_check_branch
          %418 = sbr.rel (%p416) target = $region28
        $region27: #{swin_forward.1} parent=11 // pred_region
          _
        $region28: #{swin_forward.1} parent=11 // pred_fallthru
          _
        // Predicated region
        $region29: #{swin_forward.1} parent=11 // pred_check
          %p419 = pneg %p156
        $region30: #{swin_forward.1} parent=11 // pred_check_branch
          %421 = sbr.rel (%p419) target = $region32
        $region31: #{swin_forward.1} parent=11 // pred_region
          _
        $region32: #{swin_forward.1} parent=11 // pred_fallthru
          _
        // Predicated region
        $region33: #{swin_forward.1} parent=11 // pred_check
          %p422 = pneg %p177
        $region34: #{swin_forward.1} parent=11 // pred_check_branch
          %424 = sbr.rel (%p422) target = $region36
        $region35: #{swin_forward.1} parent=11 // pred_region
          _
        $region36: #{swin_forward.1} parent=11 // pred_fallthru
          _
        // Predicated region
        $region37: #{swin_forward.1} parent=11 // pred_check
          %p425 = pneg %p198
        $region38: #{swin_forward.1} parent=11 // pred_check_branch
          %427 = sbr.rel (%p425) target = $region40
        $region39: #{swin_forward.1} parent=11 // pred_region
          _
        $region40: #{swin_forward.1} parent=11 // pred_fallthru
          _
        // Predicated region
        $region41: #{swin_forward.1} parent=11 // pred_check
          %p428 = pneg %p219
        $region42: #{swin_forward.1} parent=11 // pred_check_branch
          %430 = sbr.rel (%p428) target = $region44
        $region43: #{swin_forward.1} parent=11 // pred_region
          _
        $region44: #{swin_forward.1} parent=11 // pred_fallthru
          _
        // Predicated region
        $region45: #{swin_forward.1} parent=11 // pred_check
          %p431 = pneg %p240
        $region46: #{swin_forward.1} parent=11 // pred_check_branch
          %433 = sbr.rel (%p431) target = $region48
        $region47: #{swin_forward.1} parent=11 // pred_region
          _
        $region48: #{swin_forward.1} parent=11 // pred_fallthru
          _
        // Predicated region
        $region49: #{swin_forward.1} parent=11 // pred_check
          %p434 = pneg %p261
        $region50: #{swin_forward.1} parent=11 // pred_check_branch
          %436 = sbr.rel (%p434) target = $region52
        $region51: #{swin_forward.1} parent=11 // pred_region
          _
        $region52: #{swin_forward.1} parent=11 // pred_fallthru
          _
        // Predicated region
        $region53: #{swin_forward.1} parent=11 // pred_check
          %p437 = pneg %p282
        $region54: #{swin_forward.1} parent=11 // pred_check_branch
          %439 = sbr.rel (%p437) target = $region56
        $region55: #{swin_forward.1} parent=11 // pred_region
          _
        $region56: #{swin_forward.1} parent=11 // pred_fallthru
          _
        // Predicated region
        $region57: #{swin_forward.1} parent=11 // pred_check
          %p440 = pneg %p303
        $region58: #{swin_forward.1} parent=11 // pred_check_branch
          %442 = sbr.rel (%p440) target = $region60
        $region59: #{swin_forward.1} parent=11 // pred_region
          _
        $region60: #{swin_forward.1} parent=11 // pred_fallthru
          _
        // Predicated region
        $region61: #{swin_forward.1} parent=11 // pred_check
          %p443 = pneg %p324
        $region62: #{swin_forward.1} parent=11 // pred_check_branch
          %445 = sbr.rel (%p443) target = $region64
        $region63: #{swin_forward.1} parent=11 // pred_region
          _
        $region64: #{swin_forward.1} parent=11 // pred_fallthru
          _
        // Predicated region
        $region65: #{swin_forward.1} parent=11 // pred_check
          %p446 = pneg %p345
        $region66: #{swin_forward.1} parent=11 // pred_check_branch
          %448 = sbr.rel (%p446) target = $region68
        $region67: #{swin_forward.1} parent=11 // pred_region
          _
        $region68: #{swin_forward.1} parent=11 // pred_fallthru
          _
        // Predicated region
        $region69: #{swin_forward.1} parent=11 // pred_check
          %p449 = pneg %p366
        $region70: #{swin_forward.1} parent=11 // pred_check_branch
          %451 = sbr.rel (%p449) target = $region72
        $region71: #{swin_forward.1} parent=11 // pred_region
          _
        $region72: #{swin_forward.1} parent=11 // pred_fallthru
          _
      $region12: #{swin_forward.1} parent=5 // pred_fallthru
        _
      %p452 = scmp.lt.s32.totalorder %s25, 2
      // Predicated region
      $region73: #{swin_forward.1} parent=5 // pred_check
        %p453 = pneg %p452
      $region74: #{swin_forward.1} parent=5 // pred_check_branch
        %455 = sbr.rel (%p453) target = $region76
      $region75: #{swin_forward.1} parent=5 // pred_region
        // Predicated region
        $region77: #{swin_forward.1} parent=75 // pred_check
          %p456 = pneg %p45
        $region78: #{swin_forward.1} parent=75 // pred_check_branch
          %458 = sbr.rel (%p456) target = $region80
        $region79: #{swin_forward.1} parent=75 // pred_region
          %p459 = scmp.lt.s32.totalorder %s25, 1
          %s460 = scalar_select %p459, %s25, 1
          %s461 = smul.addr %s460, 2
          %s462 = smul.addr %s461, 8
          %s463 = scalar_lea.vmem %s0, %s462
        $region80: #{swin_forward.1} parent=75 // pred_fallthru
          _
      $region76: #{swin_forward.1} parent=5 // pred_fallthru
        _
      %p464 = scmp.le.s32.totalorder 1, %s25
      %p465 = scmp.lt.s32.totalorder %s25, 3
      %p466 = pnand %p464, %p465
      %p467 = pneg %p466
      // Predicated region
      $region81: #{swin_forward.1} parent=5 // pred_check
        _
      $region82: #{swin_forward.1} parent=5 // pred_check_branch
        %469 = sbr.rel (%p466) target = $region84
      $region83: #{swin_forward.1} parent=5 // pred_region
        %s470 = ssub.s32 %s25, 1
        %p471 = scmp.lt.s32.totalorder %s30, 1
        %s472 = scalar_select %p471, %s30, 1
        %s473 = smul.addr %s472, 2
        %s474 = smul.addr %s473, 8
        %s475 = scalar_lea.vmem %s0, %s474
        %p476 = pneg %p51
        %p477 = pneg %p48
        %p478 = pneg %p72
        %p479 = pneg %p69
        %p480 = pneg %p93
        %p481 = pneg %p90
        %p482 = pneg %p114
        %p483 = pneg %p111
        %p484 = pneg %p135
        %p485 = pneg %p132
        %p486 = pneg %p156
        %p487 = pneg %p153
        %p488 = pneg %p177
        %p489 = pneg %p174
        %p490 = pneg %p198
        %p491 = pneg %p195
        %p492 = pneg %p219
        %p493 = pneg %p216
        %p494 = pneg %p240
        %p495 = pneg %p237
        %p496 = pneg %p261
        %p497 = pneg %p258
        %p498 = pneg %p282
        %p499 = pneg %p279
        %p500 = pneg %p303
        %p501 = pneg %p300
        %p502 = pneg %p324
        %p503 = pneg %p321
        %p504 = pneg %p345
        %p505 = pneg %p342
        %p506 = pneg %p366
        %p507 = pneg %p363
        %p508 = pneg %p392
        %p509 = pneg %p389
        %s510 = sand.u32 %s379, 1
        %s511 = scalar_lea.sflag [#allocation3], %s510
        %s512 = sand.u32 %s379, 1
        %s513 = scalar_lea.vmem [#allocation2], %s512
        %p514 = scmp.lt.s32.totalorder %s30, 1
        %s515 = scalar_select %p514, %s30, 1
        %s516 = smul.addr %s515, 2
        %s517 = smul.addr %s516, 8
        %s518 = scalar_lea.vmem %s0, %s517
        %v520 = vld [vmem:[%s518] sm:$0xff]
        %v521 = vld [vmem:[%s518 + $0x8] sm:$0xff]
        %v522 = vpack.c.bf16 %v521, %v520
        %v523 = vld [vmem:[%s4] sm:$0xf]
        %v524 = vld [vmem:[%s4 + $0x4] sm:$0xf]
        %v525 = vld [vmem:[%s4 + $0x8] sm:$0xf]
        %v526 = vld [vmem:[%s4 + $0xc] sm:$0xf]
        %v527 = vld [vmem:[%s4 + $0x10] sm:$0xf]
        %v528 = vld [vmem:[%s4 + $0x14] sm:$0xf]
        %v529 = vld [vmem:[%s1] ss:$0 sm:$0xff]
        %v536 = vunpack.c.l.b16 %v523
        %v537 = vunpack.c.l.b16 %v524
        %v538 = vunpack.c.l.b16 %v525
        %v539 = vunpack.c.l.b16 %v526
        %v540 = vunpack.c.l.b16 %v527
        %v541 = vunpack.c.l.b16 %v528
        %v542 = vpack.c.b16 %v537, %v536
        %v543 = vpack.c.b16 %v539, %v538
        %v544 = vpack.c.b16 %v541, %v540
        %vm548 = vcmask 392192
        %v550 = vsel %vm548, %v522, 0
        %552 = vmatprep.subr.bf16.mxu0 0
        %553 = vmatpush1.bf16.msra.mxu0 %v542
        %554 = vmatprep.subr.bf16.mxu0 0
        %555 = vmatpush1.bf16.msra.mxu0 %v543
        %556 = vmatprep.subr.bf16.mxu0 0
        %557 = vmatpush1.bf16.msra.mxu0 %v544
        %558 = vmatprep.subr.bf16.mxu0 0
        %559 = vmatpush1.bf16.msra.mxu0 0
        %560 = vmatprep.subr.bf16.mxu0 0
        %561 = vmatpush1.bf16.msra.mxu0 0
        %562 = vmatprep.subr.bf16.mxu0 0
        %563 = vmatpush1.bf16.msra.mxu0 0
        %564 = vmatprep.subr.bf16.mxu0 0
        %565 = vmatpush1.bf16.msra.mxu0 0
        %566 = vmatprep.subr.bf16.mxu0 0
        %567 = vmatpush1.bf16.msra.mxu0 0
        %568 = vmatprep.subr.bf16.mxu0 0
        %569 = vmatpush1.bf16.msra.mxu0 0
        %570 = vmatprep.subr.bf16.mxu0 0
        %571 = vmatpush1.bf16.msra.mxu0 0
        %572 = vmatprep.subr.bf16.mxu0 0
        %573 = vmatpush1.bf16.msra.mxu0 0
        %574 = vmatprep.subr.bf16.mxu0 0
        %575 = vmatpush1.bf16.msra.mxu0 0
        %576 = vmatprep.subr.bf16.mxu0 0
        %577 = vmatpush1.bf16.msra.mxu0 0
        %578 = vmatprep.subr.bf16.mxu0 0
        %579 = vmatpush1.bf16.msra.mxu0 0
        %580 = vmatprep.subr.bf16.mxu0 0
        %581 = vmatpush1.bf16.msra.mxu0 0
        %582 = vmatprep.subr.bf16.mxu0 0
        %583 = vmatpush1.bf16.msra.mxu0 0
        %584 = vmatprep.mubr.bf16.mxu0 0
        %585 = vmatmul.mubr.bf16.gmra.mrb[0].mxu0 %v550
        %v586 = vpop.f32.mrb[0].mxu0
        %v587 = vadd.f32 %v529, %v586
        %v588 = vpop.f32.mrb[0].mxu0
        %v589 = vpop.f32.mrb[0].mxu0
        %v590 = vadd.f32 %v529, %v589
        %v591 = vpop.f32.mrb[0].mxu0
        %592 = vdwg.mxu0
        %v593 = vld [vmem:[%s1 + $0x1] ss:$0 sm:$0xff]
        %v594 = vld [vmem:[%s1 + $0x2] ss:$0 sm:$0xff]
        %vm595 = vcmask 261120
        %v596 = vsel %vm595, %v587, 0.0
        %597 = vadd.xlane.f32.xlu0 %v596
        %v598 = vpop.xlane.xlu0 %597
        %v599 = vsel %vm595, %v590, 0.0
        %600 = vadd.xlane.f32.xlu0 %v599
        %v601 = vpop.xlane.xlu0 %600
        %v602 = vrcp.pop 32.0
        %v603 = vmul.f32 %v598, %v602
        %v604 = vmul.f32 %v601, %v602
        %v605 = vsub.f32 %v587, %v603
        %v606 = vsub.f32 %v590, %v604
        %v607 = vmul.f32 %v605, %v605
        %v608 = vmul.f32 %v606, %v606
        %v609 = vsel %vm595, %v607, 0.0
        %610 = vadd.xlane.f32.xlu0 %v609
        %v611 = vpop.xlane.xlu0 %610
        %v612 = vsel %vm595, %v608, 0.0
        %613 = vadd.xlane.f32.xlu0 %v612
        %v614 = vpop.xlane.xlu0 %613
        %v615 = vmul.f32 %v611, %v602
        %v616 = vmul.f32 %v614, %v602
        %v617 = vadd.f32 %v615, 1e-05
        %v618 = vadd.f32 %v616, 1e-05
        %v619 = vrsqrt.pop %v617
        %v620 = vrsqrt.pop %v618
        %v621 = vmul.f32 %v605, %v619
        %v622 = vmul.f32 %v606, %v620
        %v623 = vmul.f32 %v621, %v593
        %v624 = vmul.f32 %v622, %v593
        %v625 = vadd.f32 %v623, %v594
        %v626 = vadd.f32 %v624, %v594
        %v627 = vld [vmem:[%s2] sm:$0xf]
        %v628 = vld [vmem:[%s2 + $0x4] sm:$0xf]
        %v629 = vld [vmem:[%s2 + $0x8] sm:$0xf]
        %v630 = vld [vmem:[%s2 + $0xc] sm:$0xf]
        %v631 = vld [vmem:[%s5] sm:$0xf]
        %v632 = vld [vmem:[%s5 + $0x4] sm:$0xf]
        %v633 = vld [vmem:[%s5 + $0x8] sm:$0xf]
        %v634 = vld [vmem:[%s5 + $0xc] sm:$0xf]
        %v635 = vld [vmem:[%s6] sm:$0xf]
        %v636 = vld [vmem:[%s6 + $0x4] sm:$0xf]
        %v637 = vld [vmem:[%s6 + $0x8] sm:$0xf]
        %v638 = vld [vmem:[%s6 + $0xc] sm:$0xf]
        %v639 = vld [vmem:[%s7] sm:$0xf]
        %v640 = vld [vmem:[%s7 + $0x4] sm:$0xf]
        %v641 = vld [vmem:[%s7 + $0x8] sm:$0xf]
        %v642 = vld [vmem:[%s7 + $0xc] sm:$0xf]
        %v643 = vld [vmem:[%s8] sm:$0xf]
        %v644 = vld [vmem:[%s8 + $0x4] sm:$0xf]
        %v645 = vld [vmem:[%s8 + $0x8] sm:$0xf]
        %v646 = vld [vmem:[%s8 + $0xc] sm:$0xf]
        %v647 = vld [vmem:[%s8 + $0x10] sm:$0xf]
        %v648 = vld [vmem:[%s8 + $0x14] sm:$0xf]
        %v649 = vld [vmem:[%s8 + $0x18] sm:$0xf]
        %v650 = vld [vmem:[%s8 + $0x1c] sm:$0xf]
        %v651 = vld [vmem:[%s8 + $0x20] sm:$0xf]
        %v652 = vld [vmem:[%s8 + $0x24] sm:$0xf]
        %v653 = vld [vmem:[%s8 + $0x28] sm:$0xf]
        %v654 = vld [vmem:[%s8 + $0x2c] sm:$0xf]
        %v655 = vld [vmem:[%s8 + $0x30] sm:$0xf]
        %v656 = vld [vmem:[%s8 + $0x34] sm:$0xf]
        %v657 = vld [vmem:[%s8 + $0x38] sm:$0xf]
        %v658 = vld [vmem:[%s8 + $0x3c] sm:$0xf]
        %v659 = vld [vmem:[%s1 + $0x3] ss:$0 sm:$0xff]
        %v660 = vld [vmem:[%s1 + $0x4] ss:$0 sm:$0xff]
        %v661 = vld [vmem:[%s1 + $0x5] ss:$0 sm:$0xff]
        %v662 = vld [vmem:[%s1 + $0x6] ss:$0 sm:$0xff]
        %v663 = vld [vmem:[%s1 + $0x7] ss:$0 sm:$0xff]
        %v664 = vld [vmem:[%s1 + $0x10] ss:$0 sm:$0xff]
        %v665 = vld [vmem:[%s1 + $0x11] ss:$0 sm:$0xff]
        %v666 = vld [vmem:[%s1 + $0x12] ss:$0 sm:$0xff]
        %v667 = vsel %vm595, %v625, 0.0
        %668 = vadd.xlane.f32.xlu0 %v667
        %v669 = vpop.xlane.xlu0 %668
        %v670 = vsel %vm595, %v626, 0.0
        %671 = vadd.xlane.f32.xlu0 %v670
        %v672 = vpop.xlane.xlu0 %671
        %v673 = vmul.f32 %v669, %v602
        %v674 = vmul.f32 %v672, %v602
        %v675 = vsub.f32 %v625, %v673
        %v676 = vsub.f32 %v626, %v674
        %v677 = vmul.f32 %v675, %v675
        %v678 = vmul.f32 %v676, %v676
        %v679 = vsel %vm595, %v677, 0.0
        %680 = vadd.xlane.f32.xlu0 %v679
        %v681 = vpop.xlane.xlu0 %680
        %v682 = vsel %vm595, %v678, 0.0
        %683 = vadd.xlane.f32.xlu0 %v682
        %v684 = vpop.xlane.xlu0 %683
        %v685 = vmul.f32 %v681, %v602
        %v686 = vmul.f32 %v684, %v602
        %v687 = vadd.f32 %v685, 1e-05
        %v688 = vadd.f32 %v686, 1e-05
        %v689 = vrsqrt.pop %v687
        %v690 = vrsqrt.pop %v688
        %v691 = vmul.f32 %v675, %v689
        %v692 = vmul.f32 %v676, %v690
        %v693 = vmul.f32 %v691, %v659
        %v694 = vmul.f32 %v692, %v659
        %v695 = vadd.f32 %v693, %v660
        %v696 = vadd.f32 %v694, %v660
        %v697 = vpack.c.bf16 %v696, %v695
        %v702 = vunpack.c.l.b16 %v631
        %v703 = vunpack.c.l.b16 %v632
        %v704 = vunpack.c.l.b16 %v633
        %v705 = vunpack.c.l.b16 %v634
        %v706 = vpack.c.b16 %v703, %v702
        %v707 = vpack.c.b16 %v705, %v704
        %v711 = vsel %vm595, %v697, 0
        %713 = vmatprep.subr.bf16.mxu0 0
        %714 = vmatpush1.bf16.msra.mxu0 %v706
        %715 = vmatprep.subr.bf16.mxu0 0
        %716 = vmatpush1.bf16.msra.mxu0 %v707
        %717 = vmatprep.subr.bf16.mxu0 0
        %718 = vmatpush1.bf16.msra.mxu0 0
        %719 = vmatprep.subr.bf16.mxu0 0
        %720 = vmatpush1.bf16.msra.mxu0 0
        %721 = vmatprep.subr.bf16.mxu0 0
        %722 = vmatpush1.bf16.msra.mxu0 0
        %723 = vmatprep.subr.bf16.mxu0 0
        %724 = vmatpush1.bf16.msra.mxu0 0
        %725 = vmatprep.subr.bf16.mxu0 0
        %726 = vmatpush1.bf16.msra.mxu0 0
        %727 = vmatprep.subr.bf16.mxu0 0
        %728 = vmatpush1.bf16.msra.mxu0 0
        %729 = vmatprep.subr.bf16.mxu0 0
        %730 = vmatpush1.bf16.msra.mxu0 0
        %731 = vmatprep.subr.bf16.mxu0 0
        %732 = vmatpush1.bf16.msra.mxu0 0
        %733 = vmatprep.subr.bf16.mxu0 0
        %734 = vmatpush1.bf16.msra.mxu0 0
        %735 = vmatprep.subr.bf16.mxu0 0
        %736 = vmatpush1.bf16.msra.mxu0 0
        %737 = vmatprep.subr.bf16.mxu0 0
        %738 = vmatpush1.bf16.msra.mxu0 0
        %739 = vmatprep.subr.bf16.mxu0 0
        %740 = vmatpush1.bf16.msra.mxu0 0
        %741 = vmatprep.subr.bf16.mxu0 0
        %742 = vmatpush1.bf16.msra.mxu0 0
        %743 = vmatprep.subr.bf16.mxu0 0
        %744 = vmatpush1.bf16.msra.mxu0 0
        %745 = vmatprep.mubr.bf16.mxu0 0
        %746 = vmatmul.mubr.bf16.gmra.mrb[0].mxu0 %v711
        %v747 = vpop.f32.mrb[0].mxu0
        %v748 = vadd.f32 %v661, %v747
        %v749 = vpop.f32.mrb[0].mxu0
        %v750 = vpop.f32.mrb[0].mxu0
        %v751 = vadd.f32 %v661, %v750
        %v752 = vpop.f32.mrb[0].mxu0
        %753 = vdwg.mxu0
        %v754 = vpack.c.bf16 %v751, %v748
        %756 = vrot.lane.b32.xlu0 %v754, 96
        %v757 = vpop.permute.xlu0 %756
        %vm758 = vcmask 130048
        %v760 = vsel %vm758, %v754, 0
        %v763 = vsel %vm758, %v757, 0
        %765 = vmatprep.subr.bf16.mxu0 0
        %766 = vmatpush1.bf16.xpose.msra.mxu0 %v763
        %767 = vmatprep.subr.bf16.mxu0 0
        %768 = vmatpush1.bf16.xpose.msra.mxu0 0
        %769 = vmatprep.subr.bf16.mxu0 0
        %770 = vmatpush1.bf16.xpose.msra.mxu0 0
        %771 = vmatprep.subr.bf16.mxu0 0
        %772 = vmatpush1.bf16.xpose.msra.mxu0 0
        %773 = vmatprep.subr.bf16.mxu0 0
        %774 = vmatpush1.bf16.xpose.msra.mxu0 0
        %775 = vmatprep.subr.bf16.mxu0 0
        %776 = vmatpush1.bf16.xpose.msra.mxu0 0
        %777 = vmatprep.subr.bf16.mxu0 0
        %778 = vmatpush1.bf16.xpose.msra.mxu0 0
        %779 = vmatprep.subr.bf16.mxu0 0
        %780 = vmatpush1.bf16.xpose.msra.mxu0 0
        %781 = vmatprep.subr.bf16.mxu0 0
        %782 = vmatpush1.bf16.xpose.msra.mxu0 0
        %783 = vmatprep.subr.bf16.mxu0 0
        %784 = vmatpush1.bf16.xpose.msra.mxu0 0
        %785 = vmatprep.subr.bf16.mxu0 0
        %786 = vmatpush1.bf16.xpose.msra.mxu0 0
        %787 = vmatprep.subr.bf16.mxu0 0
        %788 = vmatpush1.bf16.xpose.msra.mxu0 0
        %789 = vmatprep.subr.bf16.mxu0 0
        %790 = vmatpush1.bf16.xpose.msra.mxu0 0
        %791 = vmatprep.subr.bf16.mxu0 0
        %792 = vmatpush1.bf16.xpose.msra.mxu0 0
        %793 = vmatprep.subr.bf16.mxu0 0
        %794 = vmatpush1.bf16.xpose.msra.mxu0 0
        %795 = vmatprep.subr.bf16.mxu0 0
        %796 = vmatpush1.bf16.xpose.msra.mxu0 0
        %797 = vmatprep.mubr.bf16.mxu0 0
        %798 = vmatmul.mubr.bf16.gmra.mrb[0].mxu0 %v760
        %v799 = vpop.f32.mrb[0].mxu0
        %v800 = vadd.f32 0.0, %v799
        %v801 = vpop.f32.mrb[0].mxu0
        %v802 = vpop.f32.mrb[0].mxu0
        %v803 = vadd.f32 0.0, %v802
        %v804 = vpop.f32.mrb[0].mxu0
        %805 = vdwg.mxu0
        %v806 = vmul.f32 %v800, 0.25
        %v807 = vmul.f32 %v803, 0.25
        %v808 = vunpack.c.l.bf16 %v627
        %v809 = vunpack.c.l.bf16 %v628
        %v810 = vadd.f32 %v806, %v808
        %v811 = vadd.f32 %v807, %v809
        %v812 = vsel %vm758, %v810, -inf
        %813 = vmax.xlane.f32.xlu0 %v812
        %v814 = vpop.xlane.xlu0 %813
        %v815 = vsel %vm758, %v811, -inf
        %816 = vmax.xlane.f32.xlu0 %v815
        %v817 = vpop.xlane.xlu0 %816
        %v818 = vsub.f32 %v810, %v814
        %v819 = vsub.f32 %v811, %v817
        %v820 = vmul.f32 %v818, 1.442695
        %v821 = vpow.pop %v820
        %v822 = vmul.f32 %v819, 1.442695
        %v823 = vpow.pop %v822
        %v824 = vsel %vm758, %v821, 0.0
        %825 = vadd.xlane.f32.xlu0 %v824
        %v826 = vpop.xlane.xlu0 %825
        %v827 = vsel %vm758, %v823, 0.0
        %828 = vadd.xlane.f32.xlu0 %v827
        %v829 = vpop.xlane.xlu0 %828
        %v830 = vrcp.pop %v826
        %v831 = vrcp.pop %v829
        %v832 = vmul.f32 %v821, %v830
        %v833 = vmul.f32 %v823, %v831
        %v834 = vpack.c.bf16 %v833, %v832
        %835 = vrot.lane.b32.xlu0 %v754, 64
        %v836 = vpop.permute.xlu0 %835
        %v839 = vsel %vm758, %v834, 0
        %841 = vmatprep.subr.bf16.mxu0 0
        %842 = vmatpush1.bf16.msra.mxu0 %v836
        %843 = vmatprep.subr.bf16.mxu0 0
        %844 = vmatpush1.bf16.msra.mxu0 0
        %845 = vmatprep.subr.bf16.mxu0 0
        %846 = vmatpush1.bf16.msra.mxu0 0
        %847 = vmatprep.subr.bf16.mxu0 0
        %848 = vmatpush1.bf16.msra.mxu0 0
        %849 = vmatprep.subr.bf16.mxu0 0
        %850 = vmatpush1.bf16.msra.mxu0 0
        %851 = vmatprep.subr.bf16.mxu0 0
        %852 = vmatpush1.bf16.msra.mxu0 0
        %853 = vmatprep.subr.bf16.mxu0 0
        %854 = vmatpush1.bf16.msra.mxu0 0
        %855 = vmatprep.subr.bf16.mxu0 0
        %856 = vmatpush1.bf16.msra.mxu0 0
        %857 = vmatprep.subr.bf16.mxu0 0
        %858 = vmatpush1.bf16.msra.mxu0 0
        %859 = vmatprep.subr.bf16.mxu0 0
        %860 = vmatpush1.bf16.msra.mxu0 0
        %861 = vmatprep.subr.bf16.mxu0 0
        %862 = vmatpush1.bf16.msra.mxu0 0
        %863 = vmatprep.subr.bf16.mxu0 0
        %864 = vmatpush1.bf16.msra.mxu0 0
        %865 = vmatprep.subr.bf16.mxu0 0
        %866 = vmatpush1.bf16.msra.mxu0 0
        %867 = vmatprep.subr.bf16.mxu0 0
        %868 = vmatpush1.bf16.msra.mxu0 0
        %869 = vmatprep.subr.bf16.mxu0 0
        %870 = vmatpush1.bf16.msra.mxu0 0
        %871 = vmatprep.subr.bf16.mxu0 0
        %872 = vmatpush1.bf16.msra.mxu0 0
        %873 = vmatprep.mubr.bf16.mxu0 0
        %874 = vmatmul.mubr.bf16.gmra.mrb[0].mxu0 %v839
        %v875 = vpop.f32.mrb[0].mxu0
        %v876 = vadd.f32 0.0, %v875
        %v877 = vpop.f32.mrb[0].mxu0
        %v878 = vpop.f32.mrb[0].mxu0
        %v879 = vadd.f32 0.0, %v878
        %v880 = vpop.f32.mrb[0].mxu0
        %881 = vdwg.mxu0
        %882 = vrot.lane.b32.xlu0 %v754, 112
        %v883 = vpop.permute.xlu0 %882
        %884 = vrot.lane.b32.xlu0 %v754, 80
        %v885 = vpop.permute.xlu0 %884
        %v887 = vsel %vm758, %v883, 0
        %v890 = vsel %vm758, %v885, 0
        %892 = vmatprep.subr.bf16.mxu0 0
        %893 = vmatpush1.bf16.xpose.msra.mxu0 %v890
        %894 = vmatprep.subr.bf16.mxu0 0
        %895 = vmatpush1.bf16.xpose.msra.mxu0 0
        %896 = vmatprep.subr.bf16.mxu0 0
        %897 = vmatpush1.bf16.xpose.msra.mxu0 0
        %898 = vmatprep.subr.bf16.mxu0 0
        %899 = vmatpush1.bf16.xpose.msra.mxu0 0
        %900 = vmatprep.subr.bf16.mxu0 0
        %901 = vmatpush1.bf16.xpose.msra.mxu0 0
        %902 = vmatprep.subr.bf16.mxu0 0
        %903 = vmatpush1.bf16.xpose.msra.mxu0 0
        %904 = vmatprep.subr.bf16.mxu0 0
        %905 = vmatpush1.bf16.xpose.msra.mxu0 0
        %906 = vmatprep.subr.bf16.mxu0 0
        %907 = vmatpush1.bf16.xpose.msra.mxu0 0
        %908 = vmatprep.subr.bf16.mxu0 0
        %909 = vmatpush1.bf16.xpose.msra.mxu0 0
        %910 = vmatprep.subr.bf16.mxu0 0
        %911 = vmatpush1.bf16.xpose.msra.mxu0 0
        %912 = vmatprep.subr.bf16.mxu0 0
        %913 = vmatpush1.bf16.xpose.msra.mxu0 0
        %914 = vmatprep.subr.bf16.mxu0 0
        %915 = vmatpush1.bf16.xpose.msra.mxu0 0
        %916 = vmatprep.subr.bf16.mxu0 0
        %917 = vmatpush1.bf16.xpose.msra.mxu0 0
        %918 = vmatprep.subr.bf16.mxu0 0
        %919 = vmatpush1.bf16.xpose.msra.mxu0 0
        %920 = vmatprep.subr.bf16.mxu0 0
        %921 = vmatpush1.bf16.xpose.msra.mxu0 0
        %922 = vmatprep.subr.bf16.mxu0 0
        %923 = vmatpush1.bf16.xpose.msra.mxu0 0
        %924 = vmatprep.mubr.bf16.mxu0 0
        %925 = vmatmul.mubr.bf16.gmra.mrb[0].mxu0 %v887
        %v926 = vpop.f32.mrb[0].mxu0
        %v927 = vadd.f32 0.0, %v926
        %v928 = vpop.f32.mrb[0].mxu0
        %v929 = vpop.f32.mrb[0].mxu0
        %v930 = vadd.f32 0.0, %v929
        %v931 = vpop.f32.mrb[0].mxu0
        %932 = vdwg.mxu0
        %v933 = vmul.f32 %v927, 0.25
        %v934 = vmul.f32 %v930, 0.25
        %v935 = vunpack.c.l.bf16 %v629
        %v936 = vunpack.c.l.bf16 %v630
        %v937 = vadd.f32 %v933, %v935
        %v938 = vadd.f32 %v934, %v936
        %v939 = vsel %vm758, %v937, -inf
        %940 = vmax.xlane.f32.xlu0 %v939
        %v941 = vpop.xlane.xlu0 %940
        %v942 = vsel %vm758, %v938, -inf
        %943 = vmax.xlane.f32.xlu0 %v942
        %v944 = vpop.xlane.xlu0 %943
        %v945 = vsub.f32 %v937, %v941
        %v946 = vsub.f32 %v938, %v944
        %v947 = vmul.f32 %v945, 1.442695
        %v948 = vpow.pop %v947
        %v949 = vmul.f32 %v946, 1.442695
        %v950 = vpow.pop %v949
        %v951 = vsel %vm758, %v948, 0.0
        %952 = vadd.xlane.f32.xlu0 %v951
        %v953 = vpop.xlane.xlu0 %952
        %v954 = vsel %vm758, %v950, 0.0
        %955 = vadd.xlane.f32.xlu0 %v954
        %v956 = vpop.xlane.xlu0 %955
        %v957 = vrcp.pop %v953
        %v958 = vrcp.pop %v956
        %v959 = vmul.f32 %v948, %v957
        %v960 = vmul.f32 %v950, %v958
        %v961 = vpack.c.bf16 %v960, %v959
        %962 = vrot.lane.b32.xlu0 %v754, 48
        %v963 = vpop.permute.xlu0 %962
        %v966 = vsel %vm758, %v961, 0
        %968 = vmatprep.subr.bf16.mxu0 0
        %969 = vmatpush1.bf16.msra.mxu0 %v963
        %970 = vmatprep.subr.bf16.mxu0 0
        %971 = vmatpush1.bf16.msra.mxu0 0
        %972 = vmatprep.subr.bf16.mxu0 0
        %973 = vmatpush1.bf16.msra.mxu0 0
        %974 = vmatprep.subr.bf16.mxu0 0
        %975 = vmatpush1.bf16.msra.mxu0 0
        %976 = vmatprep.subr.bf16.mxu0 0
        %977 = vmatpush1.bf16.msra.mxu0 0
        %978 = vmatprep.subr.bf16.mxu0 0
        %979 = vmatpush1.bf16.msra.mxu0 0
        %980 = vmatprep.subr.bf16.mxu0 0
        %981 = vmatpush1.bf16.msra.mxu0 0
        %982 = vmatprep.subr.bf16.mxu0 0
        %983 = vmatpush1.bf16.msra.mxu0 0
        %984 = vmatprep.subr.bf16.mxu0 0
        %985 = vmatpush1.bf16.msra.mxu0 0
        %986 = vmatprep.subr.bf16.mxu0 0
        %987 = vmatpush1.bf16.msra.mxu0 0
        %988 = vmatprep.subr.bf16.mxu0 0
        %989 = vmatpush1.bf16.msra.mxu0 0
        %990 = vmatprep.subr.bf16.mxu0 0
        %991 = vmatpush1.bf16.msra.mxu0 0
        %992 = vmatprep.subr.bf16.mxu0 0
        %993 = vmatpush1.bf16.msra.mxu0 0
        %994 = vmatprep.subr.bf16.mxu0 0
        %995 = vmatpush1.bf16.msra.mxu0 0
        %996 = vmatprep.subr.bf16.mxu0 0
        %997 = vmatpush1.bf16.msra.mxu0 0
        %998 = vmatprep.subr.bf16.mxu0 0
        %999 = vmatpush1.bf16.msra.mxu0 0
        %1000 = vmatprep.mubr.bf16.mxu0 0
        %1001 = vmatmul.mubr.bf16.gmra.mrb[0].mxu0 %v966
        %v1002 = vpop.f32.mrb[0].mxu0
        %v1003 = vadd.f32 0.0, %v1002
        %v1004 = vpop.f32.mrb[0].mxu0
        %v1005 = vpop.f32.mrb[0].mxu0
        %v1006 = vadd.f32 0.0, %v1005
        %v1007 = vpop.f32.mrb[0].mxu0
        %1008 = vdwg.mxu0
        %1011 = vrot.lane.b32.xlu0 %v1003, 16
        %v1012 = vpop.permute.xlu0 %1011
        %1013 = vrot.lane.b32.xlu0 %v1006, 16
        %v1014 = vpop.permute.xlu0 %1013
        %v1017 = vsel %vm758, %v876, %v1012
        %v1018 = vsel %vm758, %v879, %v1014
        %v1019 = vpack.c.bf16 %v1018, %v1017
        %v1024 = vunpack.c.l.b16 %v635
        %v1025 = vunpack.c.l.b16 %v636
        %v1026 = vunpack.c.l.b16 %v637
        %v1027 = vunpack.c.l.b16 %v638
        %v1028 = vpack.c.b16 %v1025, %v1024
        %v1029 = vpack.c.b16 %v1027, %v1026
        %v1033 = vsel %vm595, %v1019, 0
        %1035 = vmatprep.subr.bf16.mxu0 0
        %1036 = vmatpush1.bf16.msra.mxu0 %v1028
        %1037 = vmatprep.subr.bf16.mxu0 0
        %1038 = vmatpush1.bf16.msra.mxu0 %v1029
        %1039 = vmatprep.subr.bf16.mxu0 0
        %1040 = vmatpush1.bf16.msra.mxu0 0
        %1041 = vmatprep.subr.bf16.mxu0 0
        %1042 = vmatpush1.bf16.msra.mxu0 0
        %1043 = vmatprep.subr.bf16.mxu0 0
        %1044 = vmatpush1.bf16.msra.mxu0 0
        %1045 = vmatprep.subr.bf16.mxu0 0
        %1046 = vmatpush1.bf16.msra.mxu0 0
        %1047 = vmatprep.subr.bf16.mxu0 0
        %1048 = vmatpush1.bf16.msra.mxu0 0
        %1049 = vmatprep.subr.bf16.mxu0 0
        %1050 = vmatpush1.bf16.msra.mxu0 0
        %1051 = vmatprep.subr.bf16.mxu0 0
        %1052 = vmatpush1.bf16.msra.mxu0 0
        %1053 = vmatprep.subr.bf16.mxu0 0
        %1054 = vmatpush1.bf16.msra.mxu0 0
        %1055 = vmatprep.subr.bf16.mxu0 0
        %1056 = vmatpush1.bf16.msra.mxu0 0
        %1057 = vmatprep.subr.bf16.mxu0 0
        %1058 = vmatpush1.bf16.msra.mxu0 0
        %1059 = vmatprep.subr.bf16.mxu0 0
        %1060 = vmatpush1.bf16.msra.mxu0 0
        %1061 = vmatprep.subr.bf16.mxu0 0
        %1062 = vmatpush1.bf16.msra.mxu0 0
        %1063 = vmatprep.subr.bf16.mxu0 0
        %1064 = vmatpush1.bf16.msra.mxu0 0
        %1065 = vmatprep.subr.bf16.mxu0 0
        %1066 = vmatpush1.bf16.msra.mxu0 0
        %1067 = vmatprep.mubr.bf16.mxu0 0
        %1068 = vmatmul.mubr.bf16.gmra.mrb[0].mxu0 %v1033
        %v1069 = vpop.f32.mrb[0].mxu0
        %v1070 = vadd.f32 0.0, %v1069
        %v1071 = vpop.f32.mrb[0].mxu0
        %v1072 = vpop.f32.mrb[0].mxu0
        %v1073 = vadd.f32 0.0, %v1072
        %v1074 = vpop.f32.mrb[0].mxu0
        %1075 = vdwg.mxu0
        %v1076 = vadd.f32 %v625, %v1070
        %v1077 = vadd.f32 %v626, %v1073
        %v1078 = vadd.f32 %v1076, %v662
        %v1079 = vadd.f32 %v1077, %v662
        %v1080 = vsel %vm595, %v1078, 0.0
        %1081 = vadd.xlane.f32.xlu0 %v1080
        %v1082 = vpop.xlane.xlu0 %1081
        %v1083 = vsel %vm595, %v1079, 0.0
        %1084 = vadd.xlane.f32.xlu0 %v1083
        %v1085 = vpop.xlane.xlu0 %1084
        %v1086 = vmul.f32 %v1082, %v602
        %v1087 = vmul.f32 %v1085, %v602
        %v1088 = vsub.f32 %v1078, %v1086
        %v1089 = vsub.f32 %v1079, %v1087
        %v1090 = vmul.f32 %v1088, %v1088
        %v1091 = vmul.f32 %v1089, %v1089
        %v1092 = vsel %vm595, %v1090, 0.0
        %1093 = vadd.xlane.f32.xlu0 %v1092
        %v1094 = vpop.xlane.xlu0 %1093
        %v1095 = vsel %vm595, %v1091, 0.0
        %1096 = vadd.xlane.f32.xlu0 %v1095
        %v1097 = vpop.xlane.xlu0 %1096
        %v1098 = vmul.f32 %v1094, %v602
        %v1099 = vmul.f32 %v1097, %v602
        %v1100 = vadd.f32 %v1098, 1e-05
        %v1101 = vadd.f32 %v1099, 1e-05
        %v1102 = vrsqrt.pop %v1100
        %v1103 = vrsqrt.pop %v1101
        %v1104 = vmul.f32 %v1088, %v1102
        %v1105 = vmul.f32 %v1089, %v1103
        %v1106 = vmul.f32 %v1104, %v663
        %v1107 = vmul.f32 %v1105, %v663
        %v1108 = vadd.f32 %v1106, %v664
        %v1109 = vadd.f32 %v1107, %v664
        %v1110 = vpack.c.bf16 %v1109, %v1108
        %v1115 = vunpack.c.l.b16 %v639
        %v1116 = vunpack.c.l.b16 %v640
        %v1117 = vunpack.c.l.b16 %v641
        %v1118 = vunpack.c.l.b16 %v642
        %v1119 = vpack.c.b16 %v1116, %v1115
        %v1120 = vpack.c.b16 %v1118, %v1117
        %v1124 = vsel %vm595, %v1110, 0
        %1126 = vmatprep.subr.bf16.mxu0 0
        %1127 = vmatpush1.bf16.msra.mxu0 %v1119
        %1128 = vmatprep.subr.bf16.mxu0 0
        %1129 = vmatpush1.bf16.msra.mxu0 %v1120
        %1130 = vmatprep.subr.bf16.mxu0 0
        %1131 = vmatpush1.bf16.msra.mxu0 0
        %1132 = vmatprep.subr.bf16.mxu0 0
        %1133 = vmatpush1.bf16.msra.mxu0 0
        %1134 = vmatprep.subr.bf16.mxu0 0
        %1135 = vmatpush1.bf16.msra.mxu0 0
        %1136 = vmatprep.subr.bf16.mxu0 0
        %1137 = vmatpush1.bf16.msra.mxu0 0
        %1138 = vmatprep.subr.bf16.mxu0 0
        %1139 = vmatpush1.bf16.msra.mxu0 0
        %1140 = vmatprep.subr.bf16.mxu0 0
        %1141 = vmatpush1.bf16.msra.mxu0 0
        %1142 = vmatprep.subr.bf16.mxu0 0
        %1143 = vmatpush1.bf16.msra.mxu0 0
        %1144 = vmatprep.subr.bf16.mxu0 0
        %1145 = vmatpush1.bf16.msra.mxu0 0
        %1146 = vmatprep.subr.bf16.mxu0 0
        %1147 = vmatpush1.bf16.msra.mxu0 0
        %1148 = vmatprep.subr.bf16.mxu0 0
        %1149 = vmatpush1.bf16.msra.mxu0 0
        %1150 = vmatprep.subr.bf16.mxu0 0
        %1151 = vmatpush1.bf16.msra.mxu0 0
        %1152 = vmatprep.subr.bf16.mxu0 0
        %1153 = vmatpush1.bf16.msra.mxu0 0
        %1154 = vmatprep.subr.bf16.mxu0 0
        %1155 = vmatpush1.bf16.msra.mxu0 0
        %1156 = vmatprep.subr.bf16.mxu0 0
        %1157 = vmatpush1.bf16.msra.mxu0 0
        %1158 = vmatprep.mubr.bf16.mxu0 0
        %1159 = vmatmul.mubr.bf16.gmra.mrb[0].mxu0 %v1124
        %v1160 = vpop.f32.mrb[0].mxu0
        %v1161 = vadd.f32 %v665, %v1160
        %v1162 = vpop.f32.mrb[0].mxu0
        %v1163 = vpop.f32.mrb[0].mxu0
        %v1164 = vadd.f32 %v665, %v1163
        %v1165 = vpop.f32.mrb[0].mxu0
        %1166 = vdwg.mxu0
        %v1167 = vmul.f32 %v1161, 0.5
        %v1168 = vmul.f32 %v1164, 0.5
        %v1169 = vmul.f32 %v1161, 0.70710677
        %v1170 = vmul.f32 %v1164, 0.70710677
        %v1171 = verf.f32.pop %v1169
        %v1172 = verf.f32.pop %v1170
        %v1173 = vadd.f32 %v1171, 1.0
        %v1174 = vadd.f32 %v1172, 1.0
        %v1175 = vmul.f32 %v1167, %v1173
        %v1176 = vmul.f32 %v1168, %v1174
        %v1177 = vpack.c.bf16 %v1176, %v1175
        %v1194 = vunpack.c.l.b16 %v643
        %v1195 = vunpack.c.l.b16 %v644
        %v1196 = vunpack.c.l.b16 %v645
        %v1197 = vunpack.c.l.b16 %v646
        %v1198 = vunpack.c.l.b16 %v647
        %v1199 = vunpack.c.l.b16 %v648
        %v1200 = vunpack.c.l.b16 %v649
        %v1201 = vunpack.c.l.b16 %v650
        %v1202 = vunpack.c.l.b16 %v651
        %v1203 = vunpack.c.l.b16 %v652
        %v1204 = vunpack.c.l.b16 %v653
        %v1205 = vunpack.c.l.b16 %v654
        %v1206 = vunpack.c.l.b16 %v655
        %v1207 = vunpack.c.l.b16 %v656
        %v1208 = vunpack.c.l.b16 %v657
        %v1209 = vunpack.c.l.b16 %v658
        %v1210 = vpack.c.b16 %v1195, %v1194
        %v1211 = vpack.c.b16 %v1197, %v1196
        %v1212 = vpack.c.b16 %v1199, %v1198
        %v1213 = vpack.c.b16 %v1201, %v1200
        %v1214 = vpack.c.b16 %v1203, %v1202
        %v1215 = vpack.c.b16 %v1205, %v1204
        %v1216 = vpack.c.b16 %v1207, %v1206
        %v1217 = vpack.c.b16 %v1209, %v1208
        %1226 = vmatprep.subr.bf16.mxu0 0
        %1227 = vmatpush1.bf16.msra.mxu0 %v1210
        %1228 = vmatprep.subr.bf16.mxu0 0
        %1229 = vmatpush1.bf16.msra.mxu0 %v1211
        %1230 = vmatprep.subr.bf16.mxu0 0
        %1231 = vmatpush1.bf16.msra.mxu0 %v1212
        %1232 = vmatprep.subr.bf16.mxu0 0
        %1233 = vmatpush1.bf16.msra.mxu0 %v1213
        %1234 = vmatprep.subr.bf16.mxu0 0
        %1235 = vmatpush1.bf16.msra.mxu0 %v1214
        %1236 = vmatprep.subr.bf16.mxu0 0
        %1237 = vmatpush1.bf16.msra.mxu0 %v1215
        %1238 = vmatprep.subr.bf16.mxu0 0
        %1239 = vmatpush1.bf16.msra.mxu0 %v1216
        %1240 = vmatprep.subr.bf16.mxu0 0
        %1241 = vmatpush1.bf16.msra.mxu0 %v1217
        %1242 = vmatprep.subr.bf16.mxu0 0
        %1243 = vmatpush1.bf16.msra.mxu0 0
        %1244 = vmatprep.subr.bf16.mxu0 0
        %1245 = vmatpush1.bf16.msra.mxu0 0
        %1246 = vmatprep.subr.bf16.mxu0 0
        %1247 = vmatpush1.bf16.msra.mxu0 0
        %1248 = vmatprep.subr.bf16.mxu0 0
        %1249 = vmatpush1.bf16.msra.mxu0 0
        %1250 = vmatprep.subr.bf16.mxu0 0
        %1251 = vmatpush1.bf16.msra.mxu0 0
        %1252 = vmatprep.subr.bf16.mxu0 0
        %1253 = vmatpush1.bf16.msra.mxu0 0
        %1254 = vmatprep.subr.bf16.mxu0 0
        %1255 = vmatpush1.bf16.msra.mxu0 0
        %1256 = vmatprep.subr.bf16.mxu0 0
        %1257 = vmatpush1.bf16.msra.mxu0 0
        %1258 = vmatprep.mubr.bf16.mxu0 0
        %1259 = vmatmul.mubr.bf16.gmra.mrb[0].mxu0 %v1177
        %v1260 = vpop.f32.mrb[0].mxu0
        %v1261 = vadd.f32 %v666, %v1260
        %v1262 = vpop.f32.mrb[0].mxu0
        %v1263 = vpop.f32.mrb[0].mxu0
        %v1264 = vadd.f32 %v666, %v1263
        %v1265 = vpop.f32.mrb[0].mxu0
        %1266 = vdwg.mxu0
        %v1267 = vadd.f32 %v1078, %v1261
        %v1268 = vadd.f32 %v1079, %v1264
        %s1269 = scalar_lea.vmem %s2, 16
        %v1270 = vld [vmem:[%s1269] sm:$0xf]
        %v1271 = vld [vmem:[%s1269 + $0x4] sm:$0xf]
        %v1272 = vld [vmem:[%s1269 + $0x8] sm:$0xf]
        %v1273 = vld [vmem:[%s1269 + $0xc] sm:$0xf]
        %s1274 = scalar_lea.vmem %s5, 16
        %v1275 = vld [vmem:[%s1274] sm:$0xf]
        %v1276 = vld [vmem:[%s1274 + $0x4] sm:$0xf]
        %v1277 = vld [vmem:[%s1274 + $0x8] sm:$0xf]
        %v1278 = vld [vmem:[%s1274 + $0xc] sm:$0xf]
        %s1279 = scalar_lea.vmem %s6, 16
        %v1280 = vld [vmem:[%s1279] sm:$0xf]
        %v1281 = vld [vmem:[%s1279 + $0x4] sm:$0xf]
        %v1282 = vld [vmem:[%s1279 + $0x8] sm:$0xf]
        %v1283 = vld [vmem:[%s1279 + $0xc] sm:$0xf]
        %s1284 = scalar_lea.vmem %s7, 16
        %v1285 = vld [vmem:[%s1284] sm:$0xf]
        %v1286 = vld [vmem:[%s1284 + $0x4] sm:$0xf]
        %v1287 = vld [vmem:[%s1284 + $0x8] sm:$0xf]
        %v1288 = vld [vmem:[%s1284 + $0xc] sm:$0xf]
        %s1289 = scalar_lea.vmem %s8, 64
        %v1290 = vld [vmem:[%s1289] sm:$0xf]
        %v1291 = vld [vmem:[%s1289 + $0x4] sm:$0xf]
        %v1292 = vld [vmem:[%s1289 + $0x8] sm:$0xf]
        %v1293 = vld [vmem:[%s1289 + $0xc] sm:$0xf]
        %v1294 = vld [vmem:[%s1289 + $0x10] sm:$0xf]
        %v1295 = vld [vmem:[%s1289 + $0x14] sm:$0xf]
        %v1296 = vld [vmem:[%s1289 + $0x18] sm:$0xf]
        %v1297 = vld [vmem:[%s1289 + $0x1c] sm:$0xf]
        %v1298 = vld [vmem:[%s1289 + $0x20] sm:$0xf]
        %v1299 = vld [vmem:[%s1289 + $0x24] sm:$0xf]
        %v1300 = vld [vmem:[%s1289 + $0x28] sm:$0xf]
        %v1301 = vld [vmem:[%s1289 + $0x2c] sm:$0xf]
        %v1302 = vld [vmem:[%s1289 + $0x30] sm:$0xf]
        %v1303 = vld [vmem:[%s1289 + $0x34] sm:$0xf]
        %v1304 = vld [vmem:[%s1289 + $0x38] sm:$0xf]
        %v1305 = vld [vmem:[%s1289 + $0x3c] sm:$0xf]
        %v1306 = vld [vmem:[%s1 + $0x13] ss:$0 sm:$0xff]
        %v1307 = vld [vmem:[%s1 + $0x14] ss:$0 sm:$0xff]
        %v1308 = vld [vmem:[%s1 + $0x15] ss:$0 sm:$0xff]
        %v1309 = vld [vmem:[%s1 + $0x16] ss:$0 sm:$0xff]
        %v1310 = vld [vmem:[%s1 + $0x17] ss:$0 sm:$0xff]
        %v1311 = vld [vmem:[%s1 + $0x20] ss:$0 sm:$0xff]
        %v1312 = vld [vmem:[%s1 + $0x21] ss:$0 sm:$0xff]
        %v1313 = vld [vmem:[%s1 + $0x22] ss:$0 sm:$0xff]
        %v1314 = vsel %vm595, %v1267, 0.0
        %1315 = vadd.xlane.f32.xlu0 %v1314
        %v1316 = vpop.xlane.xlu0 %1315
        %v1317 = vsel %vm595, %v1268, 0.0
        %1318 = vadd.xlane.f32.xlu0 %v1317
        %v1319 = vpop.xlane.xlu0 %1318
        %v1320 = vmul.f32 %v1316, %v602
        %v1321 = vmul.f32 %v1319, %v602
        %v1322 = vsub.f32 %v1267, %v1320
        %v1323 = vsub.f32 %v1268, %v1321
        %v1324 = vmul.f32 %v1322, %v1322
        %v1325 = vmul.f32 %v1323, %v1323
        %v1326 = vsel %vm595, %v1324, 0.0
        %1327 = vadd.xlane.f32.xlu0 %v1326
        %v1328 = vpop.xlane.xlu0 %1327
        %v1329 = vsel %vm595, %v1325, 0.0
        %1330 = vadd.xlane.f32.xlu0 %v1329
        %v1331 = vpop.xlane.xlu0 %1330
        %v1332 = vmul.f32 %v1328, %v602
        %v1333 = vmul.f32 %v1331, %v602
        %v1334 = vadd.f32 %v1332, 1e-05
        %v1335 = vadd.f32 %v1333, 1e-05
        %v1336 = vrsqrt.pop %v1334
        %v1337 = vrsqrt.pop %v1335
        %v1338 = vmul.f32 %v1322, %v1336
        %v1339 = vmul.f32 %v1323, %v1337
        %v1340 = vmul.f32 %v1338, %v1306
        %v1341 = vmul.f32 %v1339, %v1306
        %v1342 = vadd.f32 %v1340, %v1307
        %v1343 = vadd.f32 %v1341, %v1307
        %v1344 = vpack.c.bf16 %v1343, %v1342
        %v1349 = vunpack.c.l.b16 %v1275
        %v1350 = vunpack.c.l.b16 %v1276
        %v1351 = vunpack.c.l.b16 %v1277
        %v1352 = vunpack.c.l.b16 %v1278
        %v1353 = vpack.c.b16 %v1350, %v1349
        %v1354 = vpack.c.b16 %v1352, %v1351
        %v1358 = vsel %vm595, %v1344, 0
        %1360 = vmatprep.subr.bf16.mxu0 0
        %1361 = vmatpush1.bf16.msra.mxu0 %v1353
        %1362 = vmatprep.subr.bf16.mxu0 0
        %1363 = vmatpush1.bf16.msra.mxu0 %v1354
        %1364 = vmatprep.subr.bf16.mxu0 0
        %1365 = vmatpush1.bf16.msra.mxu0 0
        %1366 = vmatprep.subr.bf16.mxu0 0
        %1367 = vmatpush1.bf16.msra.mxu0 0
        %1368 = vmatprep.subr.bf16.mxu0 0
        %1369 = vmatpush1.bf16.msra.mxu0 0
        %1370 = vmatprep.subr.bf16.mxu0 0
        %1371 = vmatpush1.bf16.msra.mxu0 0
        %1372 = vmatprep.subr.bf16.mxu0 0
        %1373 = vmatpush1.bf16.msra.mxu0 0
        %1374 = vmatprep.subr.bf16.mxu0 0
        %1375 = vmatpush1.bf16.msra.mxu0 0
        %1376 = vmatprep.subr.bf16.mxu0 0
        %1377 = vmatpush1.bf16.msra.mxu0 0
        %1378 = vmatprep.subr.bf16.mxu0 0
        %1379 = vmatpush1.bf16.msra.mxu0 0
        %1380 = vmatprep.subr.bf16.mxu0 0
        %1381 = vmatpush1.bf16.msra.mxu0 0
        %1382 = vmatprep.subr.bf16.mxu0 0
        %1383 = vmatpush1.bf16.msra.mxu0 0
        %1384 = vmatprep.subr.bf16.mxu0 0
        %1385 = vmatpush1.bf16.msra.mxu0 0
        %1386 = vmatprep.subr.bf16.mxu0 0
        %1387 = vmatpush1.bf16.msra.mxu0 0
        %1388 = vmatprep.subr.bf16.mxu0 0
        %1389 = vmatpush1.bf16.msra.mxu0 0
        %1390 = vmatprep.subr.bf16.mxu0 0
        %1391 = vmatpush1.bf16.msra.mxu0 0
        %1392 = vmatprep.mubr.bf16.mxu0 0
        %1393 = vmatmul.mubr.bf16.gmra.mrb[0].mxu0 %v1358
        %v1394 = vpop.f32.mrb[0].mxu0
        %v1395 = vadd.f32 %v1308, %v1394
        %v1396 = vpop.f32.mrb[0].mxu0
        %v1397 = vpop.f32.mrb[0].mxu0
        %v1398 = vadd.f32 %v1308, %v1397
        %v1399 = vpop.f32.mrb[0].mxu0
        %1400 = vdwg.mxu0
        %v1401 = vpack.c.bf16 %v1398, %v1395
        %1403 = vrot.lane.b32.xlu0 %v1401, 96
        %v1404 = vpop.permute.xlu0 %1403
        %v1406 = vsel %vm758, %v1401, 0
        %v1409 = vsel %vm758, %v1404, 0
        %1411 = vmatprep.subr.bf16.mxu0 0
        %1412 = vmatpush1.bf16.xpose.msra.mxu0 %v1409
        %1413 = vmatprep.subr.bf16.mxu0 0
        %1414 = vmatpush1.bf16.xpose.msra.mxu0 0
        %1415 = vmatprep.subr.bf16.mxu0 0
        %1416 = vmatpush1.bf16.xpose.msra.mxu0 0
        %1417 = vmatprep.subr.bf16.mxu0 0
        %1418 = vmatpush1.bf16.xpose.msra.mxu0 0
        %1419 = vmatprep.subr.bf16.mxu0 0
        %1420 = vmatpush1.bf16.xpose.msra.mxu0 0
        %1421 = vmatprep.subr.bf16.mxu0 0
        %1422 = vmatpush1.bf16.xpose.msra.mxu0 0
        %1423 = vmatprep.subr.bf16.mxu0 0
        %1424 = vmatpush1.bf16.xpose.msra.mxu0 0
        %1425 = vmatprep.subr.bf16.mxu0 0
        %1426 = vmatpush1.bf16.xpose.msra.mxu0 0
        %1427 = vmatprep.subr.bf16.mxu0 0
        %1428 = vmatpush1.bf16.xpose.msra.mxu0 0
        %1429 = vmatprep.subr.bf16.mxu0 0
        %1430 = vmatpush1.bf16.xpose.msra.mxu0 0
        %1431 = vmatprep.subr.bf16.mxu0 0
        %1432 = vmatpush1.bf16.xpose.msra.mxu0 0
        %1433 = vmatprep.subr.bf16.mxu0 0
        %1434 = vmatpush1.bf16.xpose.msra.mxu0 0
        %1435 = vmatprep.subr.bf16.mxu0 0
        %1436 = vmatpush1.bf16.xpose.msra.mxu0 0
        %1437 = vmatprep.subr.bf16.mxu0 0
        %1438 = vmatpush1.bf16.xpose.msra.mxu0 0
        %1439 = vmatprep.subr.bf16.mxu0 0
        %1440 = vmatpush1.bf16.xpose.msra.mxu0 0
        %1441 = vmatprep.subr.bf16.mxu0 0
        %1442 = vmatpush1.bf16.xpose.msra.mxu0 0
        %1443 = vmatprep.mubr.bf16.mxu0 0
        %1444 = vmatmul.mubr.bf16.gmra.mrb[0].mxu0 %v1406
        %v1445 = vpop.f32.mrb[0].mxu0
        %v1446 = vadd.f32 0.0, %v1445
        %v1447 = vpop.f32.mrb[0].mxu0
        %v1448 = vpop.f32.mrb[0].mxu0
        %v1449 = vadd.f32 0.0, %v1448
        %v1450 = vpop.f32.mrb[0].mxu0
        %1451 = vdwg.mxu0
        %v1452 = vmul.f32 %v1446, 0.25
        %v1453 = vmul.f32 %v1449, 0.25
        %v1454 = vunpack.c.l.bf16 %v1270
        %v1455 = vunpack.c.l.bf16 %v1271
        %v1456 = vadd.f32 %v1452, %v1454
        %v1457 = vadd.f32 %v1453, %v1455
        %v1458 = vsel %vm758, %v1456, -inf
        %1459 = vmax.xlane.f32.xlu0 %v1458
        %v1460 = vpop.xlane.xlu0 %1459
        %v1461 = vsel %vm758, %v1457, -inf
        %1462 = vmax.xlane.f32.xlu0 %v1461
        %v1463 = vpop.xlane.xlu0 %1462
        %v1464 = vsub.f32 %v1456, %v1460
        %v1465 = vsub.f32 %v1457, %v1463
        %v1466 = vmul.f32 %v1464, 1.442695
        %v1467 = vpow.pop %v1466
        %v1468 = vmul.f32 %v1465, 1.442695
        %v1469 = vpow.pop %v1468
        %v1470 = vsel %vm758, %v1467, 0.0
        %1471 = vadd.xlane.f32.xlu0 %v1470
        %v1472 = vpop.xlane.xlu0 %1471
        %v1473 = vsel %vm758, %v1469, 0.0
        %1474 = vadd.xlane.f32.xlu0 %v1473
        %v1475 = vpop.xlane.xlu0 %1474
        %v1476 = vrcp.pop %v1472
        %v1477 = vrcp.pop %v1475
        %v1478 = vmul.f32 %v1467, %v1476
        %v1479 = vmul.f32 %v1469, %v1477
        %v1480 = vpack.c.bf16 %v1479, %v1478
        %1481 = vrot.lane.b32.xlu0 %v1401, 64
        %v1482 = vpop.permute.xlu0 %1481
        %v1485 = vsel %vm758, %v1480, 0
        %1487 = vmatprep.subr.bf16.mxu0 0
        %1488 = vmatpush1.bf16.msra.mxu0 %v1482
        %1489 = vmatprep.subr.bf16.mxu0 0
        %1490 = vmatpush1.bf16.msra.mxu0 0
        %1491 = vmatprep.subr.bf16.mxu0 0
        %1492 = vmatpush1.bf16.msra.mxu0 0
        %1493 = vmatprep.subr.bf16.mxu0 0
        %1494 = vmatpush1.bf16.msra.mxu0 0
        %1495 = vmatprep.subr.bf16.mxu0 0
        %1496 = vmatpush1.bf16.msra.mxu0 0
        %1497 = vmatprep.subr.bf16.mxu0 0
        %1498 = vmatpush1.bf16.msra.mxu0 0
        %1499 = vmatprep.subr.bf16.mxu0 0
        %1500 = vmatpush1.bf16.msra.mxu0 0
        %1501 = vmatprep.subr.bf16.mxu0 0
        %1502 = vmatpush1.bf16.msra.mxu0 0
        %1503 = vmatprep.subr.bf16.mxu0 0
        %1504 = vmatpush1.bf16.msra.mxu0 0
        %1505 = vmatprep.subr.bf16.mxu0 0
        %1506 = vmatpush1.bf16.msra.mxu0 0
        %1507 = vmatprep.subr.bf16.mxu0 0
        %1508 = vmatpush1.bf16.msra.mxu0 0
        %1509 = vmatprep.subr.bf16.mxu0 0
        %1510 = vmatpush1.bf16.msra.mxu0 0
        %1511 = vmatprep.subr.bf16.mxu0 0
        %1512 = vmatpush1.bf16.msra.mxu0 0
        %1513 = vmatprep.subr.bf16.mxu0 0
        %1514 = vmatpush1.bf16.msra.mxu0 0
        %1515 = vmatprep.subr.bf16.mxu0 0
        %1516 = vmatpush1.bf16.msra.mxu0 0
        %1517 = vmatprep.subr.bf16.mxu0 0
        %1518 = vmatpush1.bf16.msra.mxu0 0
        %1519 = vmatprep.mubr.bf16.mxu0 0
        %1520 = vmatmul.mubr.bf16.gmra.mrb[0].mxu0 %v1485
        %v1521 = vpop.f32.mrb[0].mxu0
        %v1522 = vadd.f32 0.0, %v1521
        %v1523 = vpop.f32.mrb[0].mxu0
        %v1524 = vpop.f32.mrb[0].mxu0
        %v1525 = vadd.f32 0.0, %v1524
        %v1526 = vpop.f32.mrb[0].mxu0
        %1527 = vdwg.mxu0
        %1528 = vrot.lane.b32.xlu0 %v1401, 112
        %v1529 = vpop.permute.xlu0 %1528
        %1530 = vrot.lane.b32.xlu0 %v1401, 80
        %v1531 = vpop.permute.xlu0 %1530
        %v1533 = vsel %vm758, %v1529, 0
        %v1536 = vsel %vm758, %v1531, 0
        %1538 = vmatprep.subr.bf16.mxu0 0
        %1539 = vmatpush1.bf16.xpose.msra.mxu0 %v1536
        %1540 = vmatprep.subr.bf16.mxu0 0
        %1541 = vmatpush1.bf16.xpose.msra.mxu0 0
        %1542 = vmatprep.subr.bf16.mxu0 0
        %1543 = vmatpush1.bf16.xpose.msra.mxu0 0
        %1544 = vmatprep.subr.bf16.mxu0 0
        %1545 = vmatpush1.bf16.xpose.msra.mxu0 0
        %1546 = vmatprep.subr.bf16.mxu0 0
        %1547 = vmatpush1.bf16.xpose.msra.mxu0 0
        %1548 = vmatprep.subr.bf16.mxu0 0
        %1549 = vmatpush1.bf16.xpose.msra.mxu0 0
        %1550 = vmatprep.subr.bf16.mxu0 0
        %1551 = vmatpush1.bf16.xpose.msra.mxu0 0
        %1552 = vmatprep.subr.bf16.mxu0 0
        %1553 = vmatpush1.bf16.xpose.msra.mxu0 0
        %1554 = vmatprep.subr.bf16.mxu0 0
        %1555 = vmatpush1.bf16.xpose.msra.mxu0 0
        %1556 = vmatprep.subr.bf16.mxu0 0
        %1557 = vmatpush1.bf16.xpose.msra.mxu0 0
        %1558 = vmatprep.subr.bf16.mxu0 0
        %1559 = vmatpush1.bf16.xpose.msra.mxu0 0
        %1560 = vmatprep.subr.bf16.mxu0 0
        %1561 = vmatpush1.bf16.xpose.msra.mxu0 0
        %1562 = vmatprep.subr.bf16.mxu0 0
        %1563 = vmatpush1.bf16.xpose.msra.mxu0 0
        %1564 = vmatprep.subr.bf16.mxu0 0
        %1565 = vmatpush1.bf16.xpose.msra.mxu0 0
        %1566 = vmatprep.subr.bf16.mxu0 0
        %1567 = vmatpush1.bf16.xpose.msra.mxu0 0
        %1568 = vmatprep.subr.bf16.mxu0 0
        %1569 = vmatpush1.bf16.xpose.msra.mxu0 0
        %1570 = vmatprep.mubr.bf16.mxu0 0
        %1571 = vmatmul.mubr.bf16.gmra.mrb[0].mxu0 %v1533
        %v1572 = vpop.f32.mrb[0].mxu0
        %v1573 = vadd.f32 0.0, %v1572
        %v1574 = vpop.f32.mrb[0].mxu0
        %v1575 = vpop.f32.mrb[0].mxu0
        %v1576 = vadd.f32 0.0, %v1575
        %v1577 = vpop.f32.mrb[0].mxu0
        %1578 = vdwg.mxu0
        %v1579 = vmul.f32 %v1573, 0.25
        %v1580 = vmul.f32 %v1576, 0.25
        %v1581 = vunpack.c.l.bf16 %v1272
        %v1582 = vunpack.c.l.bf16 %v1273
        %v1583 = vadd.f32 %v1579, %v1581
        %v1584 = vadd.f32 %v1580, %v1582
        %v1585 = vsel %vm758, %v1583, -inf
        %1586 = vmax.xlane.f32.xlu0 %v1585
        %v1587 = vpop.xlane.xlu0 %1586
        %v1588 = vsel %vm758, %v1584, -inf
        %1589 = vmax.xlane.f32.xlu0 %v1588
        %v1590 = vpop.xlane.xlu0 %1589
        %v1591 = vsub.f32 %v1583, %v1587
        %v1592 = vsub.f32 %v1584, %v1590
        %v1593 = vmul.f32 %v1591, 1.442695
        %v1594 = vpow.pop %v1593
        %v1595 = vmul.f32 %v1592, 1.442695
        %v1596 = vpow.pop %v1595
        %v1597 = vsel %vm758, %v1594, 0.0
        %1598 = vadd.xlane.f32.xlu0 %v1597
        %v1599 = vpop.xlane.xlu0 %1598
        %v1600 = vsel %vm758, %v1596, 0.0
        %1601 = vadd.xlane.f32.xlu0 %v1600
        %v1602 = vpop.xlane.xlu0 %1601
        %v1603 = vrcp.pop %v1599
        %v1604 = vrcp.pop %v1602
        %v1605 = vmul.f32 %v1594, %v1603
        %v1606 = vmul.f32 %v1596, %v1604
        %v1607 = vpack.c.bf16 %v1606, %v1605
        %1608 = vrot.lane.b32.xlu0 %v1401, 48
        %v1609 = vpop.permute.xlu0 %1608
        %v1612 = vsel %vm758, %v1607, 0
        %1614 = vmatprep.subr.bf16.mxu0 0
        %1615 = vmatpush1.bf16.msra.mxu0 %v1609
        %1616 = vmatprep.subr.bf16.mxu0 0
        %1617 = vmatpush1.bf16.msra.mxu0 0
        %1618 = vmatprep.subr.bf16.mxu0 0
        %1619 = vmatpush1.bf16.msra.mxu0 0
        %1620 = vmatprep.subr.bf16.mxu0 0
        %1621 = vmatpush1.bf16.msra.mxu0 0
        %1622 = vmatprep.subr.bf16.mxu0 0
        %1623 = vmatpush1.bf16.msra.mxu0 0
        %1624 = vmatprep.subr.bf16.mxu0 0
        %1625 = vmatpush1.bf16.msra.mxu0 0
        %1626 = vmatprep.subr.bf16.mxu0 0
        %1627 = vmatpush1.bf16.msra.mxu0 0
        %1628 = vmatprep.subr.bf16.mxu0 0
        %1629 = vmatpush1.bf16.msra.mxu0 0
        %1630 = vmatprep.subr.bf16.mxu0 0
        %1631 = vmatpush1.bf16.msra.mxu0 0
        %1632 = vmatprep.subr.bf16.mxu0 0
        %1633 = vmatpush1.bf16.msra.mxu0 0
        %1634 = vmatprep.subr.bf16.mxu0 0
        %1635 = vmatpush1.bf16.msra.mxu0 0
        %1636 = vmatprep.subr.bf16.mxu0 0
        %1637 = vmatpush1.bf16.msra.mxu0 0
        %1638 = vmatprep.subr.bf16.mxu0 0
        %1639 = vmatpush1.bf16.msra.mxu0 0
        %1640 = vmatprep.subr.bf16.mxu0 0
        %1641 = vmatpush1.bf16.msra.mxu0 0
        %1642 = vmatprep.subr.bf16.mxu0 0
        %1643 = vmatpush1.bf16.msra.mxu0 0
        %1644 = vmatprep.subr.bf16.mxu0 0
        %1645 = vmatpush1.bf16.msra.mxu0 0
        %1646 = vmatprep.mubr.bf16.mxu0 0
        %1647 = vmatmul.mubr.bf16.gmra.mrb[0].mxu0 %v1612
        %v1648 = vpop.f32.mrb[0].mxu0
        %v1649 = vadd.f32 0.0, %v1648
        %v1650 = vpop.f32.mrb[0].mxu0
        %v1651 = vpop.f32.mrb[0].mxu0
        %v1652 = vadd.f32 0.0, %v1651
        %v1653 = vpop.f32.mrb[0].mxu0
        %1654 = vdwg.mxu0
        %1657 = vrot.lane.b32.xlu0 %v1649, 16
        %v1658 = vpop.permute.xlu0 %1657
        %1659 = vrot.lane.b32.xlu0 %v1652, 16
        %v1660 = vpop.permute.xlu0 %1659
        %v1663 = vsel %vm758, %v1522, %v1658
        %v1664 = vsel %vm758, %v1525, %v1660
        %v1665 = vpack.c.bf16 %v1664, %v1663
        %v1670 = vunpack.c.l.b16 %v1280
        %v1671 = vunpack.c.l.b16 %v1281
        %v1672 = vunpack.c.l.b16 %v1282
        %v1673 = vunpack.c.l.b16 %v1283
        %v1674 = vpack.c.b16 %v1671, %v1670
        %v1675 = vpack.c.b16 %v1673, %v1672
        %v1679 = vsel %vm595, %v1665, 0
        %1681 = vmatprep.subr.bf16.mxu0 0
        %1682 = vmatpush1.bf16.msra.mxu0 %v1674
        %1683 = vmatprep.subr.bf16.mxu0 0
        %1684 = vmatpush1.bf16.msra.mxu0 %v1675
        %1685 = vmatprep.subr.bf16.mxu0 0
        %1686 = vmatpush1.bf16.msra.mxu0 0
        %1687 = vmatprep.subr.bf16.mxu0 0
        %1688 = vmatpush1.bf16.msra.mxu0 0
        %1689 = vmatprep.subr.bf16.mxu0 0
        %1690 = vmatpush1.bf16.msra.mxu0 0
        %1691 = vmatprep.subr.bf16.mxu0 0
        %1692 = vmatpush1.bf16.msra.mxu0 0
        %1693 = vmatprep.subr.bf16.mxu0 0
        %1694 = vmatpush1.bf16.msra.mxu0 0
        %1695 = vmatprep.subr.bf16.mxu0 0
        %1696 = vmatpush1.bf16.msra.mxu0 0
        %1697 = vmatprep.subr.bf16.mxu0 0
        %1698 = vmatpush1.bf16.msra.mxu0 0
        %1699 = vmatprep.subr.bf16.mxu0 0
        %1700 = vmatpush1.bf16.msra.mxu0 0
        %1701 = vmatprep.subr.bf16.mxu0 0
        %1702 = vmatpush1.bf16.msra.mxu0 0
        %1703 = vmatprep.subr.bf16.mxu0 0
        %1704 = vmatpush1.bf16.msra.mxu0 0
        %1705 = vmatprep.subr.bf16.mxu0 0
        %1706 = vmatpush1.bf16.msra.mxu0 0
        %1707 = vmatprep.subr.bf16.mxu0 0
        %1708 = vmatpush1.bf16.msra.mxu0 0
        %1709 = vmatprep.subr.bf16.mxu0 0
        %1710 = vmatpush1.bf16.msra.mxu0 0
        %1711 = vmatprep.subr.bf16.mxu0 0
        %1712 = vmatpush1.bf16.msra.mxu0 0
        %1713 = vmatprep.mubr.bf16.mxu0 0
        %1714 = vmatmul.mubr.bf16.gmra.mrb[0].mxu0 %v1679
        %v1715 = vpop.f32.mrb[0].mxu0
        %v1716 = vadd.f32 0.0, %v1715
        %v1717 = vpop.f32.mrb[0].mxu0
        %v1718 = vpop.f32.mrb[0].mxu0
        %v1719 = vadd.f32 0.0, %v1718
        %v1720 = vpop.f32.mrb[0].mxu0
        %1721 = vdwg.mxu0
        %v1722 = vadd.f32 %v1267, %v1716
        %v1723 = vadd.f32 %v1268, %v1719
        %v1724 = vadd.f32 %v1722, %v1309
        %v1725 = vadd.f32 %v1723, %v1309
        %v1726 = vsel %vm595, %v1724, 0.0
        %1727 = vadd.xlane.f32.xlu0 %v1726
        %v1728 = vpop.xlane.xlu0 %1727
        %v1729 = vsel %vm595, %v1725, 0.0
        %1730 = vadd.xlane.f32.xlu0 %v1729
        %v1731 = vpop.xlane.xlu0 %1730
        %v1732 = vmul.f32 %v1728, %v602
        %v1733 = vmul.f32 %v1731, %v602
        %v1734 = vsub.f32 %v1724, %v1732
        %v1735 = vsub.f32 %v1725, %v1733
        %v1736 = vmul.f32 %v1734, %v1734
        %v1737 = vmul.f32 %v1735, %v1735
        %v1738 = vsel %vm595, %v1736, 0.0
        %1739 = vadd.xlane.f32.xlu0 %v1738
        %v1740 = vpop.xlane.xlu0 %1739
        %v1741 = vsel %vm595, %v1737, 0.0
        %1742 = vadd.xlane.f32.xlu0 %v1741
        %v1743 = vpop.xlane.xlu0 %1742
        %v1744 = vmul.f32 %v1740, %v602
        %v1745 = vmul.f32 %v1743, %v602
        %v1746 = vadd.f32 %v1744, 1e-05
        %v1747 = vadd.f32 %v1745, 1e-05
        %v1748 = vrsqrt.pop %v1746
        %v1749 = vrsqrt.pop %v1747
        %v1750 = vmul.f32 %v1734, %v1748
        %v1751 = vmul.f32 %v1735, %v1749
        %v1752 = vmul.f32 %v1750, %v1310
        %v1753 = vmul.f32 %v1751, %v1310
        %v1754 = vadd.f32 %v1752, %v1311
        %v1755 = vadd.f32 %v1753, %v1311
        %v1756 = vpack.c.bf16 %v1755, %v1754
        %v1761 = vunpack.c.l.b16 %v1285
        %v1762 = vunpack.c.l.b16 %v1286
        %v1763 = vunpack.c.l.b16 %v1287
        %v1764 = vunpack.c.l.b16 %v1288
        %v1765 = vpack.c.b16 %v1762, %v1761
        %v1766 = vpack.c.b16 %v1764, %v1763
        %v1770 = vsel %vm595, %v1756, 0
        %1772 = vmatprep.subr.bf16.mxu0 0
        %1773 = vmatpush1.bf16.msra.mxu0 %v1765
        %1774 = vmatprep.subr.bf16.mxu0 0
        %1775 = vmatpush1.bf16.msra.mxu0 %v1766
        %1776 = vmatprep.subr.bf16.mxu0 0
        %1777 = vmatpush1.bf16.msra.mxu0 0
        %1778 = vmatprep.subr.bf16.mxu0 0
        %1779 = vmatpush1.bf16.msra.mxu0 0
        %1780 = vmatprep.subr.bf16.mxu0 0
        %1781 = vmatpush1.bf16.msra.mxu0 0
        %1782 = vmatprep.subr.bf16.mxu0 0
        %1783 = vmatpush1.bf16.msra.mxu0 0
        %1784 = vmatprep.subr.bf16.mxu0 0
        %1785 = vmatpush1.bf16.msra.mxu0 0
        %1786 = vmatprep.subr.bf16.mxu0 0
        %1787 = vmatpush1.bf16.msra.mxu0 0
        %1788 = vmatprep.subr.bf16.mxu0 0
        %1789 = vmatpush1.bf16.msra.mxu0 0
        %1790 = vmatprep.subr.bf16.mxu0 0
        %1791 = vmatpush1.bf16.msra.mxu0 0
        %1792 = vmatprep.subr.bf16.mxu0 0
        %1793 = vmatpush1.bf16.msra.mxu0 0
        %1794 = vmatprep.subr.bf16.mxu0 0
        %1795 = vmatpush1.bf16.msra.mxu0 0
        %1796 = vmatprep.subr.bf16.mxu0 0
        %1797 = vmatpush1.bf16.msra.mxu0 0
        %1798 = vmatprep.subr.bf16.mxu0 0
        %1799 = vmatpush1.bf16.msra.mxu0 0
        %1800 = vmatprep.subr.bf16.mxu0 0
        %1801 = vmatpush1.bf16.msra.mxu0 0
        %1802 = vmatprep.subr.bf16.mxu0 0
        %1803 = vmatpush1.bf16.msra.mxu0 0
        %1804 = vmatprep.mubr.bf16.mxu0 0
        %1805 = vmatmul.mubr.bf16.gmra.mrb[0].mxu0 %v1770
        %v1806 = vpop.f32.mrb[0].mxu0
        %v1807 = vadd.f32 %v1312, %v1806
        %v1808 = vpop.f32.mrb[0].mxu0
        %v1809 = vpop.f32.mrb[0].mxu0
        %v1810 = vadd.f32 %v1312, %v1809
        %v1811 = vpop.f32.mrb[0].mxu0
        %1812 = vdwg.mxu0
        %v1813 = vmul.f32 %v1807, 0.5
        %v1814 = vmul.f32 %v1810, 0.5
        %v1815 = vmul.f32 %v1807, 0.70710677
        %v1816 = vmul.f32 %v1810, 0.70710677
        %v1817 = verf.f32.pop %v1815
        %v1818 = verf.f32.pop %v1816
        %v1819 = vadd.f32 %v1817, 1.0
        %v1820 = vadd.f32 %v1818, 1.0
        %v1821 = vmul.f32 %v1813, %v1819
        %v1822 = vmul.f32 %v1814, %v1820
        %v1823 = vpack.c.bf16 %v1822, %v1821
        %v1840 = vunpack.c.l.b16 %v1290
        %v1841 = vunpack.c.l.b16 %v1291
        %v1842 = vunpack.c.l.b16 %v1292
        %v1843 = vunpack.c.l.b16 %v1293
        %v1844 = vunpack.c.l.b16 %v1294
        %v1845 = vunpack.c.l.b16 %v1295
        %v1846 = vunpack.c.l.b16 %v1296
        %v1847 = vunpack.c.l.b16 %v1297
        %v1848 = vunpack.c.l.b16 %v1298
        %v1849 = vunpack.c.l.b16 %v1299
        %v1850 = vunpack.c.l.b16 %v1300
        %v1851 = vunpack.c.l.b16 %v1301
        %v1852 = vunpack.c.l.b16 %v1302
        %v1853 = vunpack.c.l.b16 %v1303
        %v1854 = vunpack.c.l.b16 %v1304
        %v1855 = vunpack.c.l.b16 %v1305
        %v1856 = vpack.c.b16 %v1841, %v1840
        %v1857 = vpack.c.b16 %v1843, %v1842
        %v1858 = vpack.c.b16 %v1845, %v1844
        %v1859 = vpack.c.b16 %v1847, %v1846
        %v1860 = vpack.c.b16 %v1849, %v1848
        %v1861 = vpack.c.b16 %v1851, %v1850
        %v1862 = vpack.c.b16 %v1853, %v1852
        %v1863 = vpack.c.b16 %v1855, %v1854
        %1872 = vmatprep.subr.bf16.mxu0 0
        %1873 = vmatpush1.bf16.msra.mxu0 %v1856
        %1874 = vmatprep.subr.bf16.mxu0 0
        %1875 = vmatpush1.bf16.msra.mxu0 %v1857
        %1876 = vmatprep.subr.bf16.mxu0 0
        %1877 = vmatpush1.bf16.msra.mxu0 %v1858
        %1878 = vmatprep.subr.bf16.mxu0 0
        %1879 = vmatpush1.bf16.msra.mxu0 %v1859
        %1880 = vmatprep.subr.bf16.mxu0 0
        %1881 = vmatpush1.bf16.msra.mxu0 %v1860
        %1882 = vmatprep.subr.bf16.mxu0 0
        %1883 = vmatpush1.bf16.msra.mxu0 %v1861
        %1884 = vmatprep.subr.bf16.mxu0 0
        %1885 = vmatpush1.bf16.msra.mxu0 %v1862
        %1886 = vmatprep.subr.bf16.mxu0 0
        %1887 = vmatpush1.bf16.msra.mxu0 %v1863
        %1888 = vmatprep.subr.bf16.mxu0 0
        %1889 = vmatpush1.bf16.msra.mxu0 0
        %1890 = vmatprep.subr.bf16.mxu0 0
        %1891 = vmatpush1.bf16.msra.mxu0 0
        %1892 = vmatprep.subr.bf16.mxu0 0
        %1893 = vmatpush1.bf16.msra.mxu0 0
        %1894 = vmatprep.subr.bf16.mxu0 0
        %1895 = vmatpush1.bf16.msra.mxu0 0
        %1896 = vmatprep.subr.bf16.mxu0 0
        %1897 = vmatpush1.bf16.msra.mxu0 0
        %1898 = vmatprep.subr.bf16.mxu0 0
        %1899 = vmatpush1.bf16.msra.mxu0 0
        %1900 = vmatprep.subr.bf16.mxu0 0
        %1901 = vmatpush1.bf16.msra.mxu0 0
        %1902 = vmatprep.subr.bf16.mxu0 0
        %1903 = vmatpush1.bf16.msra.mxu0 0
        %1904 = vmatprep.mubr.bf16.mxu0 0
        %1905 = vmatmul.mubr.bf16.gmra.mrb[0].mxu0 %v1823
        %v1906 = vpop.f32.mrb[0].mxu0
        %v1907 = vadd.f32 %v1313, %v1906
        %v1908 = vpop.f32.mrb[0].mxu0
        %v1909 = vpop.f32.mrb[0].mxu0
        %v1910 = vadd.f32 %v1313, %v1909
        %v1911 = vpop.f32.mrb[0].mxu0
        %1912 = vdwg.mxu0
        %v1913 = vadd.f32 %v1724, %v1907
        %v1914 = vadd.f32 %v1725, %v1910
        %v1915 = vld [vmem:[%s9] sm:$0xf]
        %v1917 = vsel %vm758, %v1915, 0
        %1919 = vmatprep.subr.mxu0 0.0
        %1920 = vmatpush1.msra.mxu0 %v1913
        %1921 = vmatprep.subr.mxu0 0.0
        %1922 = vmatpush1.msra.mxu0 %v1914
        %1923 = vmatprep.subr.mxu0 0.0
        %1924 = vmatpush1.msra.mxu0 0.0
        %1925 = vmatprep.subr.mxu0 0.0
        %1926 = vmatpush1.msra.mxu0 0.0
        %1927 = vmatprep.subr.mxu0 0.0
        %1928 = vmatpush1.msra.mxu0 0.0
        %1929 = vmatprep.subr.mxu0 0.0
        %1930 = vmatpush1.msra.mxu0 0.0
        %1931 = vmatprep.subr.mxu0 0.0
        %1932 = vmatpush1.msra.mxu0 0.0
        %1933 = vmatprep.subr.mxu0 0.0
        %1934 = vmatpush1.msra.mxu0 0.0
        %1935 = vmatprep.subr.mxu0 0.0
        %1936 = vmatpush1.msra.mxu0 0.0
        %1937 = vmatprep.subr.mxu0 0.0
        %1938 = vmatpush1.msra.mxu0 0.0
        %1939 = vmatprep.subr.mxu0 0.0
        %1940 = vmatpush1.msra.mxu0 0.0
        %1941 = vmatprep.subr.mxu0 0.0
        %1942 = vmatpush1.msra.mxu0 0.0
        %1943 = vmatprep.subr.mxu0 0.0
        %1944 = vmatpush1.msra.mxu0 0.0
        %1945 = vmatprep.subr.mxu0 0.0
        %1946 = vmatpush1.msra.mxu0 0.0
        %1947 = vmatprep.subr.mxu0 0.0
        %1948 = vmatpush1.msra.mxu0 0.0
        %1949 = vmatprep.subr.mxu0 0.0
        %1950 = vmatpush1.msra.mxu0 0.0
        %1951 = vmatprep.subr.mxu0 0.0
        %1952 = vmatpush1.msra.mxu0 0.0
        %1953 = vmatprep.subr.mxu0 0.0
        %1954 = vmatpush1.msra.mxu0 0.0
        %1955 = vmatprep.subr.mxu0 0.0
        %1956 = vmatpush1.msra.mxu0 0.0
        %1957 = vmatprep.subr.mxu0 0.0
        %1958 = vmatpush1.msra.mxu0 0.0
        %1959 = vmatprep.subr.mxu0 0.0
        %1960 = vmatpush1.msra.mxu0 0.0
        %1961 = vmatprep.subr.mxu0 0.0
        %1962 = vmatpush1.msra.mxu0 0.0
        %1963 = vmatprep.subr.mxu0 0.0
        %1964 = vmatpush1.msra.mxu0 0.0
        %1965 = vmatprep.subr.mxu0 0.0
        %1966 = vmatpush1.msra.mxu0 0.0
        %1967 = vmatprep.subr.mxu0 0.0
        %1968 = vmatpush1.msra.mxu0 0.0
        %1969 = vmatprep.subr.mxu0 0.0
        %1970 = vmatpush1.msra.mxu0 0.0
        %1971 = vmatprep.subr.mxu0 0.0
        %1972 = vmatpush1.msra.mxu0 0.0
        %1973 = vmatprep.subr.mxu0 0.0
        %1974 = vmatpush1.msra.mxu0 0.0
        %1975 = vmatprep.subr.mxu0 0.0
        %1976 = vmatpush1.msra.mxu0 0.0
        %1977 = vmatprep.subr.mxu0 0.0
        %1978 = vmatpush1.msra.mxu0 0.0
        %1979 = vmatprep.subr.mxu0 0.0
        %1980 = vmatpush1.msra.mxu0 0.0
        %1981 = vmatprep.subr.mxu0 0.0
        %1982 = vmatpush1.msra.mxu0 0.0
        %1983 = vmatprep.mubr.f32.mxu0 0.0
        %1984 = vmatmul.mubr.f32.gmra.mrb[0].mxu0 %v1917
        %v1985 = vpop.f32.mrb[0].mxu0
        %v1986 = vadd.f32 0.0, %v1985
        %v1987 = vpop.f32.mrb[0].mxu0
        %1988 = vdwg.mxu0
        %s1989 = scalar_lea.vmem %s9, 4
        %v1990 = vld [vmem:[%s1989] sm:$0xf]
        %v1992 = vsel %vm758, %v1990, 0
        %1994 = vmatprep.subr.mxu0 0.0
        %1995 = vmatpush1.msra.mxu0 %v1913
        %1996 = vmatprep.subr.mxu0 0.0
        %1997 = vmatpush1.msra.mxu0 %v1914
        %1998 = vmatprep.subr.mxu0 0.0
        %1999 = vmatpush1.msra.mxu0 0.0
        %2000 = vmatprep.subr.mxu0 0.0
        %2001 = vmatpush1.msra.mxu0 0.0
        %2002 = vmatprep.subr.mxu0 0.0
        %2003 = vmatpush1.msra.mxu0 0.0
        %2004 = vmatprep.subr.mxu0 0.0
        %2005 = vmatpush1.msra.mxu0 0.0
        %2006 = vmatprep.subr.mxu0 0.0
        %2007 = vmatpush1.msra.mxu0 0.0
        %2008 = vmatprep.subr.mxu0 0.0
        %2009 = vmatpush1.msra.mxu0 0.0
        %2010 = vmatprep.subr.mxu0 0.0
        %2011 = vmatpush1.msra.mxu0 0.0
        %2012 = vmatprep.subr.mxu0 0.0
        %2013 = vmatpush1.msra.mxu0 0.0
        %2014 = vmatprep.subr.mxu0 0.0
        %2015 = vmatpush1.msra.mxu0 0.0
        %2016 = vmatprep.subr.mxu0 0.0
        %2017 = vmatpush1.msra.mxu0 0.0
        %2018 = vmatprep.subr.mxu0 0.0
        %2019 = vmatpush1.msra.mxu0 0.0
        %2020 = vmatprep.subr.mxu0 0.0
        %2021 = vmatpush1.msra.mxu0 0.0
        %2022 = vmatprep.subr.mxu0 0.0
        %2023 = vmatpush1.msra.mxu0 0.0
        %2024 = vmatprep.subr.mxu0 0.0
        %2025 = vmatpush1.msra.mxu0 0.0
        %2026 = vmatprep.subr.mxu0 0.0
        %2027 = vmatpush1.msra.mxu0 0.0
        %2028 = vmatprep.subr.mxu0 0.0
        %2029 = vmatpush1.msra.mxu0 0.0
        %2030 = vmatprep.subr.mxu0 0.0
        %2031 = vmatpush1.msra.mxu0 0.0
        %2032 = vmatprep.subr.mxu0 0.0
        %2033 = vmatpush1.msra.mxu0 0.0
        %2034 = vmatprep.subr.mxu0 0.0
        %2035 = vmatpush1.msra.mxu0 0.0
        %2036 = vmatprep.subr.mxu0 0.0
        %2037 = vmatpush1.msra.mxu0 0.0
        %2038 = vmatprep.subr.mxu0 0.0
        %2039 = vmatpush1.msra.mxu0 0.0
        %2040 = vmatprep.subr.mxu0 0.0
        %2041 = vmatpush1.msra.mxu0 0.0
        %2042 = vmatprep.subr.mxu0 0.0
        %2043 = vmatpush1.msra.mxu0 0.0
        %2044 = vmatprep.subr.mxu0 0.0
        %2045 = vmatpush1.msra.mxu0 0.0
        %2046 = vmatprep.subr.mxu0 0.0
        %2047 = vmatpush1.msra.mxu0 0.0
        %2048 = vmatprep.subr.mxu0 0.0
        %2049 = vmatpush1.msra.mxu0 0.0
        %2050 = vmatprep.subr.mxu0 0.0
        %2051 = vmatpush1.msra.mxu0 0.0
        %2052 = vmatprep.subr.mxu0 0.0
        %2053 = vmatpush1.msra.mxu0 0.0
        %2054 = vmatprep.subr.mxu0 0.0
        %2055 = vmatpush1.msra.mxu0 0.0
        %2056 = vmatprep.subr.mxu0 0.0
        %2057 = vmatpush1.msra.mxu0 0.0
        %2058 = vmatprep.mubr.f32.mxu0 0.0
        %2059 = vmatmul.mubr.f32.gmra.mrb[0].mxu0 %v1992
        %v2060 = vpop.f32.mrb[0].mxu0
        %v2061 = vadd.f32 0.0, %v2060
        %v2062 = vpop.f32.mrb[0].mxu0
        %2063 = vdwg.mxu0
        %s2064 = scalar_lea.vmem %s9, 8
        %v2065 = vld [vmem:[%s2064] sm:$0xf]
        %v2067 = vsel %vm758, %v2065, 0
        %2069 = vmatprep.subr.mxu0 0.0
        %2070 = vmatpush1.msra.mxu0 %v1913
        %2071 = vmatprep.subr.mxu0 0.0
        %2072 = vmatpush1.msra.mxu0 %v1914
        %2073 = vmatprep.subr.mxu0 0.0
        %2074 = vmatpush1.msra.mxu0 0.0
        %2075 = vmatprep.subr.mxu0 0.0
        %2076 = vmatpush1.msra.mxu0 0.0
        %2077 = vmatprep.subr.mxu0 0.0
        %2078 = vmatpush1.msra.mxu0 0.0
        %2079 = vmatprep.subr.mxu0 0.0
        %2080 = vmatpush1.msra.mxu0 0.0
        %2081 = vmatprep.subr.mxu0 0.0
        %2082 = vmatpush1.msra.mxu0 0.0
        %2083 = vmatprep.subr.mxu0 0.0
        %2084 = vmatpush1.msra.mxu0 0.0
        %2085 = vmatprep.subr.mxu0 0.0
        %2086 = vmatpush1.msra.mxu0 0.0
        %2087 = vmatprep.subr.mxu0 0.0
        %2088 = vmatpush1.msra.mxu0 0.0
        %2089 = vmatprep.subr.mxu0 0.0
        %2090 = vmatpush1.msra.mxu0 0.0
        %2091 = vmatprep.subr.mxu0 0.0
        %2092 = vmatpush1.msra.mxu0 0.0
        %2093 = vmatprep.subr.mxu0 0.0
        %2094 = vmatpush1.msra.mxu0 0.0
        %2095 = vmatprep.subr.mxu0 0.0
        %2096 = vmatpush1.msra.mxu0 0.0
        %2097 = vmatprep.subr.mxu0 0.0
        %2098 = vmatpush1.msra.mxu0 0.0
        %2099 = vmatprep.subr.mxu0 0.0
        %2100 = vmatpush1.msra.mxu0 0.0
        %2101 = vmatprep.subr.mxu0 0.0
        %2102 = vmatpush1.msra.mxu0 0.0
        %2103 = vmatprep.subr.mxu0 0.0
        %2104 = vmatpush1.msra.mxu0 0.0
        %2105 = vmatprep.subr.mxu0 0.0
        %2106 = vmatpush1.msra.mxu0 0.0
        %2107 = vmatprep.subr.mxu0 0.0
        %2108 = vmatpush1.msra.mxu0 0.0
        %2109 = vmatprep.subr.mxu0 0.0
        %2110 = vmatpush1.msra.mxu0 0.0
        %2111 = vmatprep.subr.mxu0 0.0
        %2112 = vmatpush1.msra.mxu0 0.0
        %2113 = vmatprep.subr.mxu0 0.0
        %2114 = vmatpush1.msra.mxu0 0.0
        %2115 = vmatprep.subr.mxu0 0.0
        %2116 = vmatpush1.msra.mxu0 0.0
        %2117 = vmatprep.subr.mxu0 0.0
        %2118 = vmatpush1.msra.mxu0 0.0
        %2119 = vmatprep.subr.mxu0 0.0
        %2120 = vmatpush1.msra.mxu0 0.0
        %2121 = vmatprep.subr.mxu0 0.0
        %2122 = vmatpush1.msra.mxu0 0.0
        %2123 = vmatprep.subr.mxu0 0.0
        %2124 = vmatpush1.msra.mxu0 0.0
        %2125 = vmatprep.subr.mxu0 0.0
        %2126 = vmatpush1.msra.mxu0 0.0
        %2127 = vmatprep.subr.mxu0 0.0
        %2128 = vmatpush1.msra.mxu0 0.0
        %2129 = vmatprep.subr.mxu0 0.0
        %2130 = vmatpush1.msra.mxu0 0.0
        %2131 = vmatprep.subr.mxu0 0.0
        %2132 = vmatpush1.msra.mxu0 0.0
        %2133 = vmatprep.mubr.f32.mxu0 0.0
        %2134 = vmatmul.mubr.f32.gmra.mrb[0].mxu0 %v2067
        %v2135 = vpop.f32.mrb[0].mxu0
        %v2136 = vadd.f32 0.0, %v2135
        %v2137 = vpop.f32.mrb[0].mxu0
        %2138 = vdwg.mxu0
        %s2139 = scalar_lea.vmem %s9, 12
        %v2140 = vld [vmem:[%s2139] sm:$0xf]
        %v2142 = vsel %vm758, %v2140, 0
        %2144 = vmatprep.subr.mxu0 0.0
        %2145 = vmatpush1.msra.mxu0 %v1913
        %2146 = vmatprep.subr.mxu0 0.0
        %2147 = vmatpush1.msra.mxu0 %v1914
        %2148 = vmatprep.subr.mxu0 0.0
        %2149 = vmatpush1.msra.mxu0 0.0
        %2150 = vmatprep.subr.mxu0 0.0
        %2151 = vmatpush1.msra.mxu0 0.0
        %2152 = vmatprep.subr.mxu0 0.0
        %2153 = vmatpush1.msra.mxu0 0.0
        %2154 = vmatprep.subr.mxu0 0.0
        %2155 = vmatpush1.msra.mxu0 0.0
        %2156 = vmatprep.subr.mxu0 0.0
        %2157 = vmatpush1.msra.mxu0 0.0
        %2158 = vmatprep.subr.mxu0 0.0
        %2159 = vmatpush1.msra.mxu0 0.0
        %2160 = vmatprep.subr.mxu0 0.0
        %2161 = vmatpush1.msra.mxu0 0.0
        %2162 = vmatprep.subr.mxu0 0.0
        %2163 = vmatpush1.msra.mxu0 0.0
        %2164 = vmatprep.subr.mxu0 0.0
        %2165 = vmatpush1.msra.mxu0 0.0
        %2166 = vmatprep.subr.mxu0 0.0
        %2167 = vmatpush1.msra.mxu0 0.0
        %2168 = vmatprep.subr.mxu0 0.0
        %2169 = vmatpush1.msra.mxu0 0.0
        %2170 = vmatprep.subr.mxu0 0.0
        %2171 = vmatpush1.msra.mxu0 0.0
        %2172 = vmatprep.subr.mxu0 0.0
        %2173 = vmatpush1.msra.mxu0 0.0
        %2174 = vmatprep.subr.mxu0 0.0
        %2175 = vmatpush1.msra.mxu0 0.0
        %2176 = vmatprep.subr.mxu0 0.0
        %2177 = vmatpush1.msra.mxu0 0.0
        %2178 = vmatprep.subr.mxu0 0.0
        %2179 = vmatpush1.msra.mxu0 0.0
        %2180 = vmatprep.subr.mxu0 0.0
        %2181 = vmatpush1.msra.mxu0 0.0
        %2182 = vmatprep.subr.mxu0 0.0
        %2183 = vmatpush1.msra.mxu0 0.0
        %2184 = vmatprep.subr.mxu0 0.0
        %2185 = vmatpush1.msra.mxu0 0.0
        %2186 = vmatprep.subr.mxu0 0.0
        %2187 = vmatpush1.msra.mxu0 0.0
        %2188 = vmatprep.subr.mxu0 0.0
        %2189 = vmatpush1.msra.mxu0 0.0
        %2190 = vmatprep.subr.mxu0 0.0
        %2191 = vmatpush1.msra.mxu0 0.0
        %2192 = vmatprep.subr.mxu0 0.0
        %2193 = vmatpush1.msra.mxu0 0.0
        %2194 = vmatprep.subr.mxu0 0.0
        %2195 = vmatpush1.msra.mxu0 0.0
        %2196 = vmatprep.subr.mxu0 0.0
        %2197 = vmatpush1.msra.mxu0 0.0
        %2198 = vmatprep.subr.mxu0 0.0
        %2199 = vmatpush1.msra.mxu0 0.0
        %2200 = vmatprep.subr.mxu0 0.0
        %2201 = vmatpush1.msra.mxu0 0.0
        %2202 = vmatprep.subr.mxu0 0.0
        %2203 = vmatpush1.msra.mxu0 0.0
        %2204 = vmatprep.subr.mxu0 0.0
        %2205 = vmatpush1.msra.mxu0 0.0
        %2206 = vmatprep.subr.mxu0 0.0
        %2207 = vmatpush1.msra.mxu0 0.0
        %2208 = vmatprep.mubr.f32.mxu0 0.0
        %2209 = vmatmul.mubr.f32.gmra.mrb[0].mxu0 %v2142
        %v2210 = vpop.f32.mrb[0].mxu0
        %v2211 = vadd.f32 0.0, %v2210
        %v2212 = vpop.f32.mrb[0].mxu0
        %2213 = vdwg.mxu0
        %2215 = vrot.lane.b32.xlu0 %v2061, 32
        %v2216 = vpop.permute.xlu0 %2215
        %2219 = vrot.lane.b32.xlu0 %v2136, 64
        %v2220 = vpop.permute.xlu0 %2219
        %2223 = vrot.lane.b32.xlu0 %v2211, 96
        %v2224 = vpop.permute.xlu0 %2223
        %v2226 = vsel %vm595, %v1986, %v2216
        %vm2227 = vcmask 523264
        %v2228 = vsel %vm2227, %v2226, %v2220
        %vm2229 = vcmask 785408
        %v2230 = vsel %vm2229, %v2228, %v2224
        %v2231 = vld [vmem:[%s1 + $0x23] ss:$0 sm:$0xff]
        %v2232 = vld [vmem:[%s1 + $0x24] ss:$0 sm:$0xff]
        %vm2233 = vcmask 1043456
        %v2234 = vsel %vm2233, %v2230, 0.0
        %2235 = vadd.xlane.f32.xlu0 %v2234
        %v2236 = vpop.xlane.xlu0 %2235
        %v2237 = vrcp.pop 128.0
        %v2238 = vmul.f32 %v2236, %v2237
        %v2239 = vsub.f32 %v2230, %v2238
        %v2240 = vmul.f32 %v2239, %v2239
        %v2241 = vsel %vm2233, %v2240, 0.0
        %2242 = vadd.xlane.f32.xlu0 %v2241
        %v2243 = vpop.xlane.xlu0 %2242
        %v2244 = vmul.f32 %v2243, %v2237
        %v2245 = vadd.f32 %v2244, 1e-05
        %v2246 = vrsqrt.pop %v2245
        %v2247 = vmul.f32 %v2239, %v2246
        %v2248 = vmul.f32 %v2247, %v2231
        %v2249 = vadd.f32 %v2248, %v2232
        %v2250 = vpack.c.bf16 %v2249, %v2249
        %v2251 = vld [vmem:[%s10] sm:$0xf]
        %v2252 = vld [vmem:[%s10 + $0x4] sm:$0xf]
        %v2253 = vld [vmem:[%s10 + $0x8] sm:$0xf]
        %v2254 = vld [vmem:[%s10 + $0xc] sm:$0xf]
        %v2255 = vld [vmem:[%s10 + $0x10] sm:$0xf]
        %v2256 = vld [vmem:[%s10 + $0x14] sm:$0xf]
        %v2257 = vld [vmem:[%s10 + $0x18] sm:$0xf]
        %v2258 = vld [vmem:[%s10 + $0x1c] sm:$0xf]
        %v2259 = vld [vmem:[%s10 + $0x20] sm:$0xf]
        %v2260 = vld [vmem:[%s10 + $0x24] sm:$0xf]
        %v2261 = vld [vmem:[%s10 + $0x28] sm:$0xf]
        %v2262 = vld [vmem:[%s10 + $0x2c] sm:$0xf]
        %v2263 = vld [vmem:[%s10 + $0x30] sm:$0xf]
        %v2264 = vld [vmem:[%s10 + $0x34] sm:$0xf]
        %v2265 = vld [vmem:[%s10 + $0x38] sm:$0xf]
        %v2266 = vld [vmem:[%s10 + $0x3c] sm:$0xf]
        %v2283 = vunpack.c.l.b16 %v2251
        %v2284 = vunpack.c.l.b16 %v2252
        %v2285 = vunpack.c.l.b16 %v2253
        %v2286 = vunpack.c.l.b16 %v2254
        %v2287 = vunpack.c.l.b16 %v2255
        %v2288 = vunpack.c.l.b16 %v2256
        %v2289 = vunpack.c.l.b16 %v2257
        %v2290 = vunpack.c.l.b16 %v2258
        %v2291 = vunpack.c.l.b16 %v2259
        %v2292 = vunpack.c.l.b16 %v2260
        %v2293 = vunpack.c.l.b16 %v2261
        %v2294 = vunpack.c.l.b16 %v2262
        %v2295 = vunpack.c.l.b16 %v2263
        %v2296 = vunpack.c.l.b16 %v2264
        %v2297 = vunpack.c.l.b16 %v2265
        %v2298 = vunpack.c.l.b16 %v2266
        %v2299 = vpack.c.b16 %v2284, %v2283
        %v2300 = vpack.c.b16 %v2286, %v2285
        %v2301 = vpack.c.b16 %v2288, %v2287
        %v2302 = vpack.c.b16 %v2290, %v2289
        %v2303 = vpack.c.b16 %v2292, %v2291
        %v2304 = vpack.c.b16 %v2294, %v2293
        %v2305 = vpack.c.b16 %v2296, %v2295
        %v2306 = vpack.c.b16 %v2298, %v2297
        %2315 = vmatprep.subr.bf16.mxu0 0
        %2316 = vmatpush1.bf16.msra.mxu0 %v2299
        %2317 = vmatprep.subr.bf16.mxu0 0
        %2318 = vmatpush1.bf16.msra.mxu0 %v2300
        %2319 = vmatprep.subr.bf16.mxu0 0
        %2320 = vmatpush1.bf16.msra.mxu0 %v2301
        %2321 = vmatprep.subr.bf16.mxu0 0
        %2322 = vmatpush1.bf16.msra.mxu0 %v2302
        %2323 = vmatprep.subr.bf16.mxu0 0
        %2324 = vmatpush1.bf16.msra.mxu0 %v2303
        %2325 = vmatprep.subr.bf16.mxu0 0
        %2326 = vmatpush1.bf16.msra.mxu0 %v2304
        %2327 = vmatprep.subr.bf16.mxu0 0
        %2328 = vmatpush1.bf16.msra.mxu0 %v2305
        %2329 = vmatprep.subr.bf16.mxu0 0
        %2330 = vmatpush1.bf16.msra.mxu0 %v2306
        %2331 = vmatprep.subr.bf16.mxu0 0
        %2332 = vmatpush1.bf16.msra.mxu0 0
        %2333 = vmatprep.subr.bf16.mxu0 0
        %2334 = vmatpush1.bf16.msra.mxu0 0
        %2335 = vmatprep.subr.bf16.mxu0 0
        %2336 = vmatpush1.bf16.msra.mxu0 0
        %2337 = vmatprep.subr.bf16.mxu0 0
        %2338 = vmatpush1.bf16.msra.mxu0 0
        %2339 = vmatprep.subr.bf16.mxu0 0
        %2340 = vmatpush1.bf16.msra.mxu0 0
        %2341 = vmatprep.subr.bf16.mxu0 0
        %2342 = vmatpush1.bf16.msra.mxu0 0
        %2343 = vmatprep.subr.bf16.mxu0 0
        %2344 = vmatpush1.bf16.msra.mxu0 0
        %2345 = vmatprep.subr.bf16.mxu0 0
        %2346 = vmatpush1.bf16.msra.mxu0 0
        %2347 = vmatprep.mubr.bf16.mxu0 0
        %2348 = vmatmul.mubr.bf16.gmra.mrb[0].mxu0 %v2250
        %v2349 = vpop.f32.mrb[0].mxu0
        %v2350 = vadd.f32 0.0, %v2349
        %v2351 = vpop.f32.mrb[0].mxu0
        %v2352 = vpop.f32.mrb[0].mxu0
        %v2353 = vpop.f32.mrb[0].mxu0
        %2354 = vdwg.mxu0
        %v2355 = vld [vmem:[%s3] sm:$0x3]
        %v2356 = vld [vmem:[%s3 + $0x2] sm:$0x3]
        %v2357 = vld [vmem:[%s3 + $0x4] sm:$0x3]
        %v2358 = vld [vmem:[%s3 + $0x6] sm:$0x3]
        %v2359 = vld [vmem:[%s11] sm:$0xff]
        %v2360 = vld [vmem:[%s11 + $0x8] sm:$0xff]
        %v2361 = vld [vmem:[%s11 + $0x10] sm:$0xff]
        %v2362 = vld [vmem:[%s11 + $0x18] sm:$0xff]
        %v2363 = vld [vmem:[%s11 + $0x20] sm:$0xff]
        %v2364 = vld [vmem:[%s11 + $0x28] sm:$0xff]
        %v2365 = vld [vmem:[%s11 + $0x30] sm:$0xff]
        %v2366 = vld [vmem:[%s11 + $0x38] sm:$0xff]
        %v2367 = vld [vmem:[%s12] sm:$0xf]
        %v2368 = vld [vmem:[%s12 + $0x4] sm:$0xf]
        %v2369 = vld [vmem:[%s12 + $0x8] sm:$0xf]
        %v2370 = vld [vmem:[%s12 + $0xc] sm:$0xf]
        %v2371 = vld [vmem:[%s12 + $0x10] sm:$0xf]
        %v2372 = vld [vmem:[%s12 + $0x14] sm:$0xf]
        %v2373 = vld [vmem:[%s12 + $0x18] sm:$0xf]
        %v2374 = vld [vmem:[%s12 + $0x1c] sm:$0xf]
        %v2375 = vld [vmem:[%s13] sm:$0xff]
        %v2376 = vld [vmem:[%s13 + $0x8] sm:$0xff]
        %v2377 = vld [vmem:[%s13 + $0x10] sm:$0xff]
        %v2378 = vld [vmem:[%s13 + $0x18] sm:$0xff]
        %v2379 = vld [vmem:[%s13 + $0x20] sm:$0xff]
        %v2380 = vld [vmem:[%s13 + $0x28] sm:$0xff]
        %v2381 = vld [vmem:[%s13 + $0x30] sm:$0xff]
        %v2382 = vld [vmem:[%s13 + $0x38] sm:$0xff]
        %v2383 = vld [vmem:[%s14] sm:$0xf]
        %v2384 = vld [vmem:[%s14 + $0x4] sm:$0xf]
        %v2385 = vld [vmem:[%s14 + $0x8] sm:$0xf]
        %v2386 = vld [vmem:[%s14 + $0xc] sm:$0xf]
        %v2387 = vld [vmem:[%s14 + $0x10] sm:$0xf]
        %v2388 = vld [vmem:[%s14 + $0x14] sm:$0xf]
        %v2389 = vld [vmem:[%s14 + $0x18] sm:$0xf]
        %v2390 = vld [vmem:[%s14 + $0x1c] sm:$0xf]
        %v2391 = vld [vmem:[%s14 + $0x20] sm:$0xf]
        %v2392 = vld [vmem:[%s14 + $0x24] sm:$0xf]
        %v2393 = vld [vmem:[%s14 + $0x28] sm:$0xf]
        %v2394 = vld [vmem:[%s14 + $0x2c] sm:$0xf]
        %v2395 = vld [vmem:[%s14 + $0x30] sm:$0xf]
        %v2396 = vld [vmem:[%s14 + $0x34] sm:$0xf]
        %v2397 = vld [vmem:[%s14 + $0x38] sm:$0xf]
        %v2398 = vld [vmem:[%s14 + $0x3c] sm:$0xf]
        %v2399 = vld [vmem:[%s14 + $0x40] sm:$0xf]
        %v2400 = vld [vmem:[%s14 + $0x44] sm:$0xf]
        %v2401 = vld [vmem:[%s14 + $0x48] sm:$0xf]
        %v2402 = vld [vmem:[%s14 + $0x4c] sm:$0xf]
        %v2403 = vld [vmem:[%s14 + $0x50] sm:$0xf]
        %v2404 = vld [vmem:[%s14 + $0x54] sm:$0xf]
        %v2405 = vld [vmem:[%s14 + $0x58] sm:$0xf]
        %v2406 = vld [vmem:[%s14 + $0x5c] sm:$0xf]
        %v2407 = vld [vmem:[%s14 + $0x60] sm:$0xf]
        %v2408 = vld [vmem:[%s14 + $0x64] sm:$0xf]
        %v2409 = vld [vmem:[%s14 + $0x68] sm:$0xf]
        %v2410 = vld [vmem:[%s14 + $0x6c] sm:$0xf]
        %v2411 = vld [vmem:[%s14 + $0x70] sm:$0xf]
        %v2412 = vld [vmem:[%s14 + $0x74] sm:$0xf]
        %v2413 = vld [vmem:[%s14 + $0x78] sm:$0xf]
        %v2414 = vld [vmem:[%s14 + $0x7c] sm:$0xf]
        %v2415 = vld [vmem:[%s1 + $0x25] ss:$0 sm:$0xff]
        %v2416 = vld [vmem:[%s1 + $0x26] ss:$0 sm:$0xff]
        %s2417 = scalar_lea.vmem %s1, 39
        %v2418 = vld [vmem:[%s2417] ss:$8 sm:$0x3]
        %v2419 = vld [vmem:[%s1 + $0x30] ss:$0 sm:$0xff]
        %v2420 = vld [vmem:[%s1 + $0x31] ss:$0 sm:$0xff]
        %v2421 = vld [vmem:[%s1 + $0x32] ss:$0 sm:$0xff]
        %s2422 = scalar_lea.vmem %s1, 51
        %v2423 = vld [vmem:[%s2422] ss:$8 sm:$0x3]
        %v2424 = vld [vmem:[%s1 + $0x34] ss:$0 sm:$0xff]
        %vm2425 = vcmask 519168
        %v2426 = vsel %vm2425, %v2350, 0.0
        %2427 = vadd.xlane.f32.xlu0 %v2426
        %v2428 = vpop.xlane.xlu0 %2427
        %v2429 = vrcp.pop 64.0
        %v2430 = vmul.f32 %v2428, %v2429
        %v2431 = vsub.f32 %v2350, %v2430
        %v2432 = vmul.f32 %v2431, %v2431
        %v2433 = vsel %vm2425, %v2432, 0.0
        %2434 = vadd.xlane.f32.xlu0 %v2433
        %v2435 = vpop.xlane.xlu0 %2434
        %v2436 = vmul.f32 %v2435, %v2429
        %v2437 = vadd.f32 %v2436, 1e-05
        %v2438 = vrsqrt.pop %v2437
        %v2439 = vmul.f32 %v2431, %v2438
        %v2440 = vmul.f32 %v2439, %v2415
        %v2441 = vadd.f32 %v2440, %v2416
        %v2442 = vpack.c.bf16 %v2441, %v2441
        %v2444 = vlaneseq
        %v2445 = vshrl.u32 %v2444, 7
        %v2446 = vsub.s32 0, %v2445
        %v2447 = vrot.slane %v2418, %v2446
        %v2448 = vlaneseq
        %v2449 = vshrl.u32 %v2448, 7
        %v2450 = vsub.s32 1, %v2449
        %v2451 = vrot.slane %v2418, %v2450
        %v2462 = vunpack.c.l.b16 %v2359
        %v2463 = vunpack.c.h.b16 %v2359
        %v2464 = vunpack.c.l.b16 %v2360
        %v2465 = vunpack.c.h.b16 %v2360
        %v2466 = vunpack.c.l.b16 %v2361
        %v2467 = vunpack.c.h.b16 %v2361
        %v2468 = vunpack.c.l.b16 %v2362
        %v2469 = vunpack.c.h.b16 %v2362
        %v2470 = vunpack.c.l.b16 %v2363
        %v2471 = vunpack.c.h.b16 %v2363
        %v2472 = vunpack.c.l.b16 %v2364
        %v2473 = vunpack.c.h.b16 %v2364
        %v2474 = vunpack.c.l.b16 %v2365
        %v2475 = vunpack.c.h.b16 %v2365
        %v2476 = vunpack.c.l.b16 %v2366
        %v2477 = vunpack.c.h.b16 %v2366
        %v2478 = vpack.c.b16 %v2464, %v2462
        %v2479 = vpack.c.b16 %v2465, %v2463
        %v2480 = vpack.c.b16 %v2468, %v2466
        %v2481 = vpack.c.b16 %v2469, %v2467
        %v2482 = vpack.c.b16 %v2472, %v2470
        %v2483 = vpack.c.b16 %v2473, %v2471
        %v2484 = vpack.c.b16 %v2476, %v2474
        %v2485 = vpack.c.b16 %v2477, %v2475
        %v2495 = vsel %vm2227, %v2442, 0
        %2497 = vmatprep.subr.bf16.mxu0 %v2479
        %2498 = vmatpush1.bf16.msra.mxu0 %v2478
        %2499 = vmatprep.subr.bf16.mxu0 %v2481
        %2500 = vmatpush1.bf16.msra.mxu0 %v2480
        %2501 = vmatprep.subr.bf16.mxu0 %v2483
        %2502 = vmatpush1.bf16.msra.mxu0 %v2482
        %2503 = vmatprep.subr.bf16.mxu0 %v2485
        %2504 = vmatpush1.bf16.msra.mxu0 %v2484
        %2505 = vmatprep.subr.bf16.mxu0 0
        %2506 = vmatpush1.bf16.msra.mxu0 0
        %2507 = vmatprep.subr.bf16.mxu0 0
        %2508 = vmatpush1.bf16.msra.mxu0 0
        %2509 = vmatprep.subr.bf16.mxu0 0
        %2510 = vmatpush1.bf16.msra.mxu0 0
        %2511 = vmatprep.subr.bf16.mxu0 0
        %2512 = vmatpush1.bf16.msra.mxu0 0
        %2513 = vmatprep.subr.bf16.mxu0 0
        %2514 = vmatpush1.bf16.msra.mxu0 0
        %2515 = vmatprep.subr.bf16.mxu0 0
        %2516 = vmatpush1.bf16.msra.mxu0 0
        %2517 = vmatprep.subr.bf16.mxu0 0
        %2518 = vmatpush1.bf16.msra.mxu0 0
        %2519 = vmatprep.subr.bf16.mxu0 0
        %2520 = vmatpush1.bf16.msra.mxu0 0
        %2521 = vmatprep.subr.bf16.mxu0 0
        %2522 = vmatpush1.bf16.msra.mxu0 0
        %2523 = vmatprep.subr.bf16.mxu0 0
        %2524 = vmatpush1.bf16.msra.mxu0 0
        %2525 = vmatprep.subr.bf16.mxu0 0
        %2526 = vmatpush1.bf16.msra.mxu0 0
        %2527 = vmatprep.subr.bf16.mxu0 0
        %2528 = vmatpush1.bf16.msra.mxu0 0
        %2529 = vmatprep.mubr.bf16.mxu0 0
        %2530 = vmatmul.mubr.bf16.gmra.mrb[0].mxu0 %v2495
        %v2531 = vpop.f32.mrb[0].mxu0
        %v2532 = vadd.f32 %v2447, %v2531
        %v2533 = vpop.f32.mrb[0].mxu0
        %v2534 = vadd.f32 %v2451, %v2533
        %v2535 = vpop.f32.mrb[0].mxu0
        %v2536 = vpop.f32.mrb[0].mxu0
        %2537 = vdwg.mxu0
        %v2538 = vpack.c.bf16 %v2532, %v2532
        %v2539 = vpack.c.bf16 %v2534, %v2534
        %2541 = vrot.lane.b32.xlu0 %v2538, 64
        %v2542 = vpop.permute.xlu0 %2541
        %v2544 = vsel %vm758, %v2538, 0
        %v2547 = vsel %vm758, %v2542, 0
        %2549 = vmatprep.subr.bf16.mxu0 0
        %2550 = vmatpush1.bf16.xpose.msra.mxu0 %v2547
        %2551 = vmatprep.subr.bf16.mxu0 0
        %2552 = vmatpush1.bf16.xpose.msra.mxu0 0
        %2553 = vmatprep.subr.bf16.mxu0 0
        %2554 = vmatpush1.bf16.xpose.msra.mxu0 0
        %2555 = vmatprep.subr.bf16.mxu0 0
        %2556 = vmatpush1.bf16.xpose.msra.mxu0 0
        %2557 = vmatprep.subr.bf16.mxu0 0
        %2558 = vmatpush1.bf16.xpose.msra.mxu0 0
        %2559 = vmatprep.subr.bf16.mxu0 0
        %2560 = vmatpush1.bf16.xpose.msra.mxu0 0
        %2561 = vmatprep.subr.bf16.mxu0 0
        %2562 = vmatpush1.bf16.xpose.msra.mxu0 0
        %2563 = vmatprep.subr.bf16.mxu0 0
        %2564 = vmatpush1.bf16.xpose.msra.mxu0 0
        %2565 = vmatprep.subr.bf16.mxu0 0
        %2566 = vmatpush1.bf16.xpose.msra.mxu0 0
        %2567 = vmatprep.subr.bf16.mxu0 0
        %2568 = vmatpush1.bf16.xpose.msra.mxu0 0
        %2569 = vmatprep.subr.bf16.mxu0 0
        %2570 = vmatpush1.bf16.xpose.msra.mxu0 0
        %2571 = vmatprep.subr.bf16.mxu0 0
        %2572 = vmatpush1.bf16.xpose.msra.mxu0 0
        %2573 = vmatprep.subr.bf16.mxu0 0
        %2574 = vmatpush1.bf16.xpose.msra.mxu0 0
        %2575 = vmatprep.subr.bf16.mxu0 0
        %2576 = vmatpush1.bf16.xpose.msra.mxu0 0
        %2577 = vmatprep.subr.bf16.mxu0 0
        %2578 = vmatpush1.bf16.xpose.msra.mxu0 0
        %2579 = vmatprep.subr.bf16.mxu0 0
        %2580 = vmatpush1.bf16.xpose.msra.mxu0 0
        %2581 = vmatprep.mubr.bf16.mxu0 0
        %2582 = vmatmul.mubr.bf16.gmra.mrb[0].mxu0 %v2544
        %v2583 = vpop.f32.mrb[0].mxu0
        %v2584 = vadd.f32 0.0, %v2583
        %v2585 = vpop.f32.mrb[0].mxu0
        %v2586 = vpop.f32.mrb[0].mxu0
        %v2587 = vpop.f32.mrb[0].mxu0
        %2588 = vdwg.mxu0
        %v2589 = vmul.f32 %v2584, 0.25
        %v2590 = vunpack.c.l.bf16 %v2355
        %v2591 = vadd.f32 %v2589, %v2590
        %vm2592 = vcmask 27648
        %v2593 = vsel %vm2592, %v2591, -inf
        %2594 = vmax.xlane.f32.xlu0 %v2593
        %v2595 = vpop.xlane.xlu0 %2594
        %v2596 = vsub.f32 %v2591, %v2595
        %v2597 = vmul.f32 %v2596, 1.442695
        %v2598 = vpow.pop %v2597
        %v2599 = vsel %vm2592, %v2598, 0.0
        %2600 = vadd.xlane.f32.xlu0 %v2599
        %v2601 = vpop.xlane.xlu0 %2600
        %v2602 = vrcp.pop %v2601
        %v2603 = vmul.f32 %v2598, %v2602
        %v2604 = vpack.c.bf16 %v2603, %v2603
        %vm2605 = vcmask 31744
        %v2607 = vsel %vm2605, %v2604, 0
        %vm2609 = vcmask 1041408
        %v2611 = vsel %vm2609, %v2539, 0
        %2613 = vmatprep.subr.bf16.mxu0 0
        %2614 = vmatpush1.bf16.msra.mxu0 %v2611
        %2615 = vmatprep.subr.bf16.mxu0 0
        %2616 = vmatpush1.bf16.msra.mxu0 0
        %2617 = vmatprep.subr.bf16.mxu0 0
        %2618 = vmatpush1.bf16.msra.mxu0 0
        %2619 = vmatprep.subr.bf16.mxu0 0
        %2620 = vmatpush1.bf16.msra.mxu0 0
        %2621 = vmatprep.subr.bf16.mxu0 0
        %2622 = vmatpush1.bf16.msra.mxu0 0
        %2623 = vmatprep.subr.bf16.mxu0 0
        %2624 = vmatpush1.bf16.msra.mxu0 0
        %2625 = vmatprep.subr.bf16.mxu0 0
        %2626 = vmatpush1.bf16.msra.mxu0 0
        %2627 = vmatprep.subr.bf16.mxu0 0
        %2628 = vmatpush1.bf16.msra.mxu0 0
        %2629 = vmatprep.subr.bf16.mxu0 0
        %2630 = vmatpush1.bf16.msra.mxu0 0
        %2631 = vmatprep.subr.bf16.mxu0 0
        %2632 = vmatpush1.bf16.msra.mxu0 0
        %2633 = vmatprep.subr.bf16.mxu0 0
        %2634 = vmatpush1.bf16.msra.mxu0 0
        %2635 = vmatprep.subr.bf16.mxu0 0
        %2636 = vmatpush1.bf16.msra.mxu0 0
        %2637 = vmatprep.subr.bf16.mxu0 0
        %2638 = vmatpush1.bf16.msra.mxu0 0
        %2639 = vmatprep.subr.bf16.mxu0 0
        %2640 = vmatpush1.bf16.msra.mxu0 0
        %2641 = vmatprep.subr.bf16.mxu0 0
        %2642 = vmatpush1.bf16.msra.mxu0 0
        %2643 = vmatprep.subr.bf16.mxu0 0
        %2644 = vmatpush1.bf16.msra.mxu0 0
        %2645 = vmatprep.mubr.bf16.mxu0 0
        %2646 = vmatmul.mubr.bf16.gmra.mrb[0].mxu0 %v2607
        %v2647 = vpop.f32.mrb[0].mxu0
        %v2648 = vadd.f32 0.0, %v2647
        %v2649 = vpop.f32.mrb[0].mxu0
        %v2650 = vpop.f32.mrb[0].mxu0
        %v2651 = vpop.f32.mrb[0].mxu0
        %2652 = vdwg.mxu0
        %2653 = vrot.lane.b32.xlu0 %v2538, 112
        %v2654 = vpop.permute.xlu0 %2653
        %2655 = vrot.lane.b32.xlu0 %v2538, 48
        %v2656 = vpop.permute.xlu0 %2655
        %v2658 = vsel %vm758, %v2654, 0
        %v2661 = vsel %vm758, %v2656, 0
        %2663 = vmatprep.subr.bf16.mxu0 0
        %2664 = vmatpush1.bf16.xpose.msra.mxu0 %v2661
        %2665 = vmatprep.subr.bf16.mxu0 0
        %2666 = vmatpush1.bf16.xpose.msra.mxu0 0
        %2667 = vmatprep.subr.bf16.mxu0 0
        %2668 = vmatpush1.bf16.xpose.msra.mxu0 0
        %2669 = vmatprep.subr.bf16.mxu0 0
        %2670 = vmatpush1.bf16.xpose.msra.mxu0 0
        %2671 = vmatprep.subr.bf16.mxu0 0
        %2672 = vmatpush1.bf16.xpose.msra.mxu0 0
        %2673 = vmatprep.subr.bf16.mxu0 0
        %2674 = vmatpush1.bf16.xpose.msra.mxu0 0
        %2675 = vmatprep.subr.bf16.mxu0 0
        %2676 = vmatpush1.bf16.xpose.msra.mxu0 0
        %2677 = vmatprep.subr.bf16.mxu0 0
        %2678 = vmatpush1.bf16.xpose.msra.mxu0 0
        %2679 = vmatprep.subr.bf16.mxu0 0
        %2680 = vmatpush1.bf16.xpose.msra.mxu0 0
        %2681 = vmatprep.subr.bf16.mxu0 0
        %2682 = vmatpush1.bf16.xpose.msra.mxu0 0
        %2683 = vmatprep.subr.bf16.mxu0 0
        %2684 = vmatpush1.bf16.xpose.msra.mxu0 0
        %2685 = vmatprep.subr.bf16.mxu0 0
        %2686 = vmatpush1.bf16.xpose.msra.mxu0 0
        %2687 = vmatprep.subr.bf16.mxu0 0
        %2688 = vmatpush1.bf16.xpose.msra.mxu0 0
        %2689 = vmatprep.subr.bf16.mxu0 0
        %2690 = vmatpush1.bf16.xpose.msra.mxu0 0
        %2691 = vmatprep.subr.bf16.mxu0 0
        %2692 = vmatpush1.bf16.xpose.msra.mxu0 0
        %2693 = vmatprep.subr.bf16.mxu0 0
        %2694 = vmatpush1.bf16.xpose.msra.mxu0 0
        %2695 = vmatprep.mubr.bf16.mxu0 0
        %2696 = vmatmul.mubr.bf16.gmra.mrb[0].mxu0 %v2658
        %v2697 = vpop.f32.mrb[0].mxu0
        %v2698 = vadd.f32 0.0, %v2697
        %v2699 = vpop.f32.mrb[0].mxu0
        %v2700 = vpop.f32.mrb[0].mxu0
        %v2701 = vpop.f32.mrb[0].mxu0
        %2702 = vdwg.mxu0
        %v2703 = vmul.f32 %v2698, 0.25
        %v2704 = vunpack.c.l.bf16 %v2356
        %v2705 = vadd.f32 %v2703, %v2704
        %v2706 = vsel %vm2592, %v2705, -inf
        %2707 = vmax.xlane.f32.xlu0 %v2706
        %v2708 = vpop.xlane.xlu0 %2707
        %v2709 = vsub.f32 %v2705, %v2708
        %v2710 = vmul.f32 %v2709, 1.442695
        %v2711 = vpow.pop %v2710
        %v2712 = vsel %vm2592, %v2711, 0.0
        %2713 = vadd.xlane.f32.xlu0 %v2712
        %v2714 = vpop.xlane.xlu0 %2713
        %v2715 = vrcp.pop %v2714
        %v2716 = vmul.f32 %v2711, %v2715
        %v2717 = vpack.c.bf16 %v2716, %v2716
        %2719 = vrot.lane.b32.xlu0 %v2539, 112
        %v2720 = vpop.permute.xlu0 %2719
        %v2722 = vsel %vm2605, %v2717, 0
        %v2725 = vsel %vm2609, %v2720, 0
        %2727 = vmatprep.subr.bf16.mxu0 0
        %2728 = vmatpush1.bf16.msra.mxu0 %v2725
        %2729 = vmatprep.subr.bf16.mxu0 0
        %2730 = vmatpush1.bf16.msra.mxu0 0
        %2731 = vmatprep.subr.bf16.mxu0 0
        %2732 = vmatpush1.bf16.msra.mxu0 0
        %2733 = vmatprep.subr.bf16.mxu0 0
        %2734 = vmatpush1.bf16.msra.mxu0 0
        %2735 = vmatprep.subr.bf16.mxu0 0
        %2736 = vmatpush1.bf16.msra.mxu0 0
        %2737 = vmatprep.subr.bf16.mxu0 0
        %2738 = vmatpush1.bf16.msra.mxu0 0
        %2739 = vmatprep.subr.bf16.mxu0 0
        %2740 = vmatpush1.bf16.msra.mxu0 0
        %2741 = vmatprep.subr.bf16.mxu0 0
        %2742 = vmatpush1.bf16.msra.mxu0 0
        %2743 = vmatprep.subr.bf16.mxu0 0
        %2744 = vmatpush1.bf16.msra.mxu0 0
        %2745 = vmatprep.subr.bf16.mxu0 0
        %2746 = vmatpush1.bf16.msra.mxu0 0
        %2747 = vmatprep.subr.bf16.mxu0 0
        %2748 = vmatpush1.bf16.msra.mxu0 0
        %2749 = vmatprep.subr.bf16.mxu0 0
        %2750 = vmatpush1.bf16.msra.mxu0 0
        %2751 = vmatprep.subr.bf16.mxu0 0
        %2752 = vmatpush1.bf16.msra.mxu0 0
        %2753 = vmatprep.subr.bf16.mxu0 0
        %2754 = vmatpush1.bf16.msra.mxu0 0
        %2755 = vmatprep.subr.bf16.mxu0 0
        %2756 = vmatpush1.bf16.msra.mxu0 0
        %2757 = vmatprep.subr.bf16.mxu0 0
        %2758 = vmatpush1.bf16.msra.mxu0 0
        %2759 = vmatprep.mubr.bf16.mxu0 0
        %2760 = vmatmul.mubr.bf16.gmra.mrb[0].mxu0 %v2722
        %v2761 = vpop.f32.mrb[0].mxu0
        %v2762 = vadd.f32 0.0, %v2761
        %v2763 = vpop.f32.mrb[0].mxu0
        %v2764 = vpop.f32.mrb[0].mxu0
        %v2765 = vpop.f32.mrb[0].mxu0
        %2766 = vdwg.mxu0
        %2767 = vrot.lane.b32.xlu0 %v2538, 96
        %v2768 = vpop.permute.xlu0 %2767
        %2769 = vrot.lane.b32.xlu0 %v2538, 32
        %v2770 = vpop.permute.xlu0 %2769
        %v2772 = vsel %vm758, %v2768, 0
        %v2775 = vsel %vm758, %v2770, 0
        %2777 = vmatprep.subr.bf16.mxu0 0
        %2778 = vmatpush1.bf16.xpose.msra.mxu0 %v2775
        %2779 = vmatprep.subr.bf16.mxu0 0
        %2780 = vmatpush1.bf16.xpose.msra.mxu0 0
        %2781 = vmatprep.subr.bf16.mxu0 0
        %2782 = vmatpush1.bf16.xpose.msra.mxu0 0
        %2783 = vmatprep.subr.bf16.mxu0 0
        %2784 = vmatpush1.bf16.xpose.msra.mxu0 0
        %2785 = vmatprep.subr.bf16.mxu0 0
        %2786 = vmatpush1.bf16.xpose.msra.mxu0 0
        %2787 = vmatprep.subr.bf16.mxu0 0
        %2788 = vmatpush1.bf16.xpose.msra.mxu0 0
        %2789 = vmatprep.subr.bf16.mxu0 0
        %2790 = vmatpush1.bf16.xpose.msra.mxu0 0
        %2791 = vmatprep.subr.bf16.mxu0 0
        %2792 = vmatpush1.bf16.xpose.msra.mxu0 0
        %2793 = vmatprep.subr.bf16.mxu0 0
        %2794 = vmatpush1.bf16.xpose.msra.mxu0 0
        %2795 = vmatprep.subr.bf16.mxu0 0
        %2796 = vmatpush1.bf16.xpose.msra.mxu0 0
        %2797 = vmatprep.subr.bf16.mxu0 0
        %2798 = vmatpush1.bf16.xpose.msra.mxu0 0
        %2799 = vmatprep.subr.bf16.mxu0 0
        %2800 = vmatpush1.bf16.xpose.msra.mxu0 0
        %2801 = vmatprep.subr.bf16.mxu0 0
        %2802 = vmatpush1.bf16.xpose.msra.mxu0 0
        %2803 = vmatprep.subr.bf16.mxu0 0
        %2804 = vmatpush1.bf16.xpose.msra.mxu0 0
        %2805 = vmatprep.subr.bf16.mxu0 0
        %2806 = vmatpush1.bf16.xpose.msra.mxu0 0
        %2807 = vmatprep.subr.bf16.mxu0 0
        %2808 = vmatpush1.bf16.xpose.msra.mxu0 0
        %2809 = vmatprep.mubr.bf16.mxu0 0
        %2810 = vmatmul.mubr.bf16.gmra.mrb[0].mxu0 %v2772
        %v2811 = vpop.f32.mrb[0].mxu0
        %v2812 = vadd.f32 0.0, %v2811
        %v2813 = vpop.f32.mrb[0].mxu0
        %v2814 = vpop.f32.mrb[0].mxu0
        %v2815 = vpop.f32.mrb[0].mxu0
        %2816 = vdwg.mxu0
        %v2817 = vmul.f32 %v2812, 0.25
        %v2818 = vunpack.c.l.bf16 %v2357
        %v2819 = vadd.f32 %v2817, %v2818
        %v2820 = vsel %vm2592, %v2819, -inf
        %2821 = vmax.xlane.f32.xlu0 %v2820
        %v2822 = vpop.xlane.xlu0 %2821
        %v2823 = vsub.f32 %v2819, %v2822
        %v2824 = vmul.f32 %v2823, 1.442695
        %v2825 = vpow.pop %v2824
        %v2826 = vsel %vm2592, %v2825, 0.0
        %2827 = vadd.xlane.f32.xlu0 %v2826
        %v2828 = vpop.xlane.xlu0 %2827
        %v2829 = vrcp.pop %v2828
        %v2830 = vmul.f32 %v2825, %v2829
        %v2831 = vpack.c.bf16 %v2830, %v2830
        %2832 = vrot.lane.b32.xlu0 %v2539, 96
        %v2833 = vpop.permute.xlu0 %2832
        %v2835 = vsel %vm2605, %v2831, 0
        %v2838 = vsel %vm2609, %v2833, 0
        %2840 = vmatprep.subr.bf16.mxu0 0
        %2841 = vmatpush1.bf16.msra.mxu0 %v2838
        %2842 = vmatprep.subr.bf16.mxu0 0
        %2843 = vmatpush1.bf16.msra.mxu0 0
        %2844 = vmatprep.subr.bf16.mxu0 0
        %2845 = vmatpush1.bf16.msra.mxu0 0
        %2846 = vmatprep.subr.bf16.mxu0 0
        %2847 = vmatpush1.bf16.msra.mxu0 0
        %2848 = vmatprep.subr.bf16.mxu0 0
        %2849 = vmatpush1.bf16.msra.mxu0 0
        %2850 = vmatprep.subr.bf16.mxu0 0
        %2851 = vmatpush1.bf16.msra.mxu0 0
        %2852 = vmatprep.subr.bf16.mxu0 0
        %2853 = vmatpush1.bf16.msra.mxu0 0
        %2854 = vmatprep.subr.bf16.mxu0 0
        %2855 = vmatpush1.bf16.msra.mxu0 0
        %2856 = vmatprep.subr.bf16.mxu0 0
        %2857 = vmatpush1.bf16.msra.mxu0 0
        %2858 = vmatprep.subr.bf16.mxu0 0
        %2859 = vmatpush1.bf16.msra.mxu0 0
        %2860 = vmatprep.subr.bf16.mxu0 0
        %2861 = vmatpush1.bf16.msra.mxu0 0
        %2862 = vmatprep.subr.bf16.mxu0 0
        %2863 = vmatpush1.bf16.msra.mxu0 0
        %2864 = vmatprep.subr.bf16.mxu0 0
        %2865 = vmatpush1.bf16.msra.mxu0 0
        %2866 = vmatprep.subr.bf16.mxu0 0
        %2867 = vmatpush1.bf16.msra.mxu0 0
        %2868 = vmatprep.subr.bf16.mxu0 0
        %2869 = vmatpush1.bf16.msra.mxu0 0
        %2870 = vmatprep.subr.bf16.mxu0 0
        %2871 = vmatpush1.bf16.msra.mxu0 0
        %2872 = vmatprep.mubr.bf16.mxu0 0
        %2873 = vmatmul.mubr.bf16.gmra.mrb[0].mxu0 %v2835
        %v2874 = vpop.f32.mrb[0].mxu0
        %v2875 = vadd.f32 0.0, %v2874
        %v2876 = vpop.f32.mrb[0].mxu0
        %v2877 = vpop.f32.mrb[0].mxu0
        %v2878 = vpop.f32.mrb[0].mxu0
        %2879 = vdwg.mxu0
        %2880 = vrot.lane.b32.xlu0 %v2538, 80
        %v2881 = vpop.permute.xlu0 %2880
        %2882 = vrot.lane.b32.xlu0 %v2538, 16
        %v2883 = vpop.permute.xlu0 %2882
        %v2885 = vsel %vm758, %v2881, 0
        %v2888 = vsel %vm758, %v2883, 0
        %2890 = vmatprep.subr.bf16.mxu0 0
        %2891 = vmatpush1.bf16.xpose.msra.mxu0 %v2888
        %2892 = vmatprep.subr.bf16.mxu0 0
        %2893 = vmatpush1.bf16.xpose.msra.mxu0 0
        %2894 = vmatprep.subr.bf16.mxu0 0
        %2895 = vmatpush1.bf16.xpose.msra.mxu0 0
        %2896 = vmatprep.subr.bf16.mxu0 0
        %2897 = vmatpush1.bf16.xpose.msra.mxu0 0
        %2898 = vmatprep.subr.bf16.mxu0 0
        %2899 = vmatpush1.bf16.xpose.msra.mxu0 0
        %2900 = vmatprep.subr.bf16.mxu0 0
        %2901 = vmatpush1.bf16.xpose.msra.mxu0 0
        %2902 = vmatprep.subr.bf16.mxu0 0
        %2903 = vmatpush1.bf16.xpose.msra.mxu0 0
        %2904 = vmatprep.subr.bf16.mxu0 0
        %2905 = vmatpush1.bf16.xpose.msra.mxu0 0
        %2906 = vmatprep.subr.bf16.mxu0 0
        %2907 = vmatpush1.bf16.xpose.msra.mxu0 0
        %2908 = vmatprep.subr.bf16.mxu0 0
        %2909 = vmatpush1.bf16.xpose.msra.mxu0 0
        %2910 = vmatprep.subr.bf16.mxu0 0
        %2911 = vmatpush1.bf16.xpose.msra.mxu0 0
        %2912 = vmatprep.subr.bf16.mxu0 0
        %2913 = vmatpush1.bf16.xpose.msra.mxu0 0
        %2914 = vmatprep.subr.bf16.mxu0 0
        %2915 = vmatpush1.bf16.xpose.msra.mxu0 0
        %2916 = vmatprep.subr.bf16.mxu0 0
        %2917 = vmatpush1.bf16.xpose.msra.mxu0 0
        %2918 = vmatprep.subr.bf16.mxu0 0
        %2919 = vmatpush1.bf16.xpose.msra.mxu0 0
        %2920 = vmatprep.subr.bf16.mxu0 0
        %2921 = vmatpush1.bf16.xpose.msra.mxu0 0
        %2922 = vmatprep.mubr.bf16.mxu0 0
        %2923 = vmatmul.mubr.bf16.gmra.mrb[0].mxu0 %v2885
        %v2924 = vpop.f32.mrb[0].mxu0
        %v2925 = vadd.f32 0.0, %v2924
        %v2926 = vpop.f32.mrb[0].mxu0
        %v2927 = vpop.f32.mrb[0].mxu0
        %v2928 = vpop.f32.mrb[0].mxu0
        %2929 = vdwg.mxu0
        %v2930 = vmul.f32 %v2925, 0.25
        %v2931 = vunpack.c.l.bf16 %v2358
        %v2932 = vadd.f32 %v2930, %v2931
        %v2933 = vsel %vm2592, %v2932, -inf
        %2934 = vmax.xlane.f32.xlu0 %v2933
        %v2935 = vpop.xlane.xlu0 %2934
        %v2936 = vsub.f32 %v2932, %v2935
        %v2937 = vmul.f32 %v2936, 1.442695
        %v2938 = vpow.pop %v2937
        %v2939 = vsel %vm2592, %v2938, 0.0
        %2940 = vadd.xlane.f32.xlu0 %v2939
        %v2941 = vpop.xlane.xlu0 %2940
        %v2942 = vrcp.pop %v2941
        %v2943 = vmul.f32 %v2938, %v2942
        %v2944 = vpack.c.bf16 %v2943, %v2943
        %2945 = vrot.lane.b32.xlu0 %v2539, 80
        %v2946 = vpop.permute.xlu0 %2945
        %v2948 = vsel %vm2605, %v2944, 0
        %v2951 = vsel %vm2609, %v2946, 0
        %2953 = vmatprep.subr.bf16.mxu0 0
        %2954 = vmatpush1.bf16.msra.mxu0 %v2951
        %2955 = vmatprep.subr.bf16.mxu0 0
        %2956 = vmatpush1.bf16.msra.mxu0 0
        %2957 = vmatprep.subr.bf16.mxu0 0
        %2958 = vmatpush1.bf16.msra.mxu0 0
        %2959 = vmatprep.subr.bf16.mxu0 0
        %2960 = vmatpush1.bf16.msra.mxu0 0
        %2961 = vmatprep.subr.bf16.mxu0 0
        %2962 = vmatpush1.bf16.msra.mxu0 0
        %2963 = vmatprep.subr.bf16.mxu0 0
        %2964 = vmatpush1.bf16.msra.mxu0 0
        %2965 = vmatprep.subr.bf16.mxu0 0
        %2966 = vmatpush1.bf16.msra.mxu0 0
        %2967 = vmatprep.subr.bf16.mxu0 0
        %2968 = vmatpush1.bf16.msra.mxu0 0
        %2969 = vmatprep.subr.bf16.mxu0 0
        %2970 = vmatpush1.bf16.msra.mxu0 0
        %2971 = vmatprep.subr.bf16.mxu0 0
        %2972 = vmatpush1.bf16.msra.mxu0 0
        %2973 = vmatprep.subr.bf16.mxu0 0
        %2974 = vmatpush1.bf16.msra.mxu0 0
        %2975 = vmatprep.subr.bf16.mxu0 0
        %2976 = vmatpush1.bf16.msra.mxu0 0
        %2977 = vmatprep.subr.bf16.mxu0 0
        %2978 = vmatpush1.bf16.msra.mxu0 0
        %2979 = vmatprep.subr.bf16.mxu0 0
        %2980 = vmatpush1.bf16.msra.mxu0 0
        %2981 = vmatprep.subr.bf16.mxu0 0
        %2982 = vmatpush1.bf16.msra.mxu0 0
        %2983 = vmatprep.subr.bf16.mxu0 0
        %2984 = vmatpush1.bf16.msra.mxu0 0
        %2985 = vmatprep.mubr.bf16.mxu0 0
        %2986 = vmatmul.mubr.bf16.gmra.mrb[0].mxu0 %v2948
        %v2987 = vpop.f32.mrb[0].mxu0
        %v2988 = vadd.f32 0.0, %v2987
        %v2989 = vpop.f32.mrb[0].mxu0
        %v2990 = vpop.f32.mrb[0].mxu0
        %v2991 = vpop.f32.mrb[0].mxu0
        %2992 = vdwg.mxu0
        %2994 = vrot.lane.b32.xlu0 %v2762, 16
        %v2995 = vpop.permute.xlu0 %2994
        %2998 = vrot.lane.b32.xlu0 %v2875, 32
        %v2999 = vpop.permute.xlu0 %2998
        %3002 = vrot.lane.b32.xlu0 %v2988, 48
        %v3003 = vpop.permute.xlu0 %3002
        %v3005 = vsel %vm758, %v2648, %v2995
        %v3006 = vsel %vm595, %v3005, %v2999
        %v3007 = vsel %vm548, %v3006, %v3003
        %v3008 = vpack.c.bf16 %v3007, %v3007
        %v3017 = vunpack.c.l.b16 %v2367
        %v3018 = vunpack.c.l.b16 %v2368
        %v3019 = vunpack.c.l.b16 %v2369
        %v3020 = vunpack.c.l.b16 %v2370
        %v3021 = vunpack.c.l.b16 %v2371
        %v3022 = vunpack.c.l.b16 %v2372
        %v3023 = vunpack.c.l.b16 %v2373
        %v3024 = vunpack.c.l.b16 %v2374
        %v3025 = vpack.c.b16 %v3018, %v3017
        %v3026 = vpack.c.b16 %v3020, %v3019
        %v3027 = vpack.c.b16 %v3022, %v3021
        %v3028 = vpack.c.b16 %v3024, %v3023
        %v3034 = vsel %vm2227, %v3008, 0
        %3036 = vmatprep.subr.bf16.mxu0 0
        %3037 = vmatpush1.bf16.msra.mxu0 %v3025
        %3038 = vmatprep.subr.bf16.mxu0 0
        %3039 = vmatpush1.bf16.msra.mxu0 %v3026
        %3040 = vmatprep.subr.bf16.mxu0 0
        %3041 = vmatpush1.bf16.msra.mxu0 %v3027
        %3042 = vmatprep.subr.bf16.mxu0 0
        %3043 = vmatpush1.bf16.msra.mxu0 %v3028
        %3044 = vmatprep.subr.bf16.mxu0 0
        %3045 = vmatpush1.bf16.msra.mxu0 0
        %3046 = vmatprep.subr.bf16.mxu0 0
        %3047 = vmatpush1.bf16.msra.mxu0 0
        %3048 = vmatprep.subr.bf16.mxu0 0
        %3049 = vmatpush1.bf16.msra.mxu0 0
        %3050 = vmatprep.subr.bf16.mxu0 0
        %3051 = vmatpush1.bf16.msra.mxu0 0
        %3052 = vmatprep.subr.bf16.mxu0 0
        %3053 = vmatpush1.bf16.msra.mxu0 0
        %3054 = vmatprep.subr.bf16.mxu0 0
        %3055 = vmatpush1.bf16.msra.mxu0 0
        %3056 = vmatprep.subr.bf16.mxu0 0
        %3057 = vmatpush1.bf16.msra.mxu0 0
        %3058 = vmatprep.subr.bf16.mxu0 0
        %3059 = vmatpush1.bf16.msra.mxu0 0
        %3060 = vmatprep.subr.bf16.mxu0 0
        %3061 = vmatpush1.bf16.msra.mxu0 0
        %3062 = vmatprep.subr.bf16.mxu0 0
        %3063 = vmatpush1.bf16.msra.mxu0 0
        %3064 = vmatprep.subr.bf16.mxu0 0
        %3065 = vmatpush1.bf16.msra.mxu0 0
        %3066 = vmatprep.subr.bf16.mxu0 0
        %3067 = vmatpush1.bf16.msra.mxu0 0
        %3068 = vmatprep.mubr.bf16.mxu0 0
        %3069 = vmatmul.mubr.bf16.gmra.mrb[0].mxu0 %v3034
        %v3070 = vpop.f32.mrb[0].mxu0
        %v3071 = vadd.f32 0.0, %v3070
        %v3072 = vpop.f32.mrb[0].mxu0
        %v3073 = vpop.f32.mrb[0].mxu0
        %v3074 = vpop.f32.mrb[0].mxu0
        %3075 = vdwg.mxu0
        %v3076 = vadd.f32 %v2350, %v3071
        %v3077 = vadd.f32 %v3076, %v2419
        %v3078 = vsel %vm2425, %v3077, 0.0
        %3079 = vadd.xlane.f32.xlu0 %v3078
        %v3080 = vpop.xlane.xlu0 %3079
        %v3081 = vmul.f32 %v3080, %v2429
        %v3082 = vsub.f32 %v3077, %v3081
        %v3083 = vmul.f32 %v3082, %v3082
        %v3084 = vsel %vm2425, %v3083, 0.0
        %3085 = vadd.xlane.f32.xlu0 %v3084
        %v3086 = vpop.xlane.xlu0 %3085
        %v3087 = vmul.f32 %v3086, %v2429
        %v3088 = vadd.f32 %v3087, 1e-05
        %v3089 = vrsqrt.pop %v3088
        %v3090 = vmul.f32 %v3082, %v3089
        %v3091 = vmul.f32 %v3090, %v2420
        %v3092 = vadd.f32 %v3091, %v2421
        %v3093 = vpack.c.bf16 %v3092, %v3092
        %v3095 = vlaneseq
        %v3096 = vshrl.u32 %v3095, 7
        %v3097 = vsub.s32 0, %v3096
        %v3098 = vrot.slane %v2423, %v3097
        %v3099 = vlaneseq
        %v3100 = vshrl.u32 %v3099, 7
        %v3101 = vsub.s32 1, %v3100
        %v3102 = vrot.slane %v2423, %v3101
        %v3113 = vunpack.c.l.b16 %v2375
        %v3114 = vunpack.c.h.b16 %v2375
        %v3115 = vunpack.c.l.b16 %v2376
        %v3116 = vunpack.c.h.b16 %v2376
        %v3117 = vunpack.c.l.b16 %v2377
        %v3118 = vunpack.c.h.b16 %v2377
        %v3119 = vunpack.c.l.b16 %v2378
        %v3120 = vunpack.c.h.b16 %v2378
        %v3121 = vunpack.c.l.b16 %v2379
        %v3122 = vunpack.c.h.b16 %v2379
        %v3123 = vunpack.c.l.b16 %v2380
        %v3124 = vunpack.c.h.b16 %v2380
        %v3125 = vunpack.c.l.b16 %v2381
        %v3126 = vunpack.c.h.b16 %v2381
        %v3127 = vunpack.c.l.b16 %v2382
        %v3128 = vunpack.c.h.b16 %v2382
        %v3129 = vpack.c.b16 %v3115, %v3113
        %v3130 = vpack.c.b16 %v3116, %v3114
        %v3131 = vpack.c.b16 %v3119, %v3117
        %v3132 = vpack.c.b16 %v3120, %v3118
        %v3133 = vpack.c.b16 %v3123, %v3121
        %v3134 = vpack.c.b16 %v3124, %v3122
        %v3135 = vpack.c.b16 %v3127, %v3125
        %v3136 = vpack.c.b16 %v3128, %v3126
        %v3146 = vsel %vm2227, %v3093, 0
        %3148 = vmatprep.subr.bf16.mxu0 %v3130
        %3149 = vmatpush1.bf16.msra.mxu0 %v3129
        %3150 = vmatprep.subr.bf16.mxu0 %v3132
        %3151 = vmatpush1.bf16.msra.mxu0 %v3131
        %3152 = vmatprep.subr.bf16.mxu0 %v3134
        %3153 = vmatpush1.bf16.msra.mxu0 %v3133
        %3154 = vmatprep.subr.bf16.mxu0 %v3136
        %3155 = vmatpush1.bf16.msra.mxu0 %v3135
        %3156 = vmatprep.subr.bf16.mxu0 0
        %3157 = vmatpush1.bf16.msra.mxu0 0
        %3158 = vmatprep.subr.bf16.mxu0 0
        %3159 = vmatpush1.bf16.msra.mxu0 0
        %3160 = vmatprep.subr.bf16.mxu0 0
        %3161 = vmatpush1.bf16.msra.mxu0 0
        %3162 = vmatprep.subr.bf16.mxu0 0
        %3163 = vmatpush1.bf16.msra.mxu0 0
        %3164 = vmatprep.subr.bf16.mxu0 0
        %3165 = vmatpush1.bf16.msra.mxu0 0
        %3166 = vmatprep.subr.bf16.mxu0 0
        %3167 = vmatpush1.bf16.msra.mxu0 0
        %3168 = vmatprep.subr.bf16.mxu0 0
        %3169 = vmatpush1.bf16.msra.mxu0 0
        %3170 = vmatprep.subr.bf16.mxu0 0
        %3171 = vmatpush1.bf16.msra.mxu0 0
        %3172 = vmatprep.subr.bf16.mxu0 0
        %3173 = vmatpush1.bf16.msra.mxu0 0
        %3174 = vmatprep.subr.bf16.mxu0 0
        %3175 = vmatpush1.bf16.msra.mxu0 0
        %3176 = vmatprep.subr.bf16.mxu0 0
        %3177 = vmatpush1.bf16.msra.mxu0 0
        %3178 = vmatprep.subr.bf16.mxu0 0
        %3179 = vmatpush1.bf16.msra.mxu0 0
        %3180 = vmatprep.mubr.bf16.mxu0 0
        %3181 = vmatmul.mubr.bf16.gmra.mrb[0].mxu0 %v3146
        %v3182 = vpop.f32.mrb[0].mxu0
        %v3183 = vadd.f32 %v3098, %v3182
        %v3184 = vpop.f32.mrb[0].mxu0
        %v3185 = vadd.f32 %v3102, %v3184
        %v3186 = vpop.f32.mrb[0].mxu0
        %v3187 = vpop.f32.mrb[0].mxu0
        %3188 = vdwg.mxu0
        %v3189 = vmul.f32 %v3183, 0.5
        %v3190 = vmul.f32 %v3185, 0.5
        %v3191 = vmul.f32 %v3183, 0.70710677
        %v3192 = vmul.f32 %v3185, 0.70710677
        %v3193 = verf.f32.pop %v3191
        %v3194 = verf.f32.pop %v3192
        %v3195 = vadd.f32 %v3193, 1.0
        %v3196 = vadd.f32 %v3194, 1.0
        %v3197 = vmul.f32 %v3189, %v3195
        %v3198 = vmul.f32 %v3190, %v3196
        %v3199 = vpack.c.bf16 %v3197, %v3197
        %v3200 = vpack.c.bf16 %v3198, %v3198
        %v3233 = vunpack.c.l.b16 %v2383
        %v3234 = vunpack.c.l.b16 %v2384
        %v3235 = vunpack.c.l.b16 %v2385
        %v3236 = vunpack.c.l.b16 %v2386
        %v3237 = vunpack.c.l.b16 %v2387
        %v3238 = vunpack.c.l.b16 %v2388
        %v3239 = vunpack.c.l.b16 %v2389
        %v3240 = vunpack.c.l.b16 %v2390
        %v3241 = vunpack.c.l.b16 %v2391
        %v3242 = vunpack.c.l.b16 %v2392
        %v3243 = vunpack.c.l.b16 %v2393
        %v3244 = vunpack.c.l.b16 %v2394
        %v3245 = vunpack.c.l.b16 %v2395
        %v3246 = vunpack.c.l.b16 %v2396
        %v3247 = vunpack.c.l.b16 %v2397
        %v3248 = vunpack.c.l.b16 %v2398
        %v3249 = vunpack.c.l.b16 %v2399
        %v3250 = vunpack.c.l.b16 %v2400
        %v3251 = vunpack.c.l.b16 %v2401
        %v3252 = vunpack.c.l.b16 %v2402
        %v3253 = vunpack.c.l.b16 %v2403
        %v3254 = vunpack.c.l.b16 %v2404
        %v3255 = vunpack.c.l.b16 %v2405
        %v3256 = vunpack.c.l.b16 %v2406
        %v3257 = vunpack.c.l.b16 %v2407
        %v3258 = vunpack.c.l.b16 %v2408
        %v3259 = vunpack.c.l.b16 %v2409
        %v3260 = vunpack.c.l.b16 %v2410
        %v3261 = vunpack.c.l.b16 %v2411
        %v3262 = vunpack.c.l.b16 %v2412
        %v3263 = vunpack.c.l.b16 %v2413
        %v3264 = vunpack.c.l.b16 %v2414
        %v3265 = vpack.c.b16 %v3234, %v3233
        %v3266 = vpack.c.b16 %v3236, %v3235
        %v3267 = vpack.c.b16 %v3238, %v3237
        %v3268 = vpack.c.b16 %v3240, %v3239
        %v3269 = vpack.c.b16 %v3242, %v3241
        %v3270 = vpack.c.b16 %v3244, %v3243
        %v3271 = vpack.c.b16 %v3246, %v3245
        %v3272 = vpack.c.b16 %v3248, %v3247
        %v3273 = vpack.c.b16 %v3250, %v3249
        %v3274 = vpack.c.b16 %v3252, %v3251
        %v3275 = vpack.c.b16 %v3254, %v3253
        %v3276 = vpack.c.b16 %v3256, %v3255
        %v3277 = vpack.c.b16 %v3258, %v3257
        %v3278 = vpack.c.b16 %v3260, %v3259
        %v3279 = vpack.c.b16 %v3262, %v3261
        %v3280 = vpack.c.b16 %v3264, %v3263
        %3297 = vmatprep.subr.bf16.mxu0 0
        %3298 = vmatpush1.bf16.msra.mxu0 %v3265
        %3299 = vmatprep.subr.bf16.mxu0 0
        %3300 = vmatpush1.bf16.msra.mxu0 %v3266
        %3301 = vmatprep.subr.bf16.mxu0 0
        %3302 = vmatpush1.bf16.msra.mxu0 %v3267
        %3303 = vmatprep.subr.bf16.mxu0 0
        %3304 = vmatpush1.bf16.msra.mxu0 %v3268
        %3305 = vmatprep.subr.bf16.mxu0 0
        %3306 = vmatpush1.bf16.msra.mxu0 %v3269
        %3307 = vmatprep.subr.bf16.mxu0 0
        %3308 = vmatpush1.bf16.msra.mxu0 %v3270
        %3309 = vmatprep.subr.bf16.mxu0 0
        %3310 = vmatpush1.bf16.msra.mxu0 %v3271
        %3311 = vmatprep.subr.bf16.mxu0 0
        %3312 = vmatpush1.bf16.msra.mxu0 %v3272
        %3313 = vmatprep.subr.bf16.mxu0 0
        %3314 = vmatpush1.bf16.msra.mxu0 %v3273
        %3315 = vmatprep.subr.bf16.mxu0 0
        %3316 = vmatpush1.bf16.msra.mxu0 %v3274
        %3317 = vmatprep.subr.bf16.mxu0 0
        %3318 = vmatpush1.bf16.msra.mxu0 %v3275
        %3319 = vmatprep.subr.bf16.mxu0 0
        %3320 = vmatpush1.bf16.msra.mxu0 %v3276
        %3321 = vmatprep.subr.bf16.mxu0 0
        %3322 = vmatpush1.bf16.msra.mxu0 %v3277
        %3323 = vmatprep.subr.bf16.mxu0 0
        %3324 = vmatpush1.bf16.msra.mxu0 %v3278
        %3325 = vmatprep.subr.bf16.mxu0 0
        %3326 = vmatpush1.bf16.msra.mxu0 %v3279
        %3327 = vmatprep.subr.bf16.mxu0 0
        %3328 = vmatpush1.bf16.msra.mxu0 %v3280
        %3329 = vmatprep.mubr.bf16.mxu0 %v3200
        %3330 = vmatmul.mubr.bf16.gmra.mrb[0].mxu0 %v3199
        %v3331 = vpop.f32.mrb[0].mxu0
        %v3332 = vadd.f32 %v2424, %v3331
        %v3333 = vpop.f32.mrb[0].mxu0
        %v3334 = vpop.f32.mrb[0].mxu0
        %v3335 = vpop.f32.mrb[0].mxu0
        %3336 = vdwg.mxu0
        %v3337 = vadd.f32 %v3077, %v3332
        %s3338 = scalar_lea.vmem %s3, 8
        %v3339 = vld [vmem:[%s3338] sm:$0x3]
        %v3340 = vld [vmem:[%s3338 + $0x2] sm:$0x3]
        %v3341 = vld [vmem:[%s3338 + $0x4] sm:$0x3]
        %v3342 = vld [vmem:[%s3338 + $0x6] sm:$0x3]
        %s3343 = scalar_lea.vmem %s11, 64
        %v3344 = vld [vmem:[%s3343] sm:$0xff]
        %v3345 = vld [vmem:[%s3343 + $0x8] sm:$0xff]
        %v3346 = vld [vmem:[%s3343 + $0x10] sm:$0xff]
        %v3347 = vld [vmem:[%s3343 + $0x18] sm:$0xff]
        %v3348 = vld [vmem:[%s3343 + $0x20] sm:$0xff]
        %v3349 = vld [vmem:[%s3343 + $0x28] sm:$0xff]
        %v3350 = vld [vmem:[%s3343 + $0x30] sm:$0xff]
        %v3351 = vld [vmem:[%s3343 + $0x38] sm:$0xff]
        %s3352 = scalar_lea.vmem %s12, 32
        %v3353 = vld [vmem:[%s3352] sm:$0xf]
        %v3354 = vld [vmem:[%s3352 + $0x4] sm:$0xf]
        %v3355 = vld [vmem:[%s3352 + $0x8] sm:$0xf]
        %v3356 = vld [vmem:[%s3352 + $0xc] sm:$0xf]
        %v3357 = vld [vmem:[%s3352 + $0x10] sm:$0xf]
        %v3358 = vld [vmem:[%s3352 + $0x14] sm:$0xf]
        %v3359 = vld [vmem:[%s3352 + $0x18] sm:$0xf]
        %v3360 = vld [vmem:[%s3352 + $0x1c] sm:$0xf]
        %s3361 = scalar_lea.vmem %s13, 64
        %v3362 = vld [vmem:[%s3361] sm:$0xff]
        %v3363 = vld [vmem:[%s3361 + $0x8] sm:$0xff]
        %v3364 = vld [vmem:[%s3361 + $0x10] sm:$0xff]
        %v3365 = vld [vmem:[%s3361 + $0x18] sm:$0xff]
        %v3366 = vld [vmem:[%s3361 + $0x20] sm:$0xff]
        %v3367 = vld [vmem:[%s3361 + $0x28] sm:$0xff]
        %v3368 = vld [vmem:[%s3361 + $0x30] sm:$0xff]
        %v3369 = vld [vmem:[%s3361 + $0x38] sm:$0xff]
        %s3370 = scalar_lea.vmem %s14, 128
        %v3371 = vld [vmem:[%s3370] sm:$0xf]
        %v3372 = vld [vmem:[%s3370 + $0x4] sm:$0xf]
        %v3373 = vld [vmem:[%s3370 + $0x8] sm:$0xf]
        %v3374 = vld [vmem:[%s3370 + $0xc] sm:$0xf]
        %v3375 = vld [vmem:[%s3370 + $0x10] sm:$0xf]
        %v3376 = vld [vmem:[%s3370 + $0x14] sm:$0xf]
        %v3377 = vld [vmem:[%s3370 + $0x18] sm:$0xf]
        %v3378 = vld [vmem:[%s3370 + $0x1c] sm:$0xf]
        %v3379 = vld [vmem:[%s3370 + $0x20] sm:$0xf]
        %v3380 = vld [vmem:[%s3370 + $0x24] sm:$0xf]
        %v3381 = vld [vmem:[%s3370 + $0x28] sm:$0xf]
        %v3382 = vld [vmem:[%s3370 + $0x2c] sm:$0xf]
        %v3383 = vld [vmem:[%s3370 + $0x30] sm:$0xf]
        %v3384 = vld [vmem:[%s3370 + $0x34] sm:$0xf]
        %v3385 = vld [vmem:[%s3370 + $0x38] sm:$0xf]
        %v3386 = vld [vmem:[%s3370 + $0x3c] sm:$0xf]
        %v3387 = vld [vmem:[%s3370 + $0x40] sm:$0xf]
        %v3388 = vld [vmem:[%s3370 + $0x44] sm:$0xf]
        %v3389 = vld [vmem:[%s3370 + $0x48] sm:$0xf]
        %v3390 = vld [vmem:[%s3370 + $0x4c] sm:$0xf]
        %v3391 = vld [vmem:[%s3370 + $0x50] sm:$0xf]
        %v3392 = vld [vmem:[%s3370 + $0x54] sm:$0xf]
        %v3393 = vld [vmem:[%s3370 + $0x58] sm:$0xf]
        %v3394 = vld [vmem:[%s3370 + $0x5c] sm:$0xf]
        %v3395 = vld [vmem:[%s3370 + $0x60] sm:$0xf]
        %v3396 = vld [vmem:[%s3370 + $0x64] sm:$0xf]
        %v3397 = vld [vmem:[%s3370 + $0x68] sm:$0xf]
        %v3398 = vld [vmem:[%s3370 + $0x6c] sm:$0xf]
        %v3399 = vld [vmem:[%s3370 + $0x70] sm:$0xf]
        %v3400 = vld [vmem:[%s3370 + $0x74] sm:$0xf]
        %v3401 = vld [vmem:[%s3370 + $0x78] sm:$0xf]
        %v3402 = vld [vmem:[%s3370 + $0x7c] sm:$0xf]
        %v3403 = vld [vmem:[%s1 + $0x35] ss:$0 sm:$0xff]
        %v3404 = vld [vmem:[%s1 + $0x36] ss:$0 sm:$0xff]
        %s3405 = scalar_lea.vmem %s1, 55
        %v3406 = vld [vmem:[%s3405] ss:$8 sm:$0x3]
        %v3407 = vld [vmem:[%s1 + $0x40] ss:$0 sm:$0xff]
        %v3408 = vld [vmem:[%s1 + $0x41] ss:$0 sm:$0xff]
        %v3409 = vld [vmem:[%s1 + $0x42] ss:$0 sm:$0xff]
        %s3410 = scalar_lea.vmem %s1, 67
        %v3411 = vld [vmem:[%s3410] ss:$8 sm:$0x3]
        %v3412 = vld [vmem:[%s1 + $0x44] ss:$0 sm:$0xff]
        %v3413 = vsel %vm2425, %v3337, 0.0
        %3414 = vadd.xlane.f32.xlu0 %v3413
        %v3415 = vpop.xlane.xlu0 %3414
        %v3416 = vmul.f32 %v3415, %v2429
        %v3417 = vsub.f32 %v3337, %v3416
        %v3418 = vmul.f32 %v3417, %v3417
        %v3419 = vsel %vm2425, %v3418, 0.0
        %3420 = vadd.xlane.f32.xlu0 %v3419
        %v3421 = vpop.xlane.xlu0 %3420
        %v3422 = vmul.f32 %v3421, %v2429
        %v3423 = vadd.f32 %v3422, 1e-05
        %v3424 = vrsqrt.pop %v3423
        %v3425 = vmul.f32 %v3417, %v3424
        %v3426 = vmul.f32 %v3425, %v3403
        %v3427 = vadd.f32 %v3426, %v3404
        %v3428 = vpack.c.bf16 %v3427, %v3427
        %v3430 = vlaneseq
        %v3431 = vshrl.u32 %v3430, 7
        %v3432 = vsub.s32 0, %v3431
        %v3433 = vrot.slane %v3406, %v3432
        %v3434 = vlaneseq
        %v3435 = vshrl.u32 %v3434, 7
        %v3436 = vsub.s32 1, %v3435
        %v3437 = vrot.slane %v3406, %v3436
        %v3448 = vunpack.c.l.b16 %v3344
        %v3449 = vunpack.c.h.b16 %v3344
        %v3450 = vunpack.c.l.b16 %v3345
        %v3451 = vunpack.c.h.b16 %v3345
        %v3452 = vunpack.c.l.b16 %v3346
        %v3453 = vunpack.c.h.b16 %v3346
        %v3454 = vunpack.c.l.b16 %v3347
        %v3455 = vunpack.c.h.b16 %v3347
        %v3456 = vunpack.c.l.b16 %v3348
        %v3457 = vunpack.c.h.b16 %v3348
        %v3458 = vunpack.c.l.b16 %v3349
        %v3459 = vunpack.c.h.b16 %v3349
        %v3460 = vunpack.c.l.b16 %v3350
        %v3461 = vunpack.c.h.b16 %v3350
        %v3462 = vunpack.c.l.b16 %v3351
        %v3463 = vunpack.c.h.b16 %v3351
        %v3464 = vpack.c.b16 %v3450, %v3448
        %v3465 = vpack.c.b16 %v3451, %v3449
        %v3466 = vpack.c.b16 %v3454, %v3452
        %v3467 = vpack.c.b16 %v3455, %v3453
        %v3468 = vpack.c.b16 %v3458, %v3456
        %v3469 = vpack.c.b16 %v3459, %v3457
        %v3470 = vpack.c.b16 %v3462, %v3460
        %v3471 = vpack.c.b16 %v3463, %v3461
        %v3481 = vsel %vm2227, %v3428, 0
        %3483 = vmatprep.subr.bf16.mxu0 %v3465
        %3484 = vmatpush1.bf16.msra.mxu0 %v3464
        %3485 = vmatprep.subr.bf16.mxu0 %v3467
        %3486 = vmatpush1.bf16.msra.mxu0 %v3466
        %3487 = vmatprep.subr.bf16.mxu0 %v3469
        %3488 = vmatpush1.bf16.msra.mxu0 %v3468
        %3489 = vmatprep.subr.bf16.mxu0 %v3471
        %3490 = vmatpush1.bf16.msra.mxu0 %v3470
        %3491 = vmatprep.subr.bf16.mxu0 0
        %3492 = vmatpush1.bf16.msra.mxu0 0
        %3493 = vmatprep.subr.bf16.mxu0 0
        %3494 = vmatpush1.bf16.msra.mxu0 0
        %3495 = vmatprep.subr.bf16.mxu0 0
        %3496 = vmatpush1.bf16.msra.mxu0 0
        %3497 = vmatprep.subr.bf16.mxu0 0
        %3498 = vmatpush1.bf16.msra.mxu0 0
        %3499 = vmatprep.subr.bf16.mxu0 0
        %3500 = vmatpush1.bf16.msra.mxu0 0
        %3501 = vmatprep.subr.bf16.mxu0 0
        %3502 = vmatpush1.bf16.msra.mxu0 0
        %3503 = vmatprep.subr.bf16.mxu0 0
        %3504 = vmatpush1.bf16.msra.mxu0 0
        %3505 = vmatprep.subr.bf16.mxu0 0
        %3506 = vmatpush1.bf16.msra.mxu0 0
        %3507 = vmatprep.subr.bf16.mxu0 0
        %3508 = vmatpush1.bf16.msra.mxu0 0
        %3509 = vmatprep.subr.bf16.mxu0 0
        %3510 = vmatpush1.bf16.msra.mxu0 0
        %3511 = vmatprep.subr.bf16.mxu0 0
        %3512 = vmatpush1.bf16.msra.mxu0 0
        %3513 = vmatprep.subr.bf16.mxu0 0
        %3514 = vmatpush1.bf16.msra.mxu0 0
        %3515 = vmatprep.mubr.bf16.mxu0 0
        %3516 = vmatmul.mubr.bf16.gmra.mrb[0].mxu0 %v3481
        %v3517 = vpop.f32.mrb[0].mxu0
        %v3518 = vadd.f32 %v3433, %v3517
        %v3519 = vpop.f32.mrb[0].mxu0
        %v3520 = vadd.f32 %v3437, %v3519
        %v3521 = vpop.f32.mrb[0].mxu0
        %v3522 = vpop.f32.mrb[0].mxu0
        %3523 = vdwg.mxu0
        %v3524 = vpack.c.bf16 %v3518, %v3518
        %v3525 = vpack.c.bf16 %v3520, %v3520
        %3527 = vrot.lane.b32.xlu0 %v3524, 64
        %v3528 = vpop.permute.xlu0 %3527
        %v3530 = vsel %vm758, %v3524, 0
        %v3533 = vsel %vm758, %v3528, 0
        %3535 = vmatprep.subr.bf16.mxu0 0
        %3536 = vmatpush1.bf16.xpose.msra.mxu0 %v3533
        %3537 = vmatprep.subr.bf16.mxu0 0
        %3538 = vmatpush1.bf16.xpose.msra.mxu0 0
        %3539 = vmatprep.subr.bf16.mxu0 0
        %3540 = vmatpush1.bf16.xpose.msra.mxu0 0
        %3541 = vmatprep.subr.bf16.mxu0 0
        %3542 = vmatpush1.bf16.xpose.msra.mxu0 0
        %3543 = vmatprep.subr.bf16.mxu0 0
        %3544 = vmatpush1.bf16.xpose.msra.mxu0 0
        %3545 = vmatprep.subr.bf16.mxu0 0
        %3546 = vmatpush1.bf16.xpose.msra.mxu0 0
        %3547 = vmatprep.subr.bf16.mxu0 0
        %3548 = vmatpush1.bf16.xpose.msra.mxu0 0
        %3549 = vmatprep.subr.bf16.mxu0 0
        %3550 = vmatpush1.bf16.xpose.msra.mxu0 0
        %3551 = vmatprep.subr.bf16.mxu0 0
        %3552 = vmatpush1.bf16.xpose.msra.mxu0 0
        %3553 = vmatprep.subr.bf16.mxu0 0
        %3554 = vmatpush1.bf16.xpose.msra.mxu0 0
        %3555 = vmatprep.subr.bf16.mxu0 0
        %3556 = vmatpush1.bf16.xpose.msra.mxu0 0
        %3557 = vmatprep.subr.bf16.mxu0 0
        %3558 = vmatpush1.bf16.xpose.msra.mxu0 0
        %3559 = vmatprep.subr.bf16.mxu0 0
        %3560 = vmatpush1.bf16.xpose.msra.mxu0 0
        %3561 = vmatprep.subr.bf16.mxu0 0
        %3562 = vmatpush1.bf16.xpose.msra.mxu0 0
        %3563 = vmatprep.subr.bf16.mxu0 0
        %3564 = vmatpush1.bf16.xpose.msra.mxu0 0
        %3565 = vmatprep.subr.bf16.mxu0 0
        %3566 = vmatpush1.bf16.xpose.msra.mxu0 0
        %3567 = vmatprep.mubr.bf16.mxu0 0
        %3568 = vmatmul.mubr.bf16.gmra.mrb[0].mxu0 %v3530
        %v3569 = vpop.f32.mrb[0].mxu0
        %v3570 = vadd.f32 0.0, %v3569
        %v3571 = vpop.f32.mrb[0].mxu0
        %v3572 = vpop.f32.mrb[0].mxu0
        %v3573 = vpop.f32.mrb[0].mxu0
        %3574 = vdwg.mxu0
        %v3575 = vmul.f32 %v3570, 0.25
        %v3576 = vunpack.c.l.bf16 %v3339
        %v3577 = vadd.f32 %v3575, %v3576
        %v3578 = vsel %vm2592, %v3577, -inf
        %3579 = vmax.xlane.f32.xlu0 %v3578
        %v3580 = vpop.xlane.xlu0 %3579
        %v3581 = vsub.f32 %v3577, %v3580
        %v3582 = vmul.f32 %v3581, 1.442695
        %v3583 = vpow.pop %v3582
        %v3584 = vsel %vm2592, %v3583, 0.0
        %3585 = vadd.xlane.f32.xlu0 %v3584
        %v3586 = vpop.xlane.xlu0 %3585
        %v3587 = vrcp.pop %v3586
        %v3588 = vmul.f32 %v3583, %v3587
        %v3589 = vpack.c.bf16 %v3588, %v3588
        %v3591 = vsel %vm2605, %v3589, 0
        %v3594 = vsel %vm2609, %v3525, 0
        %3596 = vmatprep.subr.bf16.mxu0 0
        %3597 = vmatpush1.bf16.msra.mxu0 %v3594
        %3598 = vmatprep.subr.bf16.mxu0 0
        %3599 = vmatpush1.bf16.msra.mxu0 0
        %3600 = vmatprep.subr.bf16.mxu0 0
        %3601 = vmatpush1.bf16.msra.mxu0 0
        %3602 = vmatprep.subr.bf16.mxu0 0
        %3603 = vmatpush1.bf16.msra.mxu0 0
        %3604 = vmatprep.subr.bf16.mxu0 0
        %3605 = vmatpush1.bf16.msra.mxu0 0
        %3606 = vmatprep.subr.bf16.mxu0 0
        %3607 = vmatpush1.bf16.msra.mxu0 0
        %3608 = vmatprep.subr.bf16.mxu0 0
        %3609 = vmatpush1.bf16.msra.mxu0 0
        %3610 = vmatprep.subr.bf16.mxu0 0
        %3611 = vmatpush1.bf16.msra.mxu0 0
        %3612 = vmatprep.subr.bf16.mxu0 0
        %3613 = vmatpush1.bf16.msra.mxu0 0
        %3614 = vmatprep.subr.bf16.mxu0 0
        %3615 = vmatpush1.bf16.msra.mxu0 0
        %3616 = vmatprep.subr.bf16.mxu0 0
        %3617 = vmatpush1.bf16.msra.mxu0 0
        %3618 = vmatprep.subr.bf16.mxu0 0
        %3619 = vmatpush1.bf16.msra.mxu0 0
        %3620 = vmatprep.subr.bf16.mxu0 0
        %3621 = vmatpush1.bf16.msra.mxu0 0
        %3622 = vmatprep.subr.bf16.mxu0 0
        %3623 = vmatpush1.bf16.msra.mxu0 0
        %3624 = vmatprep.subr.bf16.mxu0 0
        %3625 = vmatpush1.bf16.msra.mxu0 0
        %3626 = vmatprep.subr.bf16.mxu0 0
        %3627 = vmatpush1.bf16.msra.mxu0 0
        %3628 = vmatprep.mubr.bf16.mxu0 0
        %3629 = vmatmul.mubr.bf16.gmra.mrb[0].mxu0 %v3591
        %v3630 = vpop.f32.mrb[0].mxu0
        %v3631 = vadd.f32 0.0, %v3630
        %v3632 = vpop.f32.mrb[0].mxu0
        %v3633 = vpop.f32.mrb[0].mxu0
        %v3634 = vpop.f32.mrb[0].mxu0
        %3635 = vdwg.mxu0
        %3636 = vrot.lane.b32.xlu0 %v3524, 112
        %v3637 = vpop.permute.xlu0 %3636
        %3638 = vrot.lane.b32.xlu0 %v3524, 48
        %v3639 = vpop.permute.xlu0 %3638
        %v3641 = vsel %vm758, %v3637, 0
        %v3644 = vsel %vm758, %v3639, 0
        %3646 = vmatprep.subr.bf16.mxu0 0
        %3647 = vmatpush1.bf16.xpose.msra.mxu0 %v3644
        %3648 = vmatprep.subr.bf16.mxu0 0
        %3649 = vmatpush1.bf16.xpose.msra.mxu0 0
        %3650 = vmatprep.subr.bf16.mxu0 0
        %3651 = vmatpush1.bf16.xpose.msra.mxu0 0
        %3652 = vmatprep.subr.bf16.mxu0 0
        %3653 = vmatpush1.bf16.xpose.msra.mxu0 0
        %3654 = vmatprep.subr.bf16.mxu0 0
        %3655 = vmatpush1.bf16.xpose.msra.mxu0 0
        %3656 = vmatprep.subr.bf16.mxu0 0
        %3657 = vmatpush1.bf16.xpose.msra.mxu0 0
        %3658 = vmatprep.subr.bf16.mxu0 0
        %3659 = vmatpush1.bf16.xpose.msra.mxu0 0
        %3660 = vmatprep.subr.bf16.mxu0 0
        %3661 = vmatpush1.bf16.xpose.msra.mxu0 0
        %3662 = vmatprep.subr.bf16.mxu0 0
        %3663 = vmatpush1.bf16.xpose.msra.mxu0 0
        %3664 = vmatprep.subr.bf16.mxu0 0
        %3665 = vmatpush1.bf16.xpose.msra.mxu0 0
        %3666 = vmatprep.subr.bf16.mxu0 0
        %3667 = vmatpush1.bf16.xpose.msra.mxu0 0
        %3668 = vmatprep.subr.bf16.mxu0 0
        %3669 = vmatpush1.bf16.xpose.msra.mxu0 0
        %3670 = vmatprep.subr.bf16.mxu0 0
        %3671 = vmatpush1.bf16.xpose.msra.mxu0 0
        %3672 = vmatprep.subr.bf16.mxu0 0
        %3673 = vmatpush1.bf16.xpose.msra.mxu0 0
        %3674 = vmatprep.subr.bf16.mxu0 0
        %3675 = vmatpush1.bf16.xpose.msra.mxu0 0
        %3676 = vmatprep.subr.bf16.mxu0 0
        %3677 = vmatpush1.bf16.xpose.msra.mxu0 0
        %3678 = vmatprep.mubr.bf16.mxu0 0
        %3679 = vmatmul.mubr.bf16.gmra.mrb[0].mxu0 %v3641
        %v3680 = vpop.f32.mrb[0].mxu0
        %v3681 = vadd.f32 0.0, %v3680
        %v3682 = vpop.f32.mrb[0].mxu0
        %v3683 = vpop.f32.mrb[0].mxu0
        %v3684 = vpop.f32.mrb[0].mxu0
        %3685 = vdwg.mxu0
        %v3686 = vmul.f32 %v3681, 0.25
        %v3687 = vunpack.c.l.bf16 %v3340
        %v3688 = vadd.f32 %v3686, %v3687
        %v3689 = vsel %vm2592, %v3688, -inf
        %3690 = vmax.xlane.f32.xlu0 %v3689
        %v3691 = vpop.xlane.xlu0 %3690
        %v3692 = vsub.f32 %v3688, %v3691
        %v3693 = vmul.f32 %v3692, 1.442695
        %v3694 = vpow.pop %v3693
        %v3695 = vsel %vm2592, %v3694, 0.0
        %3696 = vadd.xlane.f32.xlu0 %v3695
        %v3697 = vpop.xlane.xlu0 %3696
        %v3698 = vrcp.pop %v3697
        %v3699 = vmul.f32 %v3694, %v3698
        %v3700 = vpack.c.bf16 %v3699, %v3699
        %3702 = vrot.lane.b32.xlu0 %v3525, 112
        %v3703 = vpop.permute.xlu0 %3702
        %v3705 = vsel %vm2605, %v3700, 0
        %v3708 = vsel %vm2609, %v3703, 0
        %3710 = vmatprep.subr.bf16.mxu0 0
        %3711 = vmatpush1.bf16.msra.mxu0 %v3708
        %3712 = vmatprep.subr.bf16.mxu0 0
        %3713 = vmatpush1.bf16.msra.mxu0 0
        %3714 = vmatprep.subr.bf16.mxu0 0
        %3715 = vmatpush1.bf16.msra.mxu0 0
        %3716 = vmatprep.subr.bf16.mxu0 0
        %3717 = vmatpush1.bf16.msra.mxu0 0
        %3718 = vmatprep.subr.bf16.mxu0 0
        %3719 = vmatpush1.bf16.msra.mxu0 0
        %3720 = vmatprep.subr.bf16.mxu0 0
        %3721 = vmatpush1.bf16.msra.mxu0 0
        %3722 = vmatprep.subr.bf16.mxu0 0
        %3723 = vmatpush1.bf16.msra.mxu0 0
        %3724 = vmatprep.subr.bf16.mxu0 0
        %3725 = vmatpush1.bf16.msra.mxu0 0
        %3726 = vmatprep.subr.bf16.mxu0 0
        %3727 = vmatpush1.bf16.msra.mxu0 0
        %3728 = vmatprep.subr.bf16.mxu0 0
        %3729 = vmatpush1.bf16.msra.mxu0 0
        %3730 = vmatprep.subr.bf16.mxu0 0
        %3731 = vmatpush1.bf16.msra.mxu0 0
        %3732 = vmatprep.subr.bf16.mxu0 0
        %3733 = vmatpush1.bf16.msra.mxu0 0
        %3734 = vmatprep.subr.bf16.mxu0 0
        %3735 = vmatpush1.bf16.msra.mxu0 0
        %3736 = vmatprep.subr.bf16.mxu0 0
        %3737 = vmatpush1.bf16.msra.mxu0 0
        %3738 = vmatprep.subr.bf16.mxu0 0
        %3739 = vmatpush1.bf16.msra.mxu0 0
        %3740 = vmatprep.subr.bf16.mxu0 0
        %3741 = vmatpush1.bf16.msra.mxu0 0
        %3742 = vmatprep.mubr.bf16.mxu0 0
        %3743 = vmatmul.mubr.bf16.gmra.mrb[0].mxu0 %v3705
        %v3744 = vpop.f32.mrb[0].mxu0
        %v3745 = vadd.f32 0.0, %v3744
        %v3746 = vpop.f32.mrb[0].mxu0
        %v3747 = vpop.f32.mrb[0].mxu0
        %v3748 = vpop.f32.mrb[0].mxu0
        %3749 = vdwg.mxu0
        %3750 = vrot.lane.b32.xlu0 %v3524, 96
        %v3751 = vpop.permute.xlu0 %3750
        %3752 = vrot.lane.b32.xlu0 %v3524, 32
        %v3753 = vpop.permute.xlu0 %3752
        %v3755 = vsel %vm758, %v3751, 0
        %v3758 = vsel %vm758, %v3753, 0
        %3760 = vmatprep.subr.bf16.mxu0 0
        %3761 = vmatpush1.bf16.xpose.msra.mxu0 %v3758
        %3762 = vmatprep.subr.bf16.mxu0 0
        %3763 = vmatpush1.bf16.xpose.msra.mxu0 0
        %3764 = vmatprep.subr.bf16.mxu0 0
        %3765 = vmatpush1.bf16.xpose.msra.mxu0 0
        %3766 = vmatprep.subr.bf16.mxu0 0
        %3767 = vmatpush1.bf16.xpose.msra.mxu0 0
        %3768 = vmatprep.subr.bf16.mxu0 0
        %3769 = vmatpush1.bf16.xpose.msra.mxu0 0
        %3770 = vmatprep.subr.bf16.mxu0 0
        %3771 = vmatpush1.bf16.xpose.msra.mxu0 0
        %3772 = vmatprep.subr.bf16.mxu0 0
        %3773 = vmatpush1.bf16.xpose.msra.mxu0 0
        %3774 = vmatprep.subr.bf16.mxu0 0
        %3775 = vmatpush1.bf16.xpose.msra.mxu0 0
        %3776 = vmatprep.subr.bf16.mxu0 0
        %3777 = vmatpush1.bf16.xpose.msra.mxu0 0
        %3778 = vmatprep.subr.bf16.mxu0 0
        %3779 = vmatpush1.bf16.xpose.msra.mxu0 0
        %3780 = vmatprep.subr.bf16.mxu0 0
        %3781 = vmatpush1.bf16.xpose.msra.mxu0 0
        %3782 = vmatprep.subr.bf16.mxu0 0
        %3783 = vmatpush1.bf16.xpose.msra.mxu0 0
        %3784 = vmatprep.subr.bf16.mxu0 0
        %3785 = vmatpush1.bf16.xpose.msra.mxu0 0
        %3786 = vmatprep.subr.bf16.mxu0 0
        %3787 = vmatpush1.bf16.xpose.msra.mxu0 0
        %3788 = vmatprep.subr.bf16.mxu0 0
        %3789 = vmatpush1.bf16.xpose.msra.mxu0 0
        %3790 = vmatprep.subr.bf16.mxu0 0
        %3791 = vmatpush1.bf16.xpose.msra.mxu0 0
        %3792 = vmatprep.mubr.bf16.mxu0 0
        %3793 = vmatmul.mubr.bf16.gmra.mrb[0].mxu0 %v3755
        %v3794 = vpop.f32.mrb[0].mxu0
        %v3795 = vadd.f32 0.0, %v3794
        %v3796 = vpop.f32.mrb[0].mxu0
        %v3797 = vpop.f32.mrb[0].mxu0
        %v3798 = vpop.f32.mrb[0].mxu0
        %3799 = vdwg.mxu0
        %v3800 = vmul.f32 %v3795, 0.25
        %v3801 = vunpack.c.l.bf16 %v3341
        %v3802 = vadd.f32 %v3800, %v3801
        %v3803 = vsel %vm2592, %v3802, -inf
        %3804 = vmax.xlane.f32.xlu0 %v3803
        %v3805 = vpop.xlane.xlu0 %3804
        %v3806 = vsub.f32 %v3802, %v3805
        %v3807 = vmul.f32 %v3806, 1.442695
        %v3808 = vpow.pop %v3807
        %v3809 = vsel %vm2592, %v3808, 0.0
        %3810 = vadd.xlane.f32.xlu0 %v3809
        %v3811 = vpop.xlane.xlu0 %3810
        %v3812 = vrcp.pop %v3811
        %v3813 = vmul.f32 %v3808, %v3812
        %v3814 = vpack.c.bf16 %v3813, %v3813
        %3815 = vrot.lane.b32.xlu0 %v3525, 96
        %v3816 = vpop.permute.xlu0 %3815
        %v3818 = vsel %vm2605, %v3814, 0
        %v3821 = vsel %vm2609, %v3816, 0
        %3823 = vmatprep.subr.bf16.mxu0 0
        %3824 = vmatpush1.bf16.msra.mxu0 %v3821
        %3825 = vmatprep.subr.bf16.mxu0 0
        %3826 = vmatpush1.bf16.msra.mxu0 0
        %3827 = vmatprep.subr.bf16.mxu0 0
        %3828 = vmatpush1.bf16.msra.mxu0 0
        %3829 = vmatprep.subr.bf16.mxu0 0
        %3830 = vmatpush1.bf16.msra.mxu0 0
        %3831 = vmatprep.subr.bf16.mxu0 0
        %3832 = vmatpush1.bf16.msra.mxu0 0
        %3833 = vmatprep.subr.bf16.mxu0 0
        %3834 = vmatpush1.bf16.msra.mxu0 0
        %3835 = vmatprep.subr.bf16.mxu0 0
        %3836 = vmatpush1.bf16.msra.mxu0 0
        %3837 = vmatprep.subr.bf16.mxu0 0
        %3838 = vmatpush1.bf16.msra.mxu0 0
        %3839 = vmatprep.subr.bf16.mxu0 0
        %3840 = vmatpush1.bf16.msra.mxu0 0
        %3841 = vmatprep.subr.bf16.mxu0 0
        %3842 = vmatpush1.bf16.msra.mxu0 0
        %3843 = vmatprep.subr.bf16.mxu0 0
        %3844 = vmatpush1.bf16.msra.mxu0 0
        %3845 = vmatprep.subr.bf16.mxu0 0
        %3846 = vmatpush1.bf16.msra.mxu0 0
        %3847 = vmatprep.subr.bf16.mxu0 0
        %3848 = vmatpush1.bf16.msra.mxu0 0
        %3849 = vmatprep.subr.bf16.mxu0 0
        %3850 = vmatpush1.bf16.msra.mxu0 0
        %3851 = vmatprep.subr.bf16.mxu0 0
        %3852 = vmatpush1.bf16.msra.mxu0 0
        %3853 = vmatprep.subr.bf16.mxu0 0
        %3854 = vmatpush1.bf16.msra.mxu0 0
        %3855 = vmatprep.mubr.bf16.mxu0 0
        %3856 = vmatmul.mubr.bf16.gmra.mrb[0].mxu0 %v3818
        %v3857 = vpop.f32.mrb[0].mxu0
        %v3858 = vadd.f32 0.0, %v3857
        %v3859 = vpop.f32.mrb[0].mxu0
        %v3860 = vpop.f32.mrb[0].mxu0
        %v3861 = vpop.f32.mrb[0].mxu0
        %3862 = vdwg.mxu0
        %3863 = vrot.lane.b32.xlu0 %v3524, 80
        %v3864 = vpop.permute.xlu0 %3863
        %3865 = vrot.lane.b32.xlu0 %v3524, 16
        %v3866 = vpop.permute.xlu0 %3865
        %v3868 = vsel %vm758, %v3864, 0
        %v3871 = vsel %vm758, %v3866, 0
        %3873 = vmatprep.subr.bf16.mxu0 0
        %3874 = vmatpush1.bf16.xpose.msra.mxu0 %v3871
        %3875 = vmatprep.subr.bf16.mxu0 0
        %3876 = vmatpush1.bf16.xpose.msra.mxu0 0
        %3877 = vmatprep.subr.bf16.mxu0 0
        %3878 = vmatpush1.bf16.xpose.msra.mxu0 0
        %3879 = vmatprep.subr.bf16.mxu0 0
        %3880 = vmatpush1.bf16.xpose.msra.mxu0 0
        %3881 = vmatprep.subr.bf16.mxu0 0
        %3882 = vmatpush1.bf16.xpose.msra.mxu0 0
        %3883 = vmatprep.subr.bf16.mxu0 0
        %3884 = vmatpush1.bf16.xpose.msra.mxu0 0
        %3885 = vmatprep.subr.bf16.mxu0 0
        %3886 = vmatpush1.bf16.xpose.msra.mxu0 0
        %3887 = vmatprep.subr.bf16.mxu0 0
        %3888 = vmatpush1.bf16.xpose.msra.mxu0 0
        %3889 = vmatprep.subr.bf16.mxu0 0
        %3890 = vmatpush1.bf16.xpose.msra.mxu0 0
        %3891 = vmatprep.subr.bf16.mxu0 0
        %3892 = vmatpush1.bf16.xpose.msra.mxu0 0
        %3893 = vmatprep.subr.bf16.mxu0 0
        %3894 = vmatpush1.bf16.xpose.msra.mxu0 0
        %3895 = vmatprep.subr.bf16.mxu0 0
        %3896 = vmatpush1.bf16.xpose.msra.mxu0 0
        %3897 = vmatprep.subr.bf16.mxu0 0
        %3898 = vmatpush1.bf16.xpose.msra.mxu0 0
        %3899 = vmatprep.subr.bf16.mxu0 0
        %3900 = vmatpush1.bf16.xpose.msra.mxu0 0
        %3901 = vmatprep.subr.bf16.mxu0 0
        %3902 = vmatpush1.bf16.xpose.msra.mxu0 0
        %3903 = vmatprep.subr.bf16.mxu0 0
        %3904 = vmatpush1.bf16.xpose.msra.mxu0 0
        %3905 = vmatprep.mubr.bf16.mxu0 0
        %3906 = vmatmul.mubr.bf16.gmra.mrb[0].mxu0 %v3868
        %v3907 = vpop.f32.mrb[0].mxu0
        %v3908 = vadd.f32 0.0, %v3907
        %v3909 = vpop.f32.mrb[0].mxu0
        %v3910 = vpop.f32.mrb[0].mxu0
        %v3911 = vpop.f32.mrb[0].mxu0
        %3912 = vdwg.mxu0
        %v3913 = vmul.f32 %v3908, 0.25
        %v3914 = vunpack.c.l.bf16 %v3342
        %v3915 = vadd.f32 %v3913, %v3914
        %v3916 = vsel %vm2592, %v3915, -inf
        %3917 = vmax.xlane.f32.xlu0 %v3916
        %v3918 = vpop.xlane.xlu0 %3917
        %v3919 = vsub.f32 %v3915, %v3918
        %v3920 = vmul.f32 %v3919, 1.442695
        %v3921 = vpow.pop %v3920
        %v3922 = vsel %vm2592, %v3921, 0.0
        %3923 = vadd.xlane.f32.xlu0 %v3922
        %v3924 = vpop.xlane.xlu0 %3923
        %v3925 = vrcp.pop %v3924
        %v3926 = vmul.f32 %v3921, %v3925
        %v3927 = vpack.c.bf16 %v3926, %v3926
        %3928 = vrot.lane.b32.xlu0 %v3525, 80
        %v3929 = vpop.permute.xlu0 %3928
        %v3931 = vsel %vm2605, %v3927, 0
        %v3934 = vsel %vm2609, %v3929, 0
        %3936 = vmatprep.subr.bf16.mxu0 0
        %3937 = vmatpush1.bf16.msra.mxu0 %v3934
        %3938 = vmatprep.subr.bf16.mxu0 0
        %3939 = vmatpush1.bf16.msra.mxu0 0
        %3940 = vmatprep.subr.bf16.mxu0 0
        %3941 = vmatpush1.bf16.msra.mxu0 0
        %3942 = vmatprep.subr.bf16.mxu0 0
        %3943 = vmatpush1.bf16.msra.mxu0 0
        %3944 = vmatprep.subr.bf16.mxu0 0
        %3945 = vmatpush1.bf16.msra.mxu0 0
        %3946 = vmatprep.subr.bf16.mxu0 0
        %3947 = vmatpush1.bf16.msra.mxu0 0
        %3948 = vmatprep.subr.bf16.mxu0 0
        %3949 = vmatpush1.bf16.msra.mxu0 0
        %3950 = vmatprep.subr.bf16.mxu0 0
        %3951 = vmatpush1.bf16.msra.mxu0 0
        %3952 = vmatprep.subr.bf16.mxu0 0
        %3953 = vmatpush1.bf16.msra.mxu0 0
        %3954 = vmatprep.subr.bf16.mxu0 0
        %3955 = vmatpush1.bf16.msra.mxu0 0
        %3956 = vmatprep.subr.bf16.mxu0 0
        %3957 = vmatpush1.bf16.msra.mxu0 0
        %3958 = vmatprep.subr.bf16.mxu0 0
        %3959 = vmatpush1.bf16.msra.mxu0 0
        %3960 = vmatprep.subr.bf16.mxu0 0
        %3961 = vmatpush1.bf16.msra.mxu0 0
        %3962 = vmatprep.subr.bf16.mxu0 0
        %3963 = vmatpush1.bf16.msra.mxu0 0
        %3964 = vmatprep.subr.bf16.mxu0 0
        %3965 = vmatpush1.bf16.msra.mxu0 0
        %3966 = vmatprep.subr.bf16.mxu0 0
        %3967 = vmatpush1.bf16.msra.mxu0 0
        %3968 = vmatprep.mubr.bf16.mxu0 0
        %3969 = vmatmul.mubr.bf16.gmra.mrb[0].mxu0 %v3931
        %v3970 = vpop.f32.mrb[0].mxu0
        %v3971 = vadd.f32 0.0, %v3970
        %v3972 = vpop.f32.mrb[0].mxu0
        %v3973 = vpop.f32.mrb[0].mxu0
        %v3974 = vpop.f32.mrb[0].mxu0
        %3975 = vdwg.mxu0
        %3977 = vrot.lane.b32.xlu0 %v3745, 16
        %v3978 = vpop.permute.xlu0 %3977
        %3981 = vrot.lane.b32.xlu0 %v3858, 32
        %v3982 = vpop.permute.xlu0 %3981
        %3985 = vrot.lane.b32.xlu0 %v3971, 48
        %v3986 = vpop.permute.xlu0 %3985
        %v3988 = vsel %vm758, %v3631, %v3978
        %v3989 = vsel %vm595, %v3988, %v3982
        %v3990 = vsel %vm548, %v3989, %v3986
        %v3991 = vpack.c.bf16 %v3990, %v3990
        %v4000 = vunpack.c.l.b16 %v3353
        %v4001 = vunpack.c.l.b16 %v3354
        %v4002 = vunpack.c.l.b16 %v3355
        %v4003 = vunpack.c.l.b16 %v3356
        %v4004 = vunpack.c.l.b16 %v3357
        %v4005 = vunpack.c.l.b16 %v3358
        %v4006 = vunpack.c.l.b16 %v3359
        %v4007 = vunpack.c.l.b16 %v3360
        %v4008 = vpack.c.b16 %v4001, %v4000
        %v4009 = vpack.c.b16 %v4003, %v4002
        %v4010 = vpack.c.b16 %v4005, %v4004
        %v4011 = vpack.c.b16 %v4007, %v4006
        %v4017 = vsel %vm2227, %v3991, 0
        %4019 = vmatprep.subr.bf16.mxu0 0
        %4020 = vmatpush1.bf16.msra.mxu0 %v4008
        %4021 = vmatprep.subr.bf16.mxu0 0
        %4022 = vmatpush1.bf16.msra.mxu0 %v4009
        %4023 = vmatprep.subr.bf16.mxu0 0
        %4024 = vmatpush1.bf16.msra.mxu0 %v4010
        %4025 = vmatprep.subr.bf16.mxu0 0
        %4026 = vmatpush1.bf16.msra.mxu0 %v4011
        %4027 = vmatprep.subr.bf16.mxu0 0
        %4028 = vmatpush1.bf16.msra.mxu0 0
        %4029 = vmatprep.subr.bf16.mxu0 0
        %4030 = vmatpush1.bf16.msra.mxu0 0
        %4031 = vmatprep.subr.bf16.mxu0 0
        %4032 = vmatpush1.bf16.msra.mxu0 0
        %4033 = vmatprep.subr.bf16.mxu0 0
        %4034 = vmatpush1.bf16.msra.mxu0 0
        %4035 = vmatprep.subr.bf16.mxu0 0
        %4036 = vmatpush1.bf16.msra.mxu0 0
        %4037 = vmatprep.subr.bf16.mxu0 0
        %4038 = vmatpush1.bf16.msra.mxu0 0
        %4039 = vmatprep.subr.bf16.mxu0 0
        %4040 = vmatpush1.bf16.msra.mxu0 0
        %4041 = vmatprep.subr.bf16.mxu0 0
        %4042 = vmatpush1.bf16.msra.mxu0 0
        %4043 = vmatprep.subr.bf16.mxu0 0
        %4044 = vmatpush1.bf16.msra.mxu0 0
        %4045 = vmatprep.subr.bf16.mxu0 0
        %4046 = vmatpush1.bf16.msra.mxu0 0
        %4047 = vmatprep.subr.bf16.mxu0 0
        %4048 = vmatpush1.bf16.msra.mxu0 0
        %4049 = vmatprep.subr.bf16.mxu0 0
        %4050 = vmatpush1.bf16.msra.mxu0 0
        %4051 = vmatprep.mubr.bf16.mxu0 0
        %4052 = vmatmul.mubr.bf16.gmra.mrb[0].mxu0 %v4017
        %v4053 = vpop.f32.mrb[0].mxu0
        %v4054 = vadd.f32 0.0, %v4053
        %v4055 = vpop.f32.mrb[0].mxu0
        %v4056 = vpop.f32.mrb[0].mxu0
        %v4057 = vpop.f32.mrb[0].mxu0
        %4058 = vdwg.mxu0
        %v4059 = vadd.f32 %v3337, %v4054
        %v4060 = vadd.f32 %v4059, %v3407
        %v4061 = vsel %vm2425, %v4060, 0.0
        %4062 = vadd.xlane.f32.xlu0 %v4061
        %v4063 = vpop.xlane.xlu0 %4062
        %v4064 = vmul.f32 %v4063, %v2429
        %v4065 = vsub.f32 %v4060, %v4064
        %v4066 = vmul.f32 %v4065, %v4065
        %v4067 = vsel %vm2425, %v4066, 0.0
        %4068 = vadd.xlane.f32.xlu0 %v4067
        %v4069 = vpop.xlane.xlu0 %4068
        %v4070 = vmul.f32 %v4069, %v2429
        %v4071 = vadd.f32 %v4070, 1e-05
        %v4072 = vrsqrt.pop %v4071
        %v4073 = vmul.f32 %v4065, %v4072
        %v4074 = vmul.f32 %v4073, %v3408
        %v4075 = vadd.f32 %v4074, %v3409
        %v4076 = vpack.c.bf16 %v4075, %v4075
        %v4078 = vlaneseq
        %v4079 = vshrl.u32 %v4078, 7
        %v4080 = vsub.s32 0, %v4079
        %v4081 = vrot.slane %v3411, %v4080
        %v4082 = vlaneseq
        %v4083 = vshrl.u32 %v4082, 7
        %v4084 = vsub.s32 1, %v4083
        %v4085 = vrot.slane %v3411, %v4084
        %v4096 = vunpack.c.l.b16 %v3362
        %v4097 = vunpack.c.h.b16 %v3362
        %v4098 = vunpack.c.l.b16 %v3363
        %v4099 = vunpack.c.h.b16 %v3363
        %v4100 = vunpack.c.l.b16 %v3364
        %v4101 = vunpack.c.h.b16 %v3364
        %v4102 = vunpack.c.l.b16 %v3365
        %v4103 = vunpack.c.h.b16 %v3365
        %v4104 = vunpack.c.l.b16 %v3366
        %v4105 = vunpack.c.h.b16 %v3366
        %v4106 = vunpack.c.l.b16 %v3367
        %v4107 = vunpack.c.h.b16 %v3367
        %v4108 = vunpack.c.l.b16 %v3368
        %v4109 = vunpack.c.h.b16 %v3368
        %v4110 = vunpack.c.l.b16 %v3369
        %v4111 = vunpack.c.h.b16 %v3369
        %v4112 = vpack.c.b16 %v4098, %v4096
        %v4113 = vpack.c.b16 %v4099, %v4097
        %v4114 = vpack.c.b16 %v4102, %v4100
        %v4115 = vpack.c.b16 %v4103, %v4101
        %v4116 = vpack.c.b16 %v4106, %v4104
        %v4117 = vpack.c.b16 %v4107, %v4105
        %v4118 = vpack.c.b16 %v4110, %v4108
        %v4119 = vpack.c.b16 %v4111, %v4109
        %v4129 = vsel %vm2227, %v4076, 0
        %4131 = vmatprep.subr.bf16.mxu0 %v4113
        %4132 = vmatpush1.bf16.msra.mxu0 %v4112
        %4133 = vmatprep.subr.bf16.mxu0 %v4115
        %4134 = vmatpush1.bf16.msra.mxu0 %v4114
        %4135 = vmatprep.subr.bf16.mxu0 %v4117
        %4136 = vmatpush1.bf16.msra.mxu0 %v4116
        %4137 = vmatprep.subr.bf16.mxu0 %v4119
        %4138 = vmatpush1.bf16.msra.mxu0 %v4118
        %4139 = vmatprep.subr.bf16.mxu0 0
        %4140 = vmatpush1.bf16.msra.mxu0 0
        %4141 = vmatprep.subr.bf16.mxu0 0
        %4142 = vmatpush1.bf16.msra.mxu0 0
        %4143 = vmatprep.subr.bf16.mxu0 0
        %4144 = vmatpush1.bf16.msra.mxu0 0
        %4145 = vmatprep.subr.bf16.mxu0 0
        %4146 = vmatpush1.bf16.msra.mxu0 0
        %4147 = vmatprep.subr.bf16.mxu0 0
        %4148 = vmatpush1.bf16.msra.mxu0 0
        %4149 = vmatprep.subr.bf16.mxu0 0
        %4150 = vmatpush1.bf16.msra.mxu0 0
        %4151 = vmatprep.subr.bf16.mxu0 0
        %4152 = vmatpush1.bf16.msra.mxu0 0
        %4153 = vmatprep.subr.bf16.mxu0 0
        %4154 = vmatpush1.bf16.msra.mxu0 0
        %4155 = vmatprep.subr.bf16.mxu0 0
        %4156 = vmatpush1.bf16.msra.mxu0 0
        %4157 = vmatprep.subr.bf16.mxu0 0
        %4158 = vmatpush1.bf16.msra.mxu0 0
        %4159 = vmatprep.subr.bf16.mxu0 0
        %4160 = vmatpush1.bf16.msra.mxu0 0
        %4161 = vmatprep.subr.bf16.mxu0 0
        %4162 = vmatpush1.bf16.msra.mxu0 0
        %4163 = vmatprep.mubr.bf16.mxu0 0
        %4164 = vmatmul.mubr.bf16.gmra.mrb[0].mxu0 %v4129
        %v4165 = vpop.f32.mrb[0].mxu0
        %v4166 = vadd.f32 %v4081, %v4165
        %v4167 = vpop.f32.mrb[0].mxu0
        %v4168 = vadd.f32 %v4085, %v4167
        %v4169 = vpop.f32.mrb[0].mxu0
        %v4170 = vpop.f32.mrb[0].mxu0
        %4171 = vdwg.mxu0
        %v4172 = vmul.f32 %v4166, 0.5
        %v4173 = vmul.f32 %v4168, 0.5
        %v4174 = vmul.f32 %v4166, 0.70710677
        %v4175 = vmul.f32 %v4168, 0.70710677
        %v4176 = verf.f32.pop %v4174
        %v4177 = verf.f32.pop %v4175
        %v4178 = vadd.f32 %v4176, 1.0
        %v4179 = vadd.f32 %v4177, 1.0
        %v4180 = vmul.f32 %v4172, %v4178
        %v4181 = vmul.f32 %v4173, %v4179
        %v4182 = vpack.c.bf16 %v4180, %v4180
        %v4183 = vpack.c.bf16 %v4181, %v4181
        %v4216 = vunpack.c.l.b16 %v3371
        %v4217 = vunpack.c.l.b16 %v3372
        %v4218 = vunpack.c.l.b16 %v3373
        %v4219 = vunpack.c.l.b16 %v3374
        %v4220 = vunpack.c.l.b16 %v3375
        %v4221 = vunpack.c.l.b16 %v3376
        %v4222 = vunpack.c.l.b16 %v3377
        %v4223 = vunpack.c.l.b16 %v3378
        %v4224 = vunpack.c.l.b16 %v3379
        %v4225 = vunpack.c.l.b16 %v3380
        %v4226 = vunpack.c.l.b16 %v3381
        %v4227 = vunpack.c.l.b16 %v3382
        %v4228 = vunpack.c.l.b16 %v3383
        %v4229 = vunpack.c.l.b16 %v3384
        %v4230 = vunpack.c.l.b16 %v3385
        %v4231 = vunpack.c.l.b16 %v3386
        %v4232 = vunpack.c.l.b16 %v3387
        %v4233 = vunpack.c.l.b16 %v3388
        %v4234 = vunpack.c.l.b16 %v3389
        %v4235 = vunpack.c.l.b16 %v3390
        %v4236 = vunpack.c.l.b16 %v3391
        %v4237 = vunpack.c.l.b16 %v3392
        %v4238 = vunpack.c.l.b16 %v3393
        %v4239 = vunpack.c.l.b16 %v3394
        %v4240 = vunpack.c.l.b16 %v3395
        %v4241 = vunpack.c.l.b16 %v3396
        %v4242 = vunpack.c.l.b16 %v3397
        %v4243 = vunpack.c.l.b16 %v3398
        %v4244 = vunpack.c.l.b16 %v3399
        %v4245 = vunpack.c.l.b16 %v3400
        %v4246 = vunpack.c.l.b16 %v3401
        %v4247 = vunpack.c.l.b16 %v3402
        %v4248 = vpack.c.b16 %v4217, %v4216
        %v4249 = vpack.c.b16 %v4219, %v4218
        %v4250 = vpack.c.b16 %v4221, %v4220
        %v4251 = vpack.c.b16 %v4223, %v4222
        %v4252 = vpack.c.b16 %v4225, %v4224
        %v4253 = vpack.c.b16 %v4227, %v4226
        %v4254 = vpack.c.b16 %v4229, %v4228
        %v4255 = vpack.c.b16 %v4231, %v4230
        %v4256 = vpack.c.b16 %v4233, %v4232
        %v4257 = vpack.c.b16 %v4235, %v4234
        %v4258 = vpack.c.b16 %v4237, %v4236
        %v4259 = vpack.c.b16 %v4239, %v4238
        %v4260 = vpack.c.b16 %v4241, %v4240
        %v4261 = vpack.c.b16 %v4243, %v4242
        %v4262 = vpack.c.b16 %v4245, %v4244
        %v4263 = vpack.c.b16 %v4247, %v4246
        %4280 = vmatprep.subr.bf16.mxu0 0
        %4281 = vmatpush1.bf16.msra.mxu0 %v4248
        %4282 = vmatprep.subr.bf16.mxu0 0
        %4283 = vmatpush1.bf16.msra.mxu0 %v4249
        %4284 = vmatprep.subr.bf16.mxu0 0
        %4285 = vmatpush1.bf16.msra.mxu0 %v4250
        %4286 = vmatprep.subr.bf16.mxu0 0
        %4287 = vmatpush1.bf16.msra.mxu0 %v4251
        %4288 = vmatprep.subr.bf16.mxu0 0
        %4289 = vmatpush1.bf16.msra.mxu0 %v4252
        %4290 = vmatprep.subr.bf16.mxu0 0
        %4291 = vmatpush1.bf16.msra.mxu0 %v4253
        %4292 = vmatprep.subr.bf16.mxu0 0
        %4293 = vmatpush1.bf16.msra.mxu0 %v4254
        %4294 = vmatprep.subr.bf16.mxu0 0
        %4295 = vmatpush1.bf16.msra.mxu0 %v4255
        %4296 = vmatprep.subr.bf16.mxu0 0
        %4297 = vmatpush1.bf16.msra.mxu0 %v4256
        %4298 = vmatprep.subr.bf16.mxu0 0
        %4299 = vmatpush1.bf16.msra.mxu0 %v4257
        %4300 = vmatprep.subr.bf16.mxu0 0
        %4301 = vmatpush1.bf16.msra.mxu0 %v4258
        %4302 = vmatprep.subr.bf16.mxu0 0
        %4303 = vmatpush1.bf16.msra.mxu0 %v4259
        %4304 = vmatprep.subr.bf16.mxu0 0
        %4305 = vmatpush1.bf16.msra.mxu0 %v4260
        %4306 = vmatprep.subr.bf16.mxu0 0
        %4307 = vmatpush1.bf16.msra.mxu0 %v4261
        %4308 = vmatprep.subr.bf16.mxu0 0
        %4309 = vmatpush1.bf16.msra.mxu0 %v4262
        %4310 = vmatprep.subr.bf16.mxu0 0
        %4311 = vmatpush1.bf16.msra.mxu0 %v4263
        %4312 = vmatprep.mubr.bf16.mxu0 %v4183
        %4313 = vmatmul.mubr.bf16.gmra.mrb[0].mxu0 %v4182
        %v4314 = vpop.f32.mrb[0].mxu0
        %v4315 = vadd.f32 %v3412, %v4314
        %v4316 = vpop.f32.mrb[0].mxu0
        %v4317 = vpop.f32.mrb[0].mxu0
        %v4318 = vpop.f32.mrb[0].mxu0
        %4319 = vdwg.mxu0
        %v4320 = vadd.f32 %v4060, %v4315
        %v4321 = vld [vmem:[%s1 + $0x45] ss:$0 sm:$0xff]
        %v4322 = vld [vmem:[%s1 + $0x46] ss:$0 sm:$0xff]
        %v4323 = vsel %vm2425, %v4320, 0.0
        %4324 = vadd.xlane.f32.xlu0 %v4323
        %v4325 = vpop.xlane.xlu0 %4324
        %v4326 = vmul.f32 %v4325, %v2429
        %v4327 = vsub.f32 %v4320, %v4326
        %v4328 = vmul.f32 %v4327, %v4327
        %v4329 = vsel %vm2425, %v4328, 0.0
        %4330 = vadd.xlane.f32.xlu0 %v4329
        %v4331 = vpop.xlane.xlu0 %4330
        %v4332 = vmul.f32 %v4331, %v2429
        %v4333 = vadd.f32 %v4332, 1e-05
        %v4334 = vrsqrt.pop %v4333
        %v4335 = vmul.f32 %v4327, %v4334
        %v4336 = vmul.f32 %v4335, %v4321
        %v4337 = vadd.f32 %v4336, %v4322
        %v4338 = vsel %vm2425, %v4337, 0.0
        %v4339 = vrot.slane %v4338, 4
        %v4340 = vadd.f32 %v4338, %v4339
        %v4341 = vrot.slane %v4340, 2
        %v4342 = vadd.f32 %v4340, %v4341
        %v4343 = vrot.slane %v4342, 1
        %v4344 = vadd.f32 %v4342, %v4343
        %v4345 = vrcp.pop 4.0
        %v4346 = vmul.f32 %v4344, %v4345
        %v4347 = vpack.c.bf16 %v4346, %v4346
        %v4348 = vld [vmem:[%s15] sm:$0xf]
        %v4349 = vld [vmem:[%s15 + $0x4] sm:$0xf]
        %v4350 = vld [vmem:[%s15 + $0x8] sm:$0xf]
        %v4351 = vld [vmem:[%s15 + $0xc] sm:$0xf]
        %v4352 = vld [vmem:[%s15 + $0x10] sm:$0xf]
        %v4353 = vld [vmem:[%s15 + $0x14] sm:$0xf]
        %v4354 = vld [vmem:[%s15 + $0x18] sm:$0xf]
        %v4355 = vld [vmem:[%s15 + $0x1c] sm:$0xf]
        %v4356 = vld [vmem:[%s1 + $0x47] ss:$0 sm:$0xff]
        %v4365 = vunpack.c.l.b16 %v4348
        %v4366 = vunpack.c.l.b16 %v4349
        %v4367 = vunpack.c.l.b16 %v4350
        %v4368 = vunpack.c.l.b16 %v4351
        %v4369 = vunpack.c.l.b16 %v4352
        %v4370 = vunpack.c.l.b16 %v4353
        %v4371 = vunpack.c.l.b16 %v4354
        %v4372 = vunpack.c.l.b16 %v4355
        %v4373 = vpack.c.b16 %v4366, %v4365
        %v4374 = vpack.c.b16 %v4368, %v4367
        %v4375 = vpack.c.b16 %v4370, %v4369
        %v4376 = vpack.c.b16 %v4372, %v4371
        %v4382 = vsel %vm2227, %v4347, 0
        %4384 = vmatprep.subr.bf16.mxu0 0
        %4385 = vmatpush1.bf16.msra.mxu0 %v4373
        %4386 = vmatprep.subr.bf16.mxu0 0
        %4387 = vmatpush1.bf16.msra.mxu0 %v4374
        %4388 = vmatprep.subr.bf16.mxu0 0
        %4389 = vmatpush1.bf16.msra.mxu0 %v4375
        %4390 = vmatprep.subr.bf16.mxu0 0
        %4391 = vmatpush1.bf16.msra.mxu0 %v4376
        %4392 = vmatprep.subr.bf16.mxu0 0
        %4393 = vmatpush1.bf16.msra.mxu0 0
        %4394 = vmatprep.subr.bf16.mxu0 0
        %4395 = vmatpush1.bf16.msra.mxu0 0
        %4396 = vmatprep.subr.bf16.mxu0 0
        %4397 = vmatpush1.bf16.msra.mxu0 0
        %4398 = vmatprep.subr.bf16.mxu0 0
        %4399 = vmatpush1.bf16.msra.mxu0 0
        %4400 = vmatprep.subr.bf16.mxu0 0
        %4401 = vmatpush1.bf16.msra.mxu0 0
        %4402 = vmatprep.subr.bf16.mxu0 0
        %4403 = vmatpush1.bf16.msra.mxu0 0
        %4404 = vmatprep.subr.bf16.mxu0 0
        %4405 = vmatpush1.bf16.msra.mxu0 0
        %4406 = vmatprep.subr.bf16.mxu0 0
        %4407 = vmatpush1.bf16.msra.mxu0 0
        %4408 = vmatprep.subr.bf16.mxu0 0
        %4409 = vmatpush1.bf16.msra.mxu0 0
        %4410 = vmatprep.subr.bf16.mxu0 0
        %4411 = vmatpush1.bf16.msra.mxu0 0
        %4412 = vmatprep.subr.bf16.mxu0 0
        %4413 = vmatpush1.bf16.msra.mxu0 0
        %4414 = vmatprep.subr.bf16.mxu0 0
        %4415 = vmatpush1.bf16.msra.mxu0 0
        %4416 = vmatprep.mubr.bf16.mxu0 0
        %4417 = vmatmul.mubr.bf16.gmra.mrb[0].mxu0 %v4382
        %v4418 = vpop.f32.mrb[0].mxu0
        %v4419 = vadd.f32 %v4356, %v4418
        %v4420 = vpop.f32.mrb[0].mxu0
        %v4421 = vpop.f32.mrb[0].mxu0
        %v4422 = vpop.f32.mrb[0].mxu0
        %4423 = vdwg.mxu0
        %vm4424 = vcmask 73728
        %4425 = vst.msk [vmem:[%s513] sm:$0x1] %vm4424, %v4419
        %s4426 = sand.u32 %s379, 1
        %s4427 = scalar_lea.sflag [#allocation3], %s4426
        %s4428 = sand.u32 %s379, 1
        %s4429 = scalar_lea.vmem [#allocation2], %s4428
        // Predicated region
        $region85: #{swin_forward.1} parent=83 // pred_check
          %p4430 = pneg %p389
        $region86: #{swin_forward.1} parent=83 // pred_check_branch
          %4432 = sbr.rel (%p4430) target = $region88
        $region87: #{swin_forward.1} parent=83 // pred_region
          %s4434 = ssub.s32 16, 16
          %4435 = vsyncadd %s4427, %s4434
          %s4436 = smul.addr %s30, 16
          %s4437 = scalar_lea.hbm %s16, %s4436
          %s4439 = sshll.u32 %s4429, 4
          %s4440 = int_to_ptr.vmem [resolvable:$true] %s4439
          %4442 = dma.vmem_to_hbm [thread:$0]  %s4440, 16, %s4437, %s4427
        $region88: #{swin_forward.1} parent=83 // pred_fallthru
          _
      $region84: #{swin_forward.1} parent=5 // pred_fallthru
        _
      %p4443 = scmp.le.s32.totalorder 2, %s25
      // Predicated region
      $region89: #{swin_forward.1} parent=5 // pred_check
        %p4444 = pneg %p4443
      $region90: #{swin_forward.1} parent=5 // pred_check_branch
        %4446 = sbr.rel (%p4444) target = $region92
      $region91: #{swin_forward.1} parent=5 // pred_region
        %s4447 = ssub.s32 %s25, 2
        // Predicated region
        $region93: #{swin_forward.1} parent=91 // pred_check
          %p4448 = pneg %p395
        $region94: #{swin_forward.1} parent=91 // pred_check_branch
          %4450 = sbr.rel (%p4448) target = $region96
        $region95: #{swin_forward.1} parent=91 // pred_region
          %s4451 = sand.u32 %s380, 1
          %s4452 = scalar_lea.sflag [#allocation3], %s4451
          %s4453 = sand.u32 %s380, 1
          %s4454 = scalar_lea.vmem [#allocation2], %s4453
          %4455 = dma.done %s4452, 16
        $region96: #{swin_forward.1} parent=91 // pred_fallthru
          _
      $region92: #{swin_forward.1} parent=5 // pred_fallthru
        _
    $region6: #{swin_forward.1} parent=1 // loop_footer
      %s29 = sadd.s32 1, %s25
    $region7: #{swin_forward.1} parent=1 // loop_footer_branch
      %24 = sbr.rel target = $region3
    $region8: #{swin_forward.1} parent=1 // loop_exit
      _
    %4456 = vsyncpa [#allocation3], 1
    %s4457 = scalar_lea.sflag [#allocation3], 1
    %4458 = vsyncpa %s4457, 1

</llo_original>
